<compile_context>
chip_gen: v5e
topology: v5e:2x2
jax: 0.10.0
libtpu: 0.0.40
codegen_flags: <defaults>
</compile_context>

<pallas_src>
import functools

import jax
import jax.numpy as jnp
from jax.experimental import pallas as pl
from jax.experimental.pallas import tpu as pltpu

_LN_EPS = 1e-5
_VMEM_LIMIT = None          # derived lazily from the chip
_single_buffer_ok = True    # probed once; falls back if Buffered(1) rejected


def _round_up(x, m):
    return -(-x // m) * m


def _vmem_limit_bytes():
    """Scoped-VMEM limit: physical capacity minus headroom, capped at 96 MiB.
    v5e/v6e (128 MiB) -> 96 MiB; v7x (64 MiB) -> 48 MiB."""
    global _VMEM_LIMIT
    if _VMEM_LIMIT is None:
        try:
            cap = pltpu.get_tpu_info().vmem_capacity_bytes
        except Exception:
            cap = 64 * 1024 * 1024
        _VMEM_LIMIT = int(min(max(cap - 16 * 1024 * 1024, 32 * 1024 * 1024),
                              96 * 1024 * 1024))
    return _VMEM_LIMIT


def _default_tm():
    # Bigger tiles amortize per-grid-step overhead where VMEM allows (v5e/v6e);
    # keep tm <= 256 on v7x's 64 MiB VMEM.
    return 512 if _vmem_limit_bytes() >= 96 * 1024 * 1024 else 256


def _layer_norm(x, gamma, beta):
    mu = jnp.mean(x, axis=-1, keepdims=True)
    var = jnp.mean(jnp.square(x - mu), axis=-1, keepdims=True)
    return (x - mu) * jax.lax.rsqrt(var + _LN_EPS) * gamma + beta


def _bf16(x):
    return x.astype(jnp.bfloat16)


# ---------------------------------------------------------------------------
# Kernel: one BlockLayer (pre-norm MHA + pre-norm FFN with residuals),
# optionally fused with the final LayerNorm of Block on the last layer.
# ---------------------------------------------------------------------------
def block_layer_kernel(x_ref, wqkv_ref, bqkv_ref, wo_ref, bo_ref, hd_ref,
                       ln1g_ref, ln1b_ref, ln2g_ref, ln2b_ref,
                       w1_ref, fb1_ref, w2_ref, fb2_ref,
                       fng_ref, fnb_ref, o_ref, *, apply_final_norm):
    s, tm, d = x_ref.shape           # s == 3 triple positions
    e = wo_ref.shape[0]              # E = h * d_per

    # residual stream in f32 inside the kernel; bf16 in HBM
    x = x_ref[...].astype(jnp.float32).reshape(s * tm, d)

    # --- sublayer 0: pre-norm multi-head self-attention over the 3 positions
    xn = _layer_norm(x, ln1g_ref[...], ln1b_ref[...])
    qkv = jnp.dot(_bf16(xn), wqkv_ref[...],
                  preferred_element_type=jnp.float32) + bqkv_ref[...]   # (3tm,3E)
    q = _bf16(qkv[:, :e]).reshape(s, tm, e)
    k = _bf16(qkv[:, e:2 * e]).reshape(s, tm, e)
    v = qkv[:, 2 * e:].reshape(s, tm, e)                                # f32

    # all 9 (i, j) pairwise q*k products (bf16 VALU), free leading-axis reshape
    qk = (q.reshape(s, 1, tm, e) * k.reshape(1, s, tm, e)).reshape(s * s * tm, e)

    # (E, E) block-diagonal head matrix (scale 1/sqrt(d_per) folded in): one MXU
    # pass both reduces q*k over each head's d_per lanes and broadcasts the
    # per-head score back onto those lanes -> softmax/ctx stay lane-dense.
    sc = jnp.dot(qk, hd_ref[...], preferred_element_type=jnp.float32)   # (9tm,E)
    sc = sc.reshape(s, s, tm, e)                                        # [i, j]

    # softmax over the key position j (axis 1), f32 stats, unrolled (s == 3)
    m = sc[:, 0]
    for j in range(1, s):
        m = jnp.maximum(m, sc[:, j])
    p = jnp.exp(sc - m.reshape(s, 1, tm, e))                            # (3,3,tm,E)
    den = p[:, 0]
    for j in range(1, s):
        den = den + p[:, j]
    inv = pl.reciprocal(den, approx=True)                               # (3,tm,E)

    # context: sum_j p[i,j] * v[j]; denominator applied once at the end
    ctx = p[:, 0] * v[0]
    for j in range(1, s):
        ctx = ctx + p[:, j] * v[j]
    ctx = (ctx * inv).reshape(s * tm, e)                                # (3tm,E)

    # output projection + residual (dropout == identity at inference)
    x1 = x + jnp.dot(_bf16(ctx), wo_ref[...],
                     preferred_element_type=jnp.float32) + bo_ref[...]

    # --- sublayer 1: pre-norm position-wise feed-forward + residual
    xn2 = _layer_norm(x1, ln2g_ref[...], ln2b_ref[...])
    hmid = jnp.maximum(
        jnp.dot(_bf16(xn2), w1_ref[...], preferred_element_type=jnp.float32)
        + fb1_ref[...], 0.0)
    out = x1 + jnp.dot(_bf16(hmid), w2_ref[...],
                       preferred_element_type=jnp.float32) + fb2_ref[...]

    if apply_final_norm:   # Block's final LayerNorm fused into the last layer
        out = _layer_norm(out, fng_ref[...], fnb_ref[...])

    o_ref[...] = out.reshape(s, tm, d).astype(o_ref.dtype)


# ---------------------------------------------------------------------------
# pallas_call wrapper
# ---------------------------------------------------------------------------
def _weight_spec(shape, single_buffer):
    # Grid-invariant index_map: double buffering buys nothing, so request a
    # single resident buffer to free VMEM (most valuable on v7x).
    idx = lambda i, _n=len(shape): (0,) * _n
    if single_buffer:
        return pl.BlockSpec(shape, idx, pipeline_mode=pl.Buffered(1))
    return pl.BlockSpec(shape, idx)


def _call_block_layer(x, lp, fin, *, tm, apply_final_norm, single_buffer_weights):
    S, M, D = x.shape
    E3 = lp["wqkv"].shape[1]
    E = lp["wo"].shape[0]
    dff = lp["w1"].shape[1]
    kernel = functools.partial(block_layer_kernel,
                               apply_final_norm=apply_final_norm)
    ws = functools.partial(_weight_spec, single_buffer=single_buffer_weights)
    in_specs = [
        pl.BlockSpec((S, tm, D), lambda i: (0, i, 0)),   # x tile (pos-major)
        ws((D, E3)), ws((1, E3)),                        # fused Wqkv, bqkv
        ws((E, D)), ws((1, D)),                          # Wo, bo
        ws((E, E)),                                      # block-diag head matrix
        ws((1, D)), ws((1, D)),                          # ln1 gamma/beta
        ws((1, D)), ws((1, D)),                          # ln2 gamma/beta
        ws((D, dff)), ws((1, dff)),                      # W1, b1
        ws((dff, D)), ws((1, D)),                        # W2, b2
        ws((1, D)), ws((1, D)),                          # final LN gamma/beta
    ]
    return pl.pallas_call(
        kernel,
        out_shape=jax.ShapeDtypeStruct((S, M, D), x.dtype),
        grid=(M // tm,),
        in_specs=in_specs,
        out_specs=pl.BlockSpec((S, tm, D), lambda i: (0, i, 0)),
        compiler_params=pltpu.CompilerParams(
            dimension_semantics=("parallel",),
            vmem_limit_bytes=_vmem_limit_bytes()),
    )(x, lp["wqkv"], lp["bqkv"], lp["wo"], lp["bo"], lp["hd"],
      lp["ln1_g"], lp["ln1_b"], lp["ln2_g"], lp["ln2_b"],
      lp["w1"], lp["fb1"], lp["w2"], lp["fb2"],
      fin["g"], fin["b"])


def run_block_layer(x, lp, fin, *, tm, apply_final_norm):
    global _single_buffer_ok
    if _single_buffer_ok:
        try:
            return _call_block_layer(x, lp, fin, tm=tm,
                                     apply_final_norm=apply_final_norm,
                                     single_buffer_weights=True)
        except Exception:
            _single_buffer_ok = False   # fall back to default double buffering
    return _call_block_layer(x, lp, fin, tm=tm,
                             apply_final_norm=apply_final_norm,
                             single_buffer_weights=False)


# ---------------------------------------------------------------------------
# Parameters (deterministic synthetic init matching the module's shapes)
# ---------------------------------------------------------------------------
def _linear_init(key, fan_in, fan_out):
    kw, kb = jax.random.split(key)
    bound = 1.0 / fan_in ** 0.5
    w = jax.random.uniform(kw, (fan_in, fan_out), jnp.float32, -bound, bound)
    b = jax.random.uniform(kb, (1, fan_out), jnp.float32, -bound, bound)
    return w, b


def init_params(key, num_entity, num_relation, h, n_layers, d_model, d_per, d_ff):
    e = h * d_per
    keys = jax.random.split(key, 2 + n_layers)
    bound = 6.0 / d_model ** 0.5
    ent = jax.random.uniform(keys[0], (num_entity + 1, d_model), jnp.float32,
                             -bound, bound)
    ent = ent / jnp.linalg.norm(ent, axis=1, keepdims=True)
    rel = jax.random.uniform(keys[1], (num_relation + 1, d_model), jnp.float32,
                             -bound, bound)
    rel = rel / jnp.linalg.norm(rel, axis=1, keepdims=True)

    # (E, E) block-diagonal head matrix with the 1/sqrt(d_per) scale folded in:
    # reduces per head AND broadcasts the score back to the head's lanes.
    lane = jnp.arange(e)
    hd = (lane[:, None] // d_per == lane[None, :] // d_per).astype(jnp.float32)
    hd = (hd / d_per ** 0.5).astype(jnp.bfloat16)

    layers = []
    for li in range(n_layers):
        lk = jax.random.split(keys[2 + li], 6)
        wq, bq = _linear_init(lk[0], d_model, e)
        wk, bk = _linear_init(lk[1], d_model, e)
        wv, bv = _linear_init(lk[2], d_model, e)
        wo, bo = _linear_init(lk[3], e, d_model)
        w1, fb1 = _linear_init(lk[4], d_model, d_ff)
        w2, fb2 = _linear_init(lk[5], d_ff, d_model)
        layers.append(dict(
            wqkv=jnp.concatenate([wq, wk, wv], axis=1).astype(jnp.bfloat16),
            bqkv=jnp.concatenate([bq, bk, bv], axis=1),
            wo=wo.astype(jnp.bfloat16), bo=bo, hd=hd,
            ln1_g=jnp.ones((1, d_model), jnp.float32),
            ln1_b=jnp.zeros((1, d_model), jnp.float32),
            ln2_g=jnp.ones((1, d_model), jnp.float32),
            ln2_b=jnp.zeros((1, d_model), jnp.float32),
            w1=w1.astype(jnp.bfloat16), fb1=fb1,
            w2=w2.astype(jnp.bfloat16), fb2=fb2,
        ))
    final = dict(g=jnp.ones((1, d_model), jnp.float32),
                 b=jnp.zeros((1, d_model), jnp.float32))
    return dict(ent_emb=ent, rel_emb=rel, layers=layers, final=final)


# ---------------------------------------------------------------------------
# TrmE forward
# ---------------------------------------------------------------------------
def trme_forward(x_idx, params, *, tm=None):
    """x_idx: [B, L, 3] int32 (head, tail, relation ids) -> [B, L, 3, d_model]."""
    if tm is None:
        tm = _default_tm()
    # Embedding() of TrmE: gather (plain-JAX glue) + stack on the triple axis.
    heads = params["ent_emb"][x_idx[:, :, 0]]
    tails = params["ent_emb"][x_idx[:, :, 1]]
    rels = params["rel_emb"][x_idx[:, :, 2]]
    B, L, D = heads.shape
    M = B * L
    # position-major layout (3, M, D), bf16 residual stream in HBM.
    x = jnp.stack([heads, tails, rels], axis=0).reshape(3, M, D)
    x = x.astype(jnp.bfloat16)

    tm_eff = min(tm, _round_up(M, 8))
    if M // tm_eff < 2 and M >= 16:
        # v7x has 2 TensorCores: make the "parallel" grid at least 2 steps.
        tm_eff = _round_up(-(-M // 2), 8)
    m_pad = _round_up(M, tm_eff)
    if m_pad != M:   # pad rows so the grid covers every triple; sliced off below
        x = jnp.pad(x, ((0, 0), (0, m_pad - M), (0, 0)))

    n_layers = len(params["layers"])
    assert n_layers >= 1
    for li, lp in enumerate(params["layers"]):
        x = run_block_layer(x, lp, params["final"], tm=tm_eff,
                            apply_final_norm=(li == n_layers - 1))

    x = x[:, :M].astype(jnp.float32)
    return jnp.transpose(x, (1, 0, 2)).reshape(B, L, 3, D)
    # TODO(synk): dropout layers are identity here (inference semantics).


if __name__ == "__main__":
    key = jax.random.PRNGKey(0)
    B, L = 2, 8                      # M = B*L = 16 triples
    num_entity, num_relation = 10, 5
    h, N, d_model, d_per, d_ff = 2, 2, 32, 16, 64

    kp, kh, kt, kr = jax.random.split(key, 4)
    params = init_params(kp, num_entity, num_relation, h, N, d_model, d_per, d_ff)

    heads = jax.random.randint(kh, (B, L, 1), 0, num_entity + 1, dtype=jnp.int32)
    tails = jax.random.randint(kt, (B, L, 1), 0, num_entity + 1, dtype=jnp.int32)
    rels = jax.random.randint(kr, (B, L, 1), 0, num_relation + 1, dtype=jnp.int32)
    x_idx = jnp.concatenate([heads, tails, rels], axis=-1)   # [B, L, 3]

    out = trme_forward(x_idx, params)
    out = jax.block_until_ready(out)
    assert out.shape == (B, L, 3, d_model), out.shape
    assert bool(jnp.all(jnp.isfinite(out)))
    print("KERNEL_OK")
</pallas_src>

<mosaic_0001>
module attributes {stable_mosaic.version = 11 : i64} {
  func.func @block_layer_kernel(%arg0: i32, %arg1: memref<3x8x32xbf16, #tpu.memory_space<vmem>>, %arg2: memref<32x96xbf16, #tpu.memory_space<vmem>>, %arg3: memref<1x96xf32, #tpu.memory_space<vmem>>, %arg4: memref<32x32xbf16, #tpu.memory_space<vmem>>, %arg5: memref<1x32xf32, #tpu.memory_space<vmem>>, %arg6: memref<32x32xbf16, #tpu.memory_space<vmem>>, %arg7: memref<1x32xf32, #tpu.memory_space<vmem>>, %arg8: memref<1x32xf32, #tpu.memory_space<vmem>>, %arg9: memref<1x32xf32, #tpu.memory_space<vmem>>, %arg10: memref<1x32xf32, #tpu.memory_space<vmem>>, %arg11: memref<32x64xbf16, #tpu.memory_space<vmem>>, %arg12: memref<1x64xf32, #tpu.memory_space<vmem>>, %arg13: memref<64x32xbf16, #tpu.memory_space<vmem>>, %arg14: memref<1x32xf32, #tpu.memory_space<vmem>>, %arg15: memref<1x32xf32, #tpu.memory_space<vmem>>, %arg16: memref<1x32xf32, #tpu.memory_space<vmem>>, %arg17: memref<3x8x32xbf16, #tpu.memory_space<vmem>>) attributes {dimension_semantics = [#tpu.dimension_semantics<parallel>], iteration_bounds = array<i64: 2>, scalar_prefetch = 0 : i64, scratch_operands = 0 : i64, tpu.core_type = #tpu.core_type<tc>, window_params = [{transform_indices = @transform_0, window_bounds = array<i64: 3, 8, 32>}, {pipeline_mode = #tpu.pipeline_mode<synchronous>, transform_indices = @transform_1, window_bounds = array<i64: 32, 96>}, {pipeline_mode = #tpu.pipeline_mode<synchronous>, transform_indices = @transform_2, window_bounds = array<i64: 1, 96>}, {pipeline_mode = #tpu.pipeline_mode<synchronous>, transform_indices = @transform_3, window_bounds = array<i64: 32, 32>}, {pipeline_mode = #tpu.pipeline_mode<synchronous>, transform_indices = @transform_4, window_bounds = array<i64: 1, 32>}, {pipeline_mode = #tpu.pipeline_mode<synchronous>, transform_indices = @transform_5, window_bounds = array<i64: 32, 32>}, {pipeline_mode = #tpu.pipeline_mode<synchronous>, transform_indices = @transform_6, window_bounds = array<i64: 1, 32>}, {pipeline_mode = #tpu.pipeline_mode<synchronous>, transform_indices = @transform_7, window_bounds = array<i64: 1, 32>}, {pipeline_mode = #tpu.pipeline_mode<synchronous>, transform_indices = @transform_8, window_bounds = array<i64: 1, 32>}, {pipeline_mode = #tpu.pipeline_mode<synchronous>, transform_indices = @transform_9, window_bounds = array<i64: 1, 32>}, {pipeline_mode = #tpu.pipeline_mode<synchronous>, transform_indices = @transform_10, window_bounds = array<i64: 32, 64>}, {pipeline_mode = #tpu.pipeline_mode<synchronous>, transform_indices = @transform_11, window_bounds = array<i64: 1, 64>}, {pipeline_mode = #tpu.pipeline_mode<synchronous>, transform_indices = @transform_12, window_bounds = array<i64: 64, 32>}, {pipeline_mode = #tpu.pipeline_mode<synchronous>, transform_indices = @transform_13, window_bounds = array<i64: 1, 32>}, {pipeline_mode = #tpu.pipeline_mode<synchronous>, transform_indices = @transform_14, window_bounds = array<i64: 1, 32>}, {pipeline_mode = #tpu.pipeline_mode<synchronous>, transform_indices = @transform_15, window_bounds = array<i64: 1, 32>}, {transform_indices = @transform_16, window_bounds = array<i64: 3, 8, 32>}]} {
    %c0 = arith.constant 0 : index
    %c0_0 = arith.constant 0 : index
    %c0_1 = arith.constant 0 : index
    %0 = vector.load %arg1[%c0, %c0_0, %c0_1] : memref<3x8x32xbf16, #tpu.memory_space<vmem>>, vector<3x8x32xbf16>
    %1 = arith.extf %0 : vector<3x8x32xbf16> to vector<3x8x32xf32>
    %2 = vector.shape_cast %1 : vector<3x8x32xf32> to vector<24x32xf32>
    %c0_2 = arith.constant 0 : index
    %c0_3 = arith.constant 0 : index
    %3 = vector.load %arg7[%c0_2, %c0_3] : memref<1x32xf32, #tpu.memory_space<vmem>>, vector<1x32xf32>
    %c0_4 = arith.constant 0 : index
    %c0_5 = arith.constant 0 : index
    %4 = vector.load %arg8[%c0_4, %c0_5] : memref<1x32xf32, #tpu.memory_space<vmem>>, vector<1x32xf32>
    %cst = arith.constant dense<0.000000e+00> : vector<24xf32>
    %5 = vector.multi_reduction <add>, %2, %cst [1] : vector<24x32xf32> to vector<24xf32>
    %6 = vector.shape_cast %5 : vector<24xf32> to vector<24x1xf32>
    %cst_6 = arith.constant 3.200000e+01 : f32
    %7 = vector.broadcast %cst_6 : f32 to vector<24x1xf32>
    %8 = arith.divf %6, %7 : vector<24x1xf32>
    %9 = vector.broadcast %8 : vector<24x1xf32> to vector<24x32xf32>
    %10 = arith.subf %2, %9 : vector<24x32xf32>
    %11 = arith.mulf %10, %10 : vector<24x32xf32>
    %cst_7 = arith.constant dense<0.000000e+00> : vector<24xf32>
    %12 = vector.multi_reduction <add>, %11, %cst_7 [1] : vector<24x32xf32> to vector<24xf32>
    %13 = vector.shape_cast %12 : vector<24xf32> to vector<24x1xf32>
    %cst_8 = arith.constant 3.200000e+01 : f32
    %14 = vector.broadcast %cst_8 : f32 to vector<24x1xf32>
    %15 = arith.divf %13, %14 : vector<24x1xf32>
    %16 = vector.broadcast %8 : vector<24x1xf32> to vector<24x32xf32>
    %17 = arith.subf %2, %16 : vector<24x32xf32>
    %cst_9 = arith.constant 9.99999974E-6 : f32
    %18 = vector.broadcast %cst_9 : f32 to vector<24x1xf32>
    %19 = arith.addf %15, %18 : vector<24x1xf32>
    %20 = math.rsqrt %19 : vector<24x1xf32>
    %21 = vector.broadcast %20 : vector<24x1xf32> to vector<24x32xf32>
    %22 = arith.mulf %17, %21 : vector<24x32xf32>
    %23 = vector.broadcast %3 : vector<1x32xf32> to vector<24x32xf32>
    %24 = arith.mulf %22, %23 : vector<24x32xf32>
    %25 = vector.broadcast %4 : vector<1x32xf32> to vector<24x32xf32>
    %26 = arith.addf %24, %25 : vector<24x32xf32>
    %27 = arith.truncf %26 : vector<24x32xf32> to vector<24x32xbf16>
    %c0_10 = arith.constant 0 : index
    %c0_11 = arith.constant 0 : index
    %28 = vector.load %arg2[%c0_10, %c0_11] : memref<32x96xbf16, #tpu.memory_space<vmem>>, vector<32x96xbf16>
    %cst_12 = arith.constant dense<0.000000e+00> : vector<24x96xf32>
    %29 = tpu.matmul %27, %28, %cst_12 {dimension_numbers = #tpu.dot_dimension_numbers<[1], [0], [0], [1], [0, 0, 1, 1], [], []>} : vector<24x32xbf16>, vector<32x96xbf16>, vector<24x96xf32> -> vector<24x96xf32>
    %c0_13 = arith.constant 0 : index
    %c0_14 = arith.constant 0 : index
    %30 = vector.load %arg3[%c0_13, %c0_14] : memref<1x96xf32, #tpu.memory_space<vmem>>, vector<1x96xf32>
    %31 = vector.broadcast %30 : vector<1x96xf32> to vector<24x96xf32>
    %32 = arith.addf %29, %31 : vector<24x96xf32>
    %33 = vector.extract_strided_slice %32 {offsets = [0, 0], sizes = [24, 32], strides = [1, 1]} : vector<24x96xf32> to vector<24x32xf32>
    %34 = arith.truncf %33 : vector<24x32xf32> to vector<24x32xbf16>
    %35 = vector.shape_cast %34 : vector<24x32xbf16> to vector<3x8x32xbf16>
    %36 = vector.extract_strided_slice %32 {offsets = [0, 32], sizes = [24, 32], strides = [1, 1]} : vector<24x96xf32> to vector<24x32xf32>
    %37 = arith.truncf %36 : vector<24x32xf32> to vector<24x32xbf16>
    %38 = vector.shape_cast %37 : vector<24x32xbf16> to vector<3x8x32xbf16>
    %39 = vector.extract_strided_slice %32 {offsets = [0, 64], sizes = [24, 32], strides = [1, 1]} : vector<24x96xf32> to vector<24x32xf32>
    %40 = vector.shape_cast %39 : vector<24x32xf32> to vector<3x8x32xf32>
    %41 = vector.shape_cast %35 : vector<3x8x32xbf16> to vector<3x1x8x32xbf16>
    %42 = vector.shape_cast %38 : vector<3x8x32xbf16> to vector<1x3x8x32xbf16>
    %43 = vector.broadcast %41 : vector<3x1x8x32xbf16> to vector<3x3x8x32xbf16>
    %44 = vector.broadcast %42 : vector<1x3x8x32xbf16> to vector<3x3x8x32xbf16>
    %45 = arith.mulf %43, %44 : vector<3x3x8x32xbf16>
    %46 = vector.shape_cast %45 : vector<3x3x8x32xbf16> to vector<72x32xbf16>
    %c0_15 = arith.constant 0 : index
    %c0_16 = arith.constant 0 : index
    %47 = vector.load %arg6[%c0_15, %c0_16] : memref<32x32xbf16, #tpu.memory_space<vmem>>, vector<32x32xbf16>
    %cst_17 = arith.constant dense<0.000000e+00> : vector<72x32xf32>
    %48 = tpu.matmul %46, %47, %cst_17 {dimension_numbers = #tpu.dot_dimension_numbers<[1], [0], [0], [1], [0, 0, 1, 1], [], []>} : vector<72x32xbf16>, vector<32x32xbf16>, vector<72x32xf32> -> vector<72x32xf32>
    %49 = vector.shape_cast %48 : vector<72x32xf32> to vector<3x3x8x32xf32>
    %50 = vector.extract_strided_slice %49 {offsets = [0, 0, 0, 0], sizes = [3, 1, 8, 32], strides = [1, 1, 1, 1]} : vector<3x3x8x32xf32> to vector<3x1x8x32xf32>
    %51 = vector.shape_cast %50 : vector<3x1x8x32xf32> to vector<3x8x32xf32>
    %52 = vector.extract_strided_slice %49 {offsets = [0, 1, 0, 0], sizes = [3, 1, 8, 32], strides = [1, 1, 1, 1]} : vector<3x3x8x32xf32> to vector<3x1x8x32xf32>
    %53 = vector.shape_cast %52 : vector<3x1x8x32xf32> to vector<3x8x32xf32>
    %54 = arith.maximumf %51, %53 : vector<3x8x32xf32>
    %55 = vector.extract_strided_slice %49 {offsets = [0, 2, 0, 0], sizes = [3, 1, 8, 32], strides = [1, 1, 1, 1]} : vector<3x3x8x32xf32> to vector<3x1x8x32xf32>
    %56 = vector.shape_cast %55 : vector<3x1x8x32xf32> to vector<3x8x32xf32>
    %57 = arith.maximumf %54, %56 : vector<3x8x32xf32>
    %58 = vector.shape_cast %57 : vector<3x8x32xf32> to vector<3x1x8x32xf32>
    %59 = vector.broadcast %58 : vector<3x1x8x32xf32> to vector<3x3x8x32xf32>
    %60 = arith.subf %49, %59 : vector<3x3x8x32xf32>
    %61 = math.exp %60 : vector<3x3x8x32xf32>
    %62 = vector.extract_strided_slice %61 {offsets = [0, 0, 0, 0], sizes = [3, 1, 8, 32], strides = [1, 1, 1, 1]} : vector<3x3x8x32xf32> to vector<3x1x8x32xf32>
    %63 = vector.shape_cast %62 : vector<3x1x8x32xf32> to vector<3x8x32xf32>
    %64 = vector.extract_strided_slice %61 {offsets = [0, 1, 0, 0], sizes = [3, 1, 8, 32], strides = [1, 1, 1, 1]} : vector<3x3x8x32xf32> to vector<3x1x8x32xf32>
    %65 = vector.shape_cast %64 : vector<3x1x8x32xf32> to vector<3x8x32xf32>
    %66 = arith.addf %63, %65 : vector<3x8x32xf32>
    %67 = vector.extract_strided_slice %61 {offsets = [0, 2, 0, 0], sizes = [3, 1, 8, 32], strides = [1, 1, 1, 1]} : vector<3x3x8x32xf32> to vector<3x1x8x32xf32>
    %68 = vector.shape_cast %67 : vector<3x1x8x32xf32> to vector<3x8x32xf32>
    %69 = arith.addf %66, %68 : vector<3x8x32xf32>
    %70 = tpu.reciprocal %69 {approx = true} : vector<3x8x32xf32> -> vector<3x8x32xf32>
    %71 = vector.extract_strided_slice %61 {offsets = [0, 0, 0, 0], sizes = [3, 1, 8, 32], strides = [1, 1, 1, 1]} : vector<3x3x8x32xf32> to vector<3x1x8x32xf32>
    %72 = vector.shape_cast %71 : vector<3x1x8x32xf32> to vector<3x8x32xf32>
    %73 = vector.extract_strided_slice %40 {offsets = [0, 0, 0], sizes = [1, 8, 32], strides = [1, 1, 1]} : vector<3x8x32xf32> to vector<1x8x32xf32>
    %74 = vector.shape_cast %73 : vector<1x8x32xf32> to vector<8x32xf32>
    %75 = vector.shape_cast %74 : vector<8x32xf32> to vector<1x8x32xf32>
    %76 = vector.broadcast %75 : vector<1x8x32xf32> to vector<3x8x32xf32>
    %77 = arith.mulf %72, %76 : vector<3x8x32xf32>
    %78 = vector.extract_strided_slice %61 {offsets = [0, 1, 0, 0], sizes = [3, 1, 8, 32], strides = [1, 1, 1, 1]} : vector<3x3x8x32xf32> to vector<3x1x8x32xf32>
    %79 = vector.shape_cast %78 : vector<3x1x8x32xf32> to vector<3x8x32xf32>
    %80 = vector.extract_strided_slice %40 {offsets = [1, 0, 0], sizes = [1, 8, 32], strides = [1, 1, 1]} : vector<3x8x32xf32> to vector<1x8x32xf32>
    %81 = vector.shape_cast %80 : vector<1x8x32xf32> to vector<8x32xf32>
    %82 = vector.shape_cast %81 : vector<8x32xf32> to vector<1x8x32xf32>
    %83 = vector.broadcast %82 : vector<1x8x32xf32> to vector<3x8x32xf32>
    %84 = arith.mulf %79, %83 : vector<3x8x32xf32>
    %85 = arith.addf %77, %84 : vector<3x8x32xf32>
    %86 = vector.extract_strided_slice %61 {offsets = [0, 2, 0, 0], sizes = [3, 1, 8, 32], strides = [1, 1, 1, 1]} : vector<3x3x8x32xf32> to vector<3x1x8x32xf32>
    %87 = vector.shape_cast %86 : vector<3x1x8x32xf32> to vector<3x8x32xf32>
    %88 = vector.extract_strided_slice %40 {offsets = [2, 0, 0], sizes = [1, 8, 32], strides = [1, 1, 1]} : vector<3x8x32xf32> to vector<1x8x32xf32>
    %89 = vector.shape_cast %88 : vector<1x8x32xf32> to vector<8x32xf32>
    %90 = vector.shape_cast %89 : vector<8x32xf32> to vector<1x8x32xf32>
    %91 = vector.broadcast %90 : vector<1x8x32xf32> to vector<3x8x32xf32>
    %92 = arith.mulf %87, %91 : vector<3x8x32xf32>
    %93 = arith.addf %85, %92 : vector<3x8x32xf32>
    %94 = arith.mulf %93, %70 : vector<3x8x32xf32>
    %95 = vector.shape_cast %94 : vector<3x8x32xf32> to vector<24x32xf32>
    %96 = arith.truncf %95 : vector<24x32xf32> to vector<24x32xbf16>
    %c0_18 = arith.constant 0 : index
    %c0_19 = arith.constant 0 : index
    %97 = vector.load %arg4[%c0_18, %c0_19] : memref<32x32xbf16, #tpu.memory_space<vmem>>, vector<32x32xbf16>
    %cst_20 = arith.constant dense<0.000000e+00> : vector<24x32xf32>
    %98 = tpu.matmul %96, %97, %cst_20 {dimension_numbers = #tpu.dot_dimension_numbers<[1], [0], [0], [1], [0, 0, 1, 1], [], []>} : vector<24x32xbf16>, vector<32x32xbf16>, vector<24x32xf32> -> vector<24x32xf32>
    %99 = arith.addf %2, %98 : vector<24x32xf32>
    %c0_21 = arith.constant 0 : index
    %c0_22 = arith.constant 0 : index
    %100 = vector.load %arg5[%c0_21, %c0_22] : memref<1x32xf32, #tpu.memory_space<vmem>>, vector<1x32xf32>
    %101 = vector.broadcast %100 : vector<1x32xf32> to vector<24x32xf32>
    %102 = arith.addf %99, %101 : vector<24x32xf32>
    %c0_23 = arith.constant 0 : index
    %c0_24 = arith.constant 0 : index
    %103 = vector.load %arg9[%c0_23, %c0_24] : memref<1x32xf32, #tpu.memory_space<vmem>>, vector<1x32xf32>
    %c0_25 = arith.constant 0 : index
    %c0_26 = arith.constant 0 : index
    %104 = vector.load %arg10[%c0_25, %c0_26] : memref<1x32xf32, #tpu.memory_space<vmem>>, vector<1x32xf32>
    %cst_27 = arith.constant dense<0.000000e+00> : vector<24xf32>
    %105 = vector.multi_reduction <add>, %102, %cst_27 [1] : vector<24x32xf32> to vector<24xf32>
    %106 = vector.shape_cast %105 : vector<24xf32> to vector<24x1xf32>
    %cst_28 = arith.constant 3.200000e+01 : f32
    %107 = vector.broadcast %cst_28 : f32 to vector<24x1xf32>
    %108 = arith.divf %106, %107 : vector<24x1xf32>
    %109 = vector.broadcast %108 : vector<24x1xf32> to vector<24x32xf32>
    %110 = arith.subf %102, %109 : vector<24x32xf32>
    %111 = arith.mulf %110, %110 : vector<24x32xf32>
    %cst_29 = arith.constant dense<0.000000e+00> : vector<24xf32>
    %112 = vector.multi_reduction <add>, %111, %cst_29 [1] : vector<24x32xf32> to vector<24xf32>
    %113 = vector.shape_cast %112 : vector<24xf32> to vector<24x1xf32>
    %cst_30 = arith.constant 3.200000e+01 : f32
    %114 = vector.broadcast %cst_30 : f32 to vector<24x1xf32>
    %115 = arith.divf %113, %114 : vector<24x1xf32>
    %116 = vector.broadcast %108 : vector<24x1xf32> to vector<24x32xf32>
    %117 = arith.subf %102, %116 : vector<24x32xf32>
    %cst_31 = arith.constant 9.99999974E-6 : f32
    %118 = vector.broadcast %cst_31 : f32 to vector<24x1xf32>
    %119 = arith.addf %115, %118 : vector<24x1xf32>
    %120 = math.rsqrt %119 : vector<24x1xf32>
    %121 = vector.broadcast %120 : vector<24x1xf32> to vector<24x32xf32>
    %122 = arith.mulf %117, %121 : vector<24x32xf32>
    %123 = vector.broadcast %103 : vector<1x32xf32> to vector<24x32xf32>
    %124 = arith.mulf %122, %123 : vector<24x32xf32>
    %125 = vector.broadcast %104 : vector<1x32xf32> to vector<24x32xf32>
    %126 = arith.addf %124, %125 : vector<24x32xf32>
    %127 = arith.truncf %126 : vector<24x32xf32> to vector<24x32xbf16>
    %c0_32 = arith.constant 0 : index
    %c0_33 = arith.constant 0 : index
    %128 = vector.load %arg11[%c0_32, %c0_33] : memref<32x64xbf16, #tpu.memory_space<vmem>>, vector<32x64xbf16>
    %cst_34 = arith.constant dense<0.000000e+00> : vector<24x64xf32>
    %129 = tpu.matmul %127, %128, %cst_34 {dimension_numbers = #tpu.dot_dimension_numbers<[1], [0], [0], [1], [0, 0, 1, 1], [], []>} : vector<24x32xbf16>, vector<32x64xbf16>, vector<24x64xf32> -> vector<24x64xf32>
    %c0_35 = arith.constant 0 : index
    %c0_36 = arith.constant 0 : index
    %130 = vector.load %arg12[%c0_35, %c0_36] : memref<1x64xf32, #tpu.memory_space<vmem>>, vector<1x64xf32>
    %131 = vector.broadcast %130 : vector<1x64xf32> to vector<24x64xf32>
    %132 = arith.addf %129, %131 : vector<24x64xf32>
    %cst_37 = arith.constant 0.000000e+00 : f32
    %133 = vector.broadcast %cst_37 : f32 to vector<24x64xf32>
    %134 = arith.maximumf %132, %133 : vector<24x64xf32>
    %135 = arith.truncf %134 : vector<24x64xf32> to vector<24x64xbf16>
    %c0_38 = arith.constant 0 : index
    %c0_39 = arith.constant 0 : index
    %136 = vector.load %arg13[%c0_38, %c0_39] : memref<64x32xbf16, #tpu.memory_space<vmem>>, vector<64x32xbf16>
    %cst_40 = arith.constant dense<0.000000e+00> : vector<24x32xf32>
    %137 = tpu.matmul %135, %136, %cst_40 {dimension_numbers = #tpu.dot_dimension_numbers<[1], [0], [0], [1], [0, 0, 1, 1], [], []>} : vector<24x64xbf16>, vector<64x32xbf16>, vector<24x32xf32> -> vector<24x32xf32>
    %138 = arith.addf %102, %137 : vector<24x32xf32>
    %c0_41 = arith.constant 0 : index
    %c0_42 = arith.constant 0 : index
    %139 = vector.load %arg14[%c0_41, %c0_42] : memref<1x32xf32, #tpu.memory_space<vmem>>, vector<1x32xf32>
    %140 = vector.broadcast %139 : vector<1x32xf32> to vector<24x32xf32>
    %141 = arith.addf %138, %140 : vector<24x32xf32>
    %142 = vector.shape_cast %141 : vector<24x32xf32> to vector<3x8x32xf32>
    %143 = arith.truncf %142 : vector<3x8x32xf32> to vector<3x8x32xbf16>
    %c0_43 = arith.constant 0 : index
    %c0_44 = arith.constant 0 : index
    %c0_45 = arith.constant 0 : index
    %144 = vector.load %arg17[%c0_43, %c0_44, %c0_45] : memref<3x8x32xbf16, #tpu.memory_space<vmem>>, vector<3x8x32xbf16>
    tpu.vector_store %arg17[%c0_43, %c0_44, %c0_45], %143 {strides = array<i32>} : memref<3x8x32xbf16, #tpu.memory_space<vmem>>, vector<3x8x32xbf16>,
    return
  }
  func.func @transform_0(%arg0: i32) -> (i32, i32, i32) {
    %c0_i32 = arith.constant 0 : i32
    %c0_i32_0 = arith.constant 0 : i32
    %c0_i32_1 = arith.constant 0 : i32
    return %c0_i32, %arg0, %c0_i32_0 : i32, i32, i32
  }
  func.func @transform_1(%arg0: i32) -> (i32, i32) {
    %c0_i32 = arith.constant 0 : i32
    %c0_i32_0 = arith.constant 0 : i32
    %c0_i32_1 = arith.constant 0 : i32
    return %c0_i32, %c0_i32_0 : i32, i32
  }
  func.func @transform_2(%arg0: i32) -> (i32, i32) {
    %c0_i32 = arith.constant 0 : i32
    %c0_i32_0 = arith.constant 0 : i32
    %c0_i32_1 = arith.constant 0 : i32
    return %c0_i32, %c0_i32_0 : i32, i32
  }
  func.func @transform_3(%arg0: i32) -> (i32, i32) {
    %c0_i32 = arith.constant 0 : i32
    %c0_i32_0 = arith.constant 0 : i32
    %c0_i32_1 = arith.constant 0 : i32
    return %c0_i32, %c0_i32_0 : i32, i32
  }
  func.func @transform_4(%arg0: i32) -> (i32, i32) {
    %c0_i32 = arith.constant 0 : i32
    %c0_i32_0 = arith.constant 0 : i32
    %c0_i32_1 = arith.constant 0 : i32
    return %c0_i32, %c0_i32_0 : i32, i32
  }
  func.func @transform_5(%arg0: i32) -> (i32, i32) {
    %c0_i32 = arith.constant 0 : i32
    %c0_i32_0 = arith.constant 0 : i32
    %c0_i32_1 = arith.constant 0 : i32
    return %c0_i32, %c0_i32_0 : i32, i32
  }
  func.func @transform_6(%arg0: i32) -> (i32, i32) {
    %c0_i32 = arith.constant 0 : i32
    %c0_i32_0 = arith.constant 0 : i32
    %c0_i32_1 = arith.constant 0 : i32
    return %c0_i32, %c0_i32_0 : i32, i32
  }
  func.func @transform_7(%arg0: i32) -> (i32, i32) {
    %c0_i32 = arith.constant 0 : i32
    %c0_i32_0 = arith.constant 0 : i32
    %c0_i32_1 = arith.constant 0 : i32
    return %c0_i32, %c0_i32_0 : i32, i32
  }
  func.func @transform_8(%arg0: i32) -> (i32, i32) {
    %c0_i32 = arith.constant 0 : i32
    %c0_i32_0 = arith.constant 0 : i32
    %c0_i32_1 = arith.constant 0 : i32
    return %c0_i32, %c0_i32_0 : i32, i32
  }
  func.func @transform_9(%arg0: i32) -> (i32, i32) {
    %c0_i32 = arith.constant 0 : i32
    %c0_i32_0 = arith.constant 0 : i32
    %c0_i32_1 = arith.constant 0 : i32
    return %c0_i32, %c0_i32_0 : i32, i32
  }
  func.func @transform_10(%arg0: i32) -> (i32, i32) {
    %c0_i32 = arith.constant 0 : i32
    %c0_i32_0 = arith.constant 0 : i32
    %c0_i32_1 = arith.constant 0 : i32
    return %c0_i32, %c0_i32_0 : i32, i32
  }
  func.func @transform_11(%arg0: i32) -> (i32, i32) {
    %c0_i32 = arith.constant 0 : i32
    %c0_i32_0 = arith.constant 0 : i32
    %c0_i32_1 = arith.constant 0 : i32
    return %c0_i32, %c0_i32_0 : i32, i32
  }
  func.func @transform_12(%arg0: i32) -> (i32, i32) {
    %c0_i32 = arith.constant 0 : i32
    %c0_i32_0 = arith.constant 0 : i32
    %c0_i32_1 = arith.constant 0 : i32
    return %c0_i32, %c0_i32_0 : i32, i32
  }
  func.func @transform_13(%arg0: i32) -> (i32, i32) {
    %c0_i32 = arith.constant 0 : i32
    %c0_i32_0 = arith.constant 0 : i32
    %c0_i32_1 = arith.constant 0 : i32
    return %c0_i32, %c0_i32_0 : i32, i32
  }
  func.func @transform_14(%arg0: i32) -> (i32, i32) {
    %c0_i32 = arith.constant 0 : i32
    %c0_i32_0 = arith.constant 0 : i32
    %c0_i32_1 = arith.constant 0 : i32
    return %c0_i32, %c0_i32_0 : i32, i32
  }
  func.func @transform_15(%arg0: i32) -> (i32, i32) {
    %c0_i32 = arith.constant 0 : i32
    %c0_i32_0 = arith.constant 0 : i32
    %c0_i32_1 = arith.constant 0 : i32
    return %c0_i32, %c0_i32_0 : i32, i32
  }
  func.func @transform_16(%arg0: i32) -> (i32, i32, i32) {
    %c0_i32 = arith.constant 0 : i32
    %c0_i32_0 = arith.constant 0 : i32
    %c0_i32_1 = arith.constant 0 : i32
    return %c0_i32, %arg0, %c0_i32_0 : i32, i32, i32
  }
}

module attributes {stable_mosaic.version = 11 : i64} {
  func.func @block_layer_kernel(%arg0: i32, %arg1: memref<3x8x32xbf16, #tpu.memory_space<vmem>>, %arg2: memref<32x96xbf16, #tpu.memory_space<vmem>>, %arg3: memref<1x96xf32, #tpu.memory_space<vmem>>, %arg4: memref<32x32xbf16, #tpu.memory_space<vmem>>, %arg5: memref<1x32xf32, #tpu.memory_space<vmem>>, %arg6: memref<32x32xbf16, #tpu.memory_space<vmem>>, %arg7: memref<1x32xf32, #tpu.memory_space<vmem>>, %arg8: memref<1x32xf32, #tpu.memory_space<vmem>>, %arg9: memref<1x32xf32, #tpu.memory_space<vmem>>, %arg10: memref<1x32xf32, #tpu.memory_space<vmem>>, %arg11: memref<32x64xbf16, #tpu.memory_space<vmem>>, %arg12: memref<1x64xf32, #tpu.memory_space<vmem>>, %arg13: memref<64x32xbf16, #tpu.memory_space<vmem>>, %arg14: memref<1x32xf32, #tpu.memory_space<vmem>>, %arg15: memref<1x32xf32, #tpu.memory_space<vmem>>, %arg16: memref<1x32xf32, #tpu.memory_space<vmem>>, %arg17: memref<3x8x32xbf16, #tpu.memory_space<vmem>>) attributes {dimension_semantics = [#tpu.dimension_semantics<parallel>], iteration_bounds = array<i64: 2>, scalar_prefetch = 0 : i64, scratch_operands = 0 : i64, tpu.core_type = #tpu.core_type<tc>, window_params = [{transform_indices = @transform_0, window_bounds = array<i64: 3, 8, 32>}, {pipeline_mode = #tpu.pipeline_mode<synchronous>, transform_indices = @transform_1, window_bounds = array<i64: 32, 96>}, {pipeline_mode = #tpu.pipeline_mode<synchronous>, transform_indices = @transform_2, window_bounds = array<i64: 1, 96>}, {pipeline_mode = #tpu.pipeline_mode<synchronous>, transform_indices = @transform_3, window_bounds = array<i64: 32, 32>}, {pipeline_mode = #tpu.pipeline_mode<synchronous>, transform_indices = @transform_4, window_bounds = array<i64: 1, 32>}, {pipeline_mode = #tpu.pipeline_mode<synchronous>, transform_indices = @transform_5, window_bounds = array<i64: 32, 32>}, {pipeline_mode = #tpu.pipeline_mode<synchronous>, transform_indices = @transform_6, window_bounds = array<i64: 1, 32>}, {pipeline_mode = #tpu.pipeline_mode<synchronous>, transform_indices = @transform_7, window_bounds = array<i64: 1, 32>}, {pipeline_mode = #tpu.pipeline_mode<synchronous>, transform_indices = @transform_8, window_bounds = array<i64: 1, 32>}, {pipeline_mode = #tpu.pipeline_mode<synchronous>, transform_indices = @transform_9, window_bounds = array<i64: 1, 32>}, {pipeline_mode = #tpu.pipeline_mode<synchronous>, transform_indices = @transform_10, window_bounds = array<i64: 32, 64>}, {pipeline_mode = #tpu.pipeline_mode<synchronous>, transform_indices = @transform_11, window_bounds = array<i64: 1, 64>}, {pipeline_mode = #tpu.pipeline_mode<synchronous>, transform_indices = @transform_12, window_bounds = array<i64: 64, 32>}, {pipeline_mode = #tpu.pipeline_mode<synchronous>, transform_indices = @transform_13, window_bounds = array<i64: 1, 32>}, {pipeline_mode = #tpu.pipeline_mode<synchronous>, transform_indices = @transform_14, window_bounds = array<i64: 1, 32>}, {pipeline_mode = #tpu.pipeline_mode<synchronous>, transform_indices = @transform_15, window_bounds = array<i64: 1, 32>}, {transform_indices = @transform_16, window_bounds = array<i64: 3, 8, 32>}]} {
    %c0 = arith.constant 0 : index
    %c0_0 = arith.constant 0 : index
    %c0_1 = arith.constant 0 : index
    %0 = vector.load %arg1[%c0, %c0_0, %c0_1] : memref<3x8x32xbf16, #tpu.memory_space<vmem>>, vector<3x8x32xbf16>
    %1 = arith.extf %0 : vector<3x8x32xbf16> to vector<3x8x32xf32>
    %2 = vector.shape_cast %1 : vector<3x8x32xf32> to vector<24x32xf32>
    %c0_2 = arith.constant 0 : index
    %c0_3 = arith.constant 0 : index
    %3 = vector.load %arg7[%c0_2, %c0_3] : memref<1x32xf32, #tpu.memory_space<vmem>>, vector<1x32xf32>
    %c0_4 = arith.constant 0 : index
    %c0_5 = arith.constant 0 : index
    %4 = vector.load %arg8[%c0_4, %c0_5] : memref<1x32xf32, #tpu.memory_space<vmem>>, vector<1x32xf32>
    %cst = arith.constant dense<0.000000e+00> : vector<24xf32>
    %5 = vector.multi_reduction <add>, %2, %cst [1] : vector<24x32xf32> to vector<24xf32>
    %6 = vector.shape_cast %5 : vector<24xf32> to vector<24x1xf32>
    %cst_6 = arith.constant 3.200000e+01 : f32
    %7 = vector.broadcast %cst_6 : f32 to vector<24x1xf32>
    %8 = arith.divf %6, %7 : vector<24x1xf32>
    %9 = vector.broadcast %8 : vector<24x1xf32> to vector<24x32xf32>
    %10 = arith.subf %2, %9 : vector<24x32xf32>
    %11 = arith.mulf %10, %10 : vector<24x32xf32>
    %cst_7 = arith.constant dense<0.000000e+00> : vector<24xf32>
    %12 = vector.multi_reduction <add>, %11, %cst_7 [1] : vector<24x32xf32> to vector<24xf32>
    %13 = vector.shape_cast %12 : vector<24xf32> to vector<24x1xf32>
    %cst_8 = arith.constant 3.200000e+01 : f32
    %14 = vector.broadcast %cst_8 : f32 to vector<24x1xf32>
    %15 = arith.divf %13, %14 : vector<24x1xf32>
    %16 = vector.broadcast %8 : vector<24x1xf32> to vector<24x32xf32>
    %17 = arith.subf %2, %16 : vector<24x32xf32>
    %cst_9 = arith.constant 9.99999974E-6 : f32
    %18 = vector.broadcast %cst_9 : f32 to vector<24x1xf32>
    %19 = arith.addf %15, %18 : vector<24x1xf32>
    %20 = math.rsqrt %19 : vector<24x1xf32>
    %21 = vector.broadcast %20 : vector<24x1xf32> to vector<24x32xf32>
    %22 = arith.mulf %17, %21 : vector<24x32xf32>
    %23 = vector.broadcast %3 : vector<1x32xf32> to vector<24x32xf32>
    %24 = arith.mulf %22, %23 : vector<24x32xf32>
    %25 = vector.broadcast %4 : vector<1x32xf32> to vector<24x32xf32>
    %26 = arith.addf %24, %25 : vector<24x32xf32>
    %27 = arith.truncf %26 : vector<24x32xf32> to vector<24x32xbf16>
    %c0_10 = arith.constant 0 : index
    %c0_11 = arith.constant 0 : index
    %28 = vector.load %arg2[%c0_10, %c0_11] : memref<32x96xbf16, #tpu.memory_space<vmem>>, vector<32x96xbf16>
    %cst_12 = arith.constant dense<0.000000e+00> : vector<24x96xf32>
    %29 = tpu.matmul %27, %28, %cst_12 {dimension_numbers = #tpu.dot_dimension_numbers<[1], [0], [0], [1], [0, 0, 1, 1], [], []>} : vector<24x32xbf16>, vector<32x96xbf16>, vector<24x96xf32> -> vector<24x96xf32>
    %c0_13 = arith.constant 0 : index
    %c0_14 = arith.constant 0 : index
    %30 = vector.load %arg3[%c0_13, %c0_14] : memref<1x96xf32, #tpu.memory_space<vmem>>, vector<1x96xf32>
    %31 = vector.broadcast %30 : vector<1x96xf32> to vector<24x96xf32>
    %32 = arith.addf %29, %31 : vector<24x96xf32>
    %33 = vector.extract_strided_slice %32 {offsets = [0, 0], sizes = [24, 32], strides = [1, 1]} : vector<24x96xf32> to vector<24x32xf32>
    %34 = arith.truncf %33 : vector<24x32xf32> to vector<24x32xbf16>
    %35 = vector.shape_cast %34 : vector<24x32xbf16> to vector<3x8x32xbf16>
    %36 = vector.extract_strided_slice %32 {offsets = [0, 32], sizes = [24, 32], strides = [1, 1]} : vector<24x96xf32> to vector<24x32xf32>
    %37 = arith.truncf %36 : vector<24x32xf32> to vector<24x32xbf16>
    %38 = vector.shape_cast %37 : vector<24x32xbf16> to vector<3x8x32xbf16>
    %39 = vector.extract_strided_slice %32 {offsets = [0, 64], sizes = [24, 32], strides = [1, 1]} : vector<24x96xf32> to vector<24x32xf32>
    %40 = vector.shape_cast %39 : vector<24x32xf32> to vector<3x8x32xf32>
    %41 = vector.shape_cast %35 : vector<3x8x32xbf16> to vector<3x1x8x32xbf16>
    %42 = vector.shape_cast %38 : vector<3x8x32xbf16> to vector<1x3x8x32xbf16>
    %43 = vector.broadcast %41 : vector<3x1x8x32xbf16> to vector<3x3x8x32xbf16>
    %44 = vector.broadcast %42 : vector<1x3x8x32xbf16> to vector<3x3x8x32xbf16>
    %45 = arith.mulf %43, %44 : vector<3x3x8x32xbf16>
    %46 = vector.shape_cast %45 : vector<3x3x8x32xbf16> to vector<72x32xbf16>
    %c0_15 = arith.constant 0 : index
    %c0_16 = arith.constant 0 : index
    %47 = vector.load %arg6[%c0_15, %c0_16] : memref<32x32xbf16, #tpu.memory_space<vmem>>, vector<32x32xbf16>
    %cst_17 = arith.constant dense<0.000000e+00> : vector<72x32xf32>
    %48 = tpu.matmul %46, %47, %cst_17 {dimension_numbers = #tpu.dot_dimension_numbers<[1], [0], [0], [1], [0, 0, 1, 1], [], []>} : vector<72x32xbf16>, vector<32x32xbf16>, vector<72x32xf32> -> vector<72x32xf32>
    %49 = vector.shape_cast %48 : vector<72x32xf32> to vector<3x3x8x32xf32>
    %50 = vector.extract_strided_slice %49 {offsets = [0, 0, 0, 0], sizes = [3, 1, 8, 32], strides = [1, 1, 1, 1]} : vector<3x3x8x32xf32> to vector<3x1x8x32xf32>
    %51 = vector.shape_cast %50 : vector<3x1x8x32xf32> to vector<3x8x32xf32>
    %52 = vector.extract_strided_slice %49 {offsets = [0, 1, 0, 0], sizes = [3, 1, 8, 32], strides = [1, 1, 1, 1]} : vector<3x3x8x32xf32> to vector<3x1x8x32xf32>
    %53 = vector.shape_cast %52 : vector<3x1x8x32xf32> to vector<3x8x32xf32>
    %54 = arith.maximumf %51, %53 : vector<3x8x32xf32>
    %55 = vector.extract_strided_slice %49 {offsets = [0, 2, 0, 0], sizes = [3, 1, 8, 32], strides = [1, 1, 1, 1]} : vector<3x3x8x32xf32> to vector<3x1x8x32xf32>
    %56 = vector.shape_cast %55 : vector<3x1x8x32xf32> to vector<3x8x32xf32>
    %57 = arith.maximumf %54, %56 : vector<3x8x32xf32>
    %58 = vector.shape_cast %57 : vector<3x8x32xf32> to vector<3x1x8x32xf32>
    %59 = vector.broadcast %58 : vector<3x1x8x32xf32> to vector<3x3x8x32xf32>
    %60 = arith.subf %49, %59 : vector<3x3x8x32xf32>
    %61 = math.exp %60 : vector<3x3x8x32xf32>
    %62 = vector.extract_strided_slice %61 {offsets = [0, 0, 0, 0], sizes = [3, 1, 8, 32], strides = [1, 1, 1, 1]} : vector<3x3x8x32xf32> to vector<3x1x8x32xf32>
    %63 = vector.shape_cast %62 : vector<3x1x8x32xf32> to vector<3x8x32xf32>
    %64 = vector.extract_strided_slice %61 {offsets = [0, 1, 0, 0], sizes = [3, 1, 8, 32], strides = [1, 1, 1, 1]} : vector<3x3x8x32xf32> to vector<3x1x8x32xf32>
    %65 = vector.shape_cast %64 : vector<3x1x8x32xf32> to vector<3x8x32xf32>
    %66 = arith.addf %63, %65 : vector<3x8x32xf32>
    %67 = vector.extract_strided_slice %61 {offsets = [0, 2, 0, 0], sizes = [3, 1, 8, 32], strides = [1, 1, 1, 1]} : vector<3x3x8x32xf32> to vector<3x1x8x32xf32>
    %68 = vector.shape_cast %67 : vector<3x1x8x32xf32> to vector<3x8x32xf32>
    %69 = arith.addf %66, %68 : vector<3x8x32xf32>
    %70 = tpu.reciprocal %69 {approx = true} : vector<3x8x32xf32> -> vector<3x8x32xf32>
    %71 = vector.extract_strided_slice %61 {offsets = [0, 0, 0, 0], sizes = [3, 1, 8, 32], strides = [1, 1, 1, 1]} : vector<3x3x8x32xf32> to vector<3x1x8x32xf32>
    %72 = vector.shape_cast %71 : vector<3x1x8x32xf32> to vector<3x8x32xf32>
    %73 = vector.extract_strided_slice %40 {offsets = [0, 0, 0], sizes = [1, 8, 32], strides = [1, 1, 1]} : vector<3x8x32xf32> to vector<1x8x32xf32>
    %74 = vector.shape_cast %73 : vector<1x8x32xf32> to vector<8x32xf32>
    %75 = vector.shape_cast %74 : vector<8x32xf32> to vector<1x8x32xf32>
    %76 = vector.broadcast %75 : vector<1x8x32xf32> to vector<3x8x32xf32>
    %77 = arith.mulf %72, %76 : vector<3x8x32xf32>
    %78 = vector.extract_strided_slice %61 {offsets = [0, 1, 0, 0], sizes = [3, 1, 8, 32], strides = [1, 1, 1, 1]} : vector<3x3x8x32xf32> to vector<3x1x8x32xf32>
    %79 = vector.shape_cast %78 : vector<3x1x8x32xf32> to vector<3x8x32xf32>
    %80 = vector.extract_strided_slice %40 {offsets = [1, 0, 0], sizes = [1, 8, 32], strides = [1, 1, 1]} : vector<3x8x32xf32> to vector<1x8x32xf32>
    %81 = vector.shape_cast %80 : vector<1x8x32xf32> to vector<8x32xf32>
    %82 = vector.shape_cast %81 : vector<8x32xf32> to vector<1x8x32xf32>
    %83 = vector.broadcast %82 : vector<1x8x32xf32> to vector<3x8x32xf32>
    %84 = arith.mulf %79, %83 : vector<3x8x32xf32>
    %85 = arith.addf %77, %84 : vector<3x8x32xf32>
    %86 = vector.extract_strided_slice %61 {offsets = [0, 2, 0, 0], sizes = [3, 1, 8, 32], strides = [1, 1, 1, 1]} : vector<3x3x8x32xf32> to vector<3x1x8x32xf32>
    %87 = vector.shape_cast %86 : vector<3x1x8x32xf32> to vector<3x8x32xf32>
    %88 = vector.extract_strided_slice %40 {offsets = [2, 0, 0], sizes = [1, 8, 32], strides = [1, 1, 1]} : vector<3x8x32xf32> to vector<1x8x32xf32>
    %89 = vector.shape_cast %88 : vector<1x8x32xf32> to vector<8x32xf32>
    %90 = vector.shape_cast %89 : vector<8x32xf32> to vector<1x8x32xf32>
    %91 = vector.broadcast %90 : vector<1x8x32xf32> to vector<3x8x32xf32>
    %92 = arith.mulf %87, %91 : vector<3x8x32xf32>
    %93 = arith.addf %85, %92 : vector<3x8x32xf32>
    %94 = arith.mulf %93, %70 : vector<3x8x32xf32>
    %95 = vector.shape_cast %94 : vector<3x8x32xf32> to vector<24x32xf32>
    %96 = arith.truncf %95 : vector<24x32xf32> to vector<24x32xbf16>
    %c0_18 = arith.constant 0 : index
    %c0_19 = arith.constant 0 : index
    %97 = vector.load %arg4[%c0_18, %c0_19] : memref<32x32xbf16, #tpu.memory_space<vmem>>, vector<32x32xbf16>
    %cst_20 = arith.constant dense<0.000000e+00> : vector<24x32xf32>
    %98 = tpu.matmul %96, %97, %cst_20 {dimension_numbers = #tpu.dot_dimension_numbers<[1], [0], [0], [1], [0, 0, 1, 1], [], []>} : vector<24x32xbf16>, vector<32x32xbf16>, vector<24x32xf32> -> vector<24x32xf32>
    %99 = arith.addf %2, %98 : vector<24x32xf32>
    %c0_21 = arith.constant 0 : index
    %c0_22 = arith.constant 0 : index
    %100 = vector.load %arg5[%c0_21, %c0_22] : memref<1x32xf32, #tpu.memory_space<vmem>>, vector<1x32xf32>
    %101 = vector.broadcast %100 : vector<1x32xf32> to vector<24x32xf32>
    %102 = arith.addf %99, %101 : vector<24x32xf32>
    %c0_23 = arith.constant 0 : index
    %c0_24 = arith.constant 0 : index
    %103 = vector.load %arg9[%c0_23, %c0_24] : memref<1x32xf32, #tpu.memory_space<vmem>>, vector<1x32xf32>
    %c0_25 = arith.constant 0 : index
    %c0_26 = arith.constant 0 : index
    %104 = vector.load %arg10[%c0_25, %c0_26] : memref<1x32xf32, #tpu.memory_space<vmem>>, vector<1x32xf32>
    %cst_27 = arith.constant dense<0.000000e+00> : vector<24xf32>
    %105 = vector.multi_reduction <add>, %102, %cst_27 [1] : vector<24x32xf32> to vector<24xf32>
    %106 = vector.shape_cast %105 : vector<24xf32> to vector<24x1xf32>
    %cst_28 = arith.constant 3.200000e+01 : f32
    %107 = vector.broadcast %cst_28 : f32 to vector<24x1xf32>
    %108 = arith.divf %106, %107 : vector<24x1xf32>
    %109 = vector.broadcast %108 : vector<24x1xf32> to vector<24x32xf32>
    %110 = arith.subf %102, %109 : vector<24x32xf32>
    %111 = arith.mulf %110, %110 : vector<24x32xf32>
    %cst_29 = arith.constant dense<0.000000e+00> : vector<24xf32>
    %112 = vector.multi_reduction <add>, %111, %cst_29 [1] : vector<24x32xf32> to vector<24xf32>
    %113 = vector.shape_cast %112 : vector<24xf32> to vector<24x1xf32>
    %cst_30 = arith.constant 3.200000e+01 : f32
    %114 = vector.broadcast %cst_30 : f32 to vector<24x1xf32>
    %115 = arith.divf %113, %114 : vector<24x1xf32>
    %116 = vector.broadcast %108 : vector<24x1xf32> to vector<24x32xf32>
    %117 = arith.subf %102, %116 : vector<24x32xf32>
    %cst_31 = arith.constant 9.99999974E-6 : f32
    %118 = vector.broadcast %cst_31 : f32 to vector<24x1xf32>
    %119 = arith.addf %115, %118 : vector<24x1xf32>
    %120 = math.rsqrt %119 : vector<24x1xf32>
    %121 = vector.broadcast %120 : vector<24x1xf32> to vector<24x32xf32>
    %122 = arith.mulf %117, %121 : vector<24x32xf32>
    %123 = vector.broadcast %103 : vector<1x32xf32> to vector<24x32xf32>
    %124 = arith.mulf %122, %123 : vector<24x32xf32>
    %125 = vector.broadcast %104 : vector<1x32xf32> to vector<24x32xf32>
    %126 = arith.addf %124, %125 : vector<24x32xf32>
    %127 = arith.truncf %126 : vector<24x32xf32> to vector<24x32xbf16>
    %c0_32 = arith.constant 0 : index
    %c0_33 = arith.constant 0 : index
    %128 = vector.load %arg11[%c0_32, %c0_33] : memref<32x64xbf16, #tpu.memory_space<vmem>>, vector<32x64xbf16>
    %cst_34 = arith.constant dense<0.000000e+00> : vector<24x64xf32>
    %129 = tpu.matmul %127, %128, %cst_34 {dimension_numbers = #tpu.dot_dimension_numbers<[1], [0], [0], [1], [0, 0, 1, 1], [], []>} : vector<24x32xbf16>, vector<32x64xbf16>, vector<24x64xf32> -> vector<24x64xf32>
    %c0_35 = arith.constant 0 : index
    %c0_36 = arith.constant 0 : index
    %130 = vector.load %arg12[%c0_35, %c0_36] : memref<1x64xf32, #tpu.memory_space<vmem>>, vector<1x64xf32>
    %131 = vector.broadcast %130 : vector<1x64xf32> to vector<24x64xf32>
    %132 = arith.addf %129, %131 : vector<24x64xf32>
    %cst_37 = arith.constant 0.000000e+00 : f32
    %133 = vector.broadcast %cst_37 : f32 to vector<24x64xf32>
    %134 = arith.maximumf %132, %133 : vector<24x64xf32>
    %135 = arith.truncf %134 : vector<24x64xf32> to vector<24x64xbf16>
    %c0_38 = arith.constant 0 : index
    %c0_39 = arith.constant 0 : index
    %136 = vector.load %arg13[%c0_38, %c0_39] : memref<64x32xbf16, #tpu.memory_space<vmem>>, vector<64x32xbf16>
    %cst_40 = arith.constant dense<0.000000e+00> : vector<24x32xf32>
    %137 = tpu.matmul %135, %136, %cst_40 {dimension_numbers = #tpu.dot_dimension_numbers<[1], [0], [0], [1], [0, 0, 1, 1], [], []>} : vector<24x64xbf16>, vector<64x32xbf16>, vector<24x32xf32> -> vector<24x32xf32>
    %138 = arith.addf %102, %137 : vector<24x32xf32>
    %c0_41 = arith.constant 0 : index
    %c0_42 = arith.constant 0 : index
    %139 = vector.load %arg14[%c0_41, %c0_42] : memref<1x32xf32, #tpu.memory_space<vmem>>, vector<1x32xf32>
    %140 = vector.broadcast %139 : vector<1x32xf32> to vector<24x32xf32>
    %141 = arith.addf %138, %140 : vector<24x32xf32>
    %142 = vector.shape_cast %141 : vector<24x32xf32> to vector<3x8x32xf32>
    %143 = arith.truncf %142 : vector<3x8x32xf32> to vector<3x8x32xbf16>
    %c0_43 = arith.constant 0 : index
    %c0_44 = arith.constant 0 : index
    %c0_45 = arith.constant 0 : index
    %144 = vector.load %arg17[%c0_43, %c0_44, %c0_45] : memref<3x8x32xbf16, #tpu.memory_space<vmem>>, vector<3x8x32xbf16>
    tpu.vector_store %arg17[%c0_43, %c0_44, %c0_45], %143 {strides = array<i32>} : memref<3x8x32xbf16, #tpu.memory_space<vmem>>, vector<3x8x32xbf16>,
    return
  }
  func.func @transform_0(%arg0: i32) -> (i32, i32, i32) {
    %c0_i32 = arith.constant 0 : i32
    %c0_i32_0 = arith.constant 0 : i32
    %c0_i32_1 = arith.constant 0 : i32
    return %c0_i32, %arg0, %c0_i32_0 : i32, i32, i32
  }
  func.func @transform_1(%arg0: i32) -> (i32, i32) {
    %c0_i32 = arith.constant 0 : i32
    %c0_i32_0 = arith.constant 0 : i32
    %c0_i32_1 = arith.constant 0 : i32
    return %c0_i32, %c0_i32_0 : i32, i32
  }
  func.func @transform_2(%arg0: i32) -> (i32, i32) {
    %c0_i32 = arith.constant 0 : i32
    %c0_i32_0 = arith.constant 0 : i32
    %c0_i32_1 = arith.constant 0 : i32
    return %c0_i32, %c0_i32_0 : i32, i32
  }
  func.func @transform_3(%arg0: i32) -> (i32, i32) {
    %c0_i32 = arith.constant 0 : i32
    %c0_i32_0 = arith.constant 0 : i32
    %c0_i32_1 = arith.constant 0 : i32
    return %c0_i32, %c0_i32_0 : i32, i32
  }
  func.func @transform_4(%arg0: i32) -> (i32, i32) {
    %c0_i32 = arith.constant 0 : i32
    %c0_i32_0 = arith.constant 0 : i32
    %c0_i32_1 = arith.constant 0 : i32
    return %c0_i32, %c0_i32_0 : i32, i32
  }
  func.func @transform_5(%arg0: i32) -> (i32, i32) {
    %c0_i32 = arith.constant 0 : i32
    %c0_i32_0 = arith.constant 0 : i32
    %c0_i32_1 = arith.constant 0 : i32
    return %c0_i32, %c0_i32_0 : i32, i32
  }
  func.func @transform_6(%arg0: i32) -> (i32, i32) {
    %c0_i32 = arith.constant 0 : i32
    %c0_i32_0 = arith.constant 0 : i32
    %c0_i32_1 = arith.constant 0 : i32
    return %c0_i32, %c0_i32_0 : i32, i32
  }
  func.func @transform_7(%arg0: i32) -> (i32, i32) {
    %c0_i32 = arith.constant 0 : i32
    %c0_i32_0 = arith.constant 0 : i32
    %c0_i32_1 = arith.constant 0 : i32
    return %c0_i32, %c0_i32_0 : i32, i32
  }
  func.func @transform_8(%arg0: i32) -> (i32, i32) {
    %c0_i32 = arith.constant 0 : i32
    %c0_i32_0 = arith.constant 0 : i32
    %c0_i32_1 = arith.constant 0 : i32
    return %c0_i32, %c0_i32_0 : i32, i32
  }
  func.func @transform_9(%arg0: i32) -> (i32, i32) {
    %c0_i32 = arith.constant 0 : i32
    %c0_i32_0 = arith.constant 0 : i32
    %c0_i32_1 = arith.constant 0 : i32
    return %c0_i32, %c0_i32_0 : i32, i32
  }
  func.func @transform_10(%arg0: i32) -> (i32, i32) {
    %c0_i32 = arith.constant 0 : i32
    %c0_i32_0 = arith.constant 0 : i32
    %c0_i32_1 = arith.constant 0 : i32
    return %c0_i32, %c0_i32_0 : i32, i32
  }
  func.func @transform_11(%arg0: i32) -> (i32, i32) {
    %c0_i32 = arith.constant 0 : i32
    %c0_i32_0 = arith.constant 0 : i32
    %c0_i32_1 = arith.constant 0 : i32
    return %c0_i32, %c0_i32_0 : i32, i32
  }
  func.func @transform_12(%arg0: i32) -> (i32, i32) {
    %c0_i32 = arith.constant 0 : i32
    %c0_i32_0 = arith.constant 0 : i32
    %c0_i32_1 = arith.constant 0 : i32
    return %c0_i32, %c0_i32_0 : i32, i32
  }
  func.func @transform_13(%arg0: i32) -> (i32, i32) {
    %c0_i32 = arith.constant 0 : i32
    %c0_i32_0 = arith.constant 0 : i32
    %c0_i32_1 = arith.constant 0 : i32
    return %c0_i32, %c0_i32_0 : i32, i32
  }
  func.func @transform_14(%arg0: i32) -> (i32, i32) {
    %c0_i32 = arith.constant 0 : i32
    %c0_i32_0 = arith.constant 0 : i32
    %c0_i32_1 = arith.constant 0 : i32
    return %c0_i32, %c0_i32_0 : i32, i32
  }
  func.func @transform_15(%arg0: i32) -> (i32, i32) {
    %c0_i32 = arith.constant 0 : i32
    %c0_i32_0 = arith.constant 0 : i32
    %c0_i32_1 = arith.constant 0 : i32
    return %c0_i32, %c0_i32_0 : i32, i32
  }
  func.func @transform_16(%arg0: i32) -> (i32, i32, i32) {
    %c0_i32 = arith.constant 0 : i32
    %c0_i32_0 = arith.constant 0 : i32
    %c0_i32_1 = arith.constant 0 : i32
    return %c0_i32, %arg0, %c0_i32_0 : i32, i32, i32
  }
}

</mosaic_0001>

<llo_original>
// kernel: tpu_custom_call.1
$region0: #{tpu_custom_call.1}
  #allocation0 [shape = 'u32[]', space=smem, size = 0x4, offset = 0x4, fixed_abs, tag = 'smem constant byte address 0x4 - core index']
  #allocation1 [shape = 'u32[72,128]{1,0:T(1,128)}', space=vmem, size = 0x9000, scoped, tag = 'internal scratch']
  %s0 = inlined_call_operand.vmem [shape: bf16[3,16,32], index: 0, kind: input, shape index: {}]
  %s1 = inlined_call_operand.vmem [shape: bf16[32,96], index: 1, kind: input, shape index: {}]
  %s2 = inlined_call_operand.hbm [shape: f32[1,96], index: 2, kind: input, shape index: {}]
  %s3 = inlined_call_operand.hbm [shape: bf16[32,32], index: 3, kind: input, shape index: {}]
  %s4 = inlined_call_operand.hbm [shape: f32[1,32], index: 4, kind: input, shape index: {}]
  %s5 = inlined_call_operand.hbm [shape: bf16[32,32], index: 5, kind: input, shape index: {}]
  %s6 = inlined_call_operand.hbm [shape: f32[1,32], index: 6, kind: input, shape index: {}]
  %s7 = inlined_call_operand.hbm [shape: f32[1,32], index: 7, kind: input, shape index: {}]
  %s8 = inlined_call_operand.hbm [shape: f32[1,32], index: 8, kind: input, shape index: {}]
  %s9 = inlined_call_operand.hbm [shape: f32[1,32], index: 9, kind: input, shape index: {}]
  %s10 = inlined_call_operand.vmem [shape: bf16[32,64], index: 10, kind: input, shape index: {}]
  %s11 = inlined_call_operand.vmem [shape: f32[1,64], index: 11, kind: input, shape index: {}]
  %s12 = inlined_call_operand.vmem [shape: bf16[64,32], index: 12, kind: input, shape index: {}]
  %s13 = inlined_call_operand.vmem [shape: f32[1,32], index: 13, kind: input, shape index: {}]
  %s14 = inlined_call_operand.vmem [shape: f32[1,32], index: 14, kind: input, shape index: {}]
  %s15 = inlined_call_operand.vmem [shape: f32[1,32], index: 15, kind: input, shape index: {}]
  %s16 = inlined_call_operand.hbm [shape: bf16[3,16,32], index: 16, kind: output, shape index: {}]
  %s17 = sld [smem:[#allocation0]]
  $region170: #{tpu_custom_call.1} parent=0
    _
  %s19 = ssub.s32 1, %s17
  %s20 = scalar_select 0, %s19, %s17
  $region1: #{tpu_custom_call.1} parent=0
    #allocation2 [shape = 'u8[12288]{0}', space=vmem, size = 0x3000, scoped, tag = 'input window, operand 0']
    #allocation3 [shape = 'u8[512]{0}', space=vmem, size = 0x400, scoped, tag = 'input window, operand 2, single buffered']
    #allocation4 [shape = 's32[2]{0}', space=sflag, size = 0x8, scoped, tag = 'scoped memory for tpu_custom_call.1']
    #allocation5 [shape = 's32[2]{0}', space=sflag, size = 0x8, scoped, tag = 'scoped memory for tpu_custom_call.1']
    #allocation6 [shape = 'u8[8192]{0}', space=vmem, size = 0x2000, scoped, tag = 'input window, operand 3, single buffered']
    #allocation7 [shape = 's32[1]{0}', space=sflag, size = 0x4, scoped, tag = 'scoped memory for tpu_custom_call.1']
    #allocation8 [shape = 'u8[512]{0}', space=vmem, size = 0x400, scoped, tag = 'input window, operand 4, single buffered']
    #allocation9 [shape = 'u8[8192]{0}', space=vmem, size = 0x2000, scoped, tag = 'input window, operand 5, single buffered']
    #allocation10 [shape = 's32[1]{0}', space=sflag, size = 0x4, scoped, tag = 'scoped memory for tpu_custom_call.1']
    #allocation11 [shape = 'u8[512]{0}', space=vmem, size = 0x400, scoped, tag = 'input window, operand 6, single buffered']
    #allocation12 [shape = 'u8[512]{0}', space=vmem, size = 0x400, scoped, tag = 'input window, operand 7, single buffered']
    #allocation13 [shape = 's32[1]{0}', space=sflag, size = 0x4, scoped, tag = 'scoped memory for tpu_custom_call.1']
    #allocation14 [shape = 'u8[512]{0}', space=vmem, size = 0x400, scoped, tag = 'input window, operand 8, single buffered']
    #allocation15 [shape = 'u8[512]{0}', space=vmem, size = 0x400, scoped, tag = 'input window, operand 9, single buffered']
    #allocation16 [shape = 's32[1]{0}', space=sflag, size = 0x4, scoped, tag = 'scoped memory for tpu_custom_call.1']
    #allocation17 [shape = 'u8[12288]{0}', space=vmem, size = 0x3000, scoped, tag = 'output window, operand 0']
    %21 = vsyncpa [#allocation4], 0
    %22 = vsyncpa [#allocation7], 0
    %23 = vsyncpa [#allocation10], 0
    %24 = vsyncpa [#allocation13], 0
    %25 = vsyncpa [#allocation16], 0
    %26 = vsyncpa [#allocation5], 0
    %s27 = scalar_lea.sflag [#allocation5], 1
    %28 = vsyncpa %s27, 0
    loop: start=0, step=1, limit=4
    $region2: #{tpu_custom_call.1} parent=1 // loop_pre_header
      _
    $region3: #{tpu_custom_call.1} parent=1 // loop_header
      %s30 = sphi 0, %s34
      %p31 = scmp.ge.s32.totalorder %s30, 4
      %s40 = sphi 0, %s42
      %s43 = sphi 0, %s40
      %s44 = sphi 0, %s43
      %s60 = sphi 0, %s44
      %s64 = sphi 0, %s64
      %s66 = sphi 0, %s64
      %s67 = sphi 0, %s66
      %s81 = sphi 0, %s67
      %s85 = sphi 0, %s85
      %s87 = sphi 0, %s85
      %s88 = sphi 0, %s87
      %s102 = sphi 0, %s88
      %s106 = sphi 0, %s106
      %s108 = sphi 0, %s106
      %s109 = sphi 0, %s108
      %s123 = sphi 0, %s109
      %s127 = sphi 0, %s127
      %s129 = sphi 0, %s127
      %s130 = sphi 0, %s129
      %s144 = sphi 0, %s130
      %s148 = sphi 0, %s148
      %s150 = sphi 0, %s148
      %s151 = sphi 0, %s150
      %s165 = sphi 0, %s151
      %s169 = sphi 0, %s169
      %s171 = sphi 0, %s169
      %s172 = sphi 0, %s171
      %s186 = sphi 0, %s172
      %s190 = sphi 0, %s190
      %s192 = sphi 0, %s190
      %s193 = sphi 0, %s192
      %s207 = sphi 0, %s193
      %s211 = sphi 0, %s211
      %s213 = sphi 0, %s211
      %s214 = sphi 0, %s213
      %s228 = sphi 0, %s214
      %s232 = sphi 0, %s232
      %s234 = sphi 0, %s232
      %s235 = sphi 0, %s234
      %s249 = sphi 0, %s235
      %s253 = sphi 0, %s253
      %s255 = sphi 0, %s253
      %s256 = sphi 0, %s255
      %s270 = sphi 0, %s256
      %s274 = sphi 0, %s274
      %s276 = sphi 0, %s274
      %s277 = sphi 0, %s276
      %s291 = sphi 0, %s277
      %s295 = sphi 0, %s295
      %s297 = sphi 0, %s295
      %s298 = sphi 0, %s297
      %s312 = sphi 0, %s298
      %s316 = sphi 0, %s316
      %s318 = sphi 0, %s316
      %s319 = sphi 0, %s318
      %s333 = sphi 0, %s319
      %s337 = sphi 0, %s337
      %s339 = sphi 0, %s337
      %s340 = sphi 0, %s339
      %s354 = sphi 0, %s340
      %s358 = sphi 0, %s358
      %s360 = sphi 0, %s358
      %s361 = sphi 0, %s360
      %s375 = sphi 0, %s361
      %s381 = sphi 0, %s383
      %s384 = sphi 0, %s381
      %s385 = sphi 0, %s384
      %s401 = sphi 0, %s385
    $region4: #{tpu_custom_call.1} parent=1 // loop_header_branch
      %33 = sbr.rel (%p31) target = $region8
    $region5: #{tpu_custom_call.1} parent=1 // loop_body
      %s35 = ssub.s32 %s30, 1
      %s36 = ssub.s32 %s30, 2
      %s37 = sadd.s32 %s30, 1
      %s38 = ssub.s32 %s30, %s37
      %p39 = scmp.eq.s32.totalorder %s38, 0
      %s41 = sadd.s32 %s40, 1
      %s42 = scalar_select %p39, %s40, %s41
      %p45 = pneg %p39
      %p46 = scmp.eq.s32.totalorder %s30, 1
      %p47 = por %p45, %p46
      %p48 = scmp.ne.s32.totalorder %s40, %s43
      %p49 = scmp.eq.s32.totalorder %s30, 0
      %p50 = por %p48, %p49
      %p51 = scmp.ne.s32.totalorder %s40, %s43
      %p52 = scmp.eq.s32.totalorder %s35, 1
      %p53 = por %p51, %p52
      %p54 = scmp.ne.s32.totalorder %s43, %s44
      %p55 = scmp.eq.s32.totalorder %s35, 0
      %p56 = por %p54, %p55
      %p57 = scmp.ne.s32.totalorder %s43, %s44
      %p58 = scmp.eq.s32.totalorder %s36, 1
      %p59 = por %p57, %p58
      %p61 = scmp.ne.s32.totalorder %s44, %s60
      %p62 = scmp.eq.s32.totalorder %s36, 0
      %p63 = por %p61, %p62
      %s65 = sadd.s32 %s64, 1
      %p68 = scmp.eq.s32.totalorder %s30, 1
      %p69 = scmp.ne.s32.totalorder %s64, %s66
      %p70 = scmp.eq.s32.totalorder %s30, 0
      %p71 = por %p69, %p70
      %p72 = scmp.ne.s32.totalorder %s64, %s66
      %p73 = scmp.eq.s32.totalorder %s35, 1
      %p74 = por %p72, %p73
      %p75 = scmp.ne.s32.totalorder %s66, %s67
      %p76 = scmp.eq.s32.totalorder %s35, 0
      %p77 = por %p75, %p76
      %p78 = scmp.ne.s32.totalorder %s66, %s67
      %p79 = scmp.eq.s32.totalorder %s36, 1
      %p80 = por %p78, %p79
      %p82 = scmp.ne.s32.totalorder %s67, %s81
      %p83 = scmp.eq.s32.totalorder %s36, 0
      %p84 = por %p82, %p83
      %s86 = sadd.s32 %s85, 1
      %p89 = scmp.eq.s32.totalorder %s30, 1
      %p90 = scmp.ne.s32.totalorder %s85, %s87
      %p91 = scmp.eq.s32.totalorder %s30, 0
      %p92 = por %p90, %p91
      %p93 = scmp.ne.s32.totalorder %s85, %s87
      %p94 = scmp.eq.s32.totalorder %s35, 1
      %p95 = por %p93, %p94
      %p96 = scmp.ne.s32.totalorder %s87, %s88
      %p97 = scmp.eq.s32.totalorder %s35, 0
      %p98 = por %p96, %p97
      %p99 = scmp.ne.s32.totalorder %s87, %s88
      %p100 = scmp.eq.s32.totalorder %s36, 1
      %p101 = por %p99, %p100
      %p103 = scmp.ne.s32.totalorder %s88, %s102
      %p104 = scmp.eq.s32.totalorder %s36, 0
      %p105 = por %p103, %p104
      %s107 = sadd.s32 %s106, 1
      %p110 = scmp.eq.s32.totalorder %s30, 1
      %p111 = scmp.ne.s32.totalorder %s106, %s108
      %p112 = scmp.eq.s32.totalorder %s30, 0
      %p113 = por %p111, %p112
      %p114 = scmp.ne.s32.totalorder %s106, %s108
      %p115 = scmp.eq.s32.totalorder %s35, 1
      %p116 = por %p114, %p115
      %p117 = scmp.ne.s32.totalorder %s108, %s109
      %p118 = scmp.eq.s32.totalorder %s35, 0
      %p119 = por %p117, %p118
      %p120 = scmp.ne.s32.totalorder %s108, %s109
      %p121 = scmp.eq.s32.totalorder %s36, 1
      %p122 = por %p120, %p121
      %p124 = scmp.ne.s32.totalorder %s109, %s123
      %p125 = scmp.eq.s32.totalorder %s36, 0
      %p126 = por %p124, %p125
      %s128 = sadd.s32 %s127, 1
      %p131 = scmp.eq.s32.totalorder %s30, 1
      %p132 = scmp.ne.s32.totalorder %s127, %s129
      %p133 = scmp.eq.s32.totalorder %s30, 0
      %p134 = por %p132, %p133
      %p135 = scmp.ne.s32.totalorder %s127, %s129
      %p136 = scmp.eq.s32.totalorder %s35, 1
      %p137 = por %p135, %p136
      %p138 = scmp.ne.s32.totalorder %s129, %s130
      %p139 = scmp.eq.s32.totalorder %s35, 0
      %p140 = por %p138, %p139
      %p141 = scmp.ne.s32.totalorder %s129, %s130
      %p142 = scmp.eq.s32.totalorder %s36, 1
      %p143 = por %p141, %p142
      %p145 = scmp.ne.s32.totalorder %s130, %s144
      %p146 = scmp.eq.s32.totalorder %s36, 0
      %p147 = por %p145, %p146
      %s149 = sadd.s32 %s148, 1
      %p152 = scmp.eq.s32.totalorder %s30, 1
      %p153 = scmp.ne.s32.totalorder %s148, %s150
      %p154 = scmp.eq.s32.totalorder %s30, 0
      %p155 = por %p153, %p154
      %p156 = scmp.ne.s32.totalorder %s148, %s150
      %p157 = scmp.eq.s32.totalorder %s35, 1
      %p158 = por %p156, %p157
      %p159 = scmp.ne.s32.totalorder %s150, %s151
      %p160 = scmp.eq.s32.totalorder %s35, 0
      %p161 = por %p159, %p160
      %p162 = scmp.ne.s32.totalorder %s150, %s151
      %p163 = scmp.eq.s32.totalorder %s36, 1
      %p164 = por %p162, %p163
      %p166 = scmp.ne.s32.totalorder %s151, %s165
      %p167 = scmp.eq.s32.totalorder %s36, 0
      %p168 = por %p166, %p167
      %s170 = sadd.s32 %s169, 1
      %p173 = scmp.eq.s32.totalorder %s30, 1
      %p174 = scmp.ne.s32.totalorder %s169, %s171
      %p175 = scmp.eq.s32.totalorder %s30, 0
      %p176 = por %p174, %p175
      %p177 = scmp.ne.s32.totalorder %s169, %s171
      %p178 = scmp.eq.s32.totalorder %s35, 1
      %p179 = por %p177, %p178
      %p180 = scmp.ne.s32.totalorder %s171, %s172
      %p181 = scmp.eq.s32.totalorder %s35, 0
      %p182 = por %p180, %p181
      %p183 = scmp.ne.s32.totalorder %s171, %s172
      %p184 = scmp.eq.s32.totalorder %s36, 1
      %p185 = por %p183, %p184
      %p187 = scmp.ne.s32.totalorder %s172, %s186
      %p188 = scmp.eq.s32.totalorder %s36, 0
      %p189 = por %p187, %p188
      %s191 = sadd.s32 %s190, 1
      %p194 = scmp.eq.s32.totalorder %s30, 1
      %p195 = scmp.ne.s32.totalorder %s190, %s192
      %p196 = scmp.eq.s32.totalorder %s30, 0
      %p197 = por %p195, %p196
      %p198 = scmp.ne.s32.totalorder %s190, %s192
      %p199 = scmp.eq.s32.totalorder %s35, 1
      %p200 = por %p198, %p199
      %p201 = scmp.ne.s32.totalorder %s192, %s193
      %p202 = scmp.eq.s32.totalorder %s35, 0
      %p203 = por %p201, %p202
      %p204 = scmp.ne.s32.totalorder %s192, %s193
      %p205 = scmp.eq.s32.totalorder %s36, 1
      %p206 = por %p204, %p205
      %p208 = scmp.ne.s32.totalorder %s193, %s207
      %p209 = scmp.eq.s32.totalorder %s36, 0
      %p210 = por %p208, %p209
      %s212 = sadd.s32 %s211, 1
      %p215 = scmp.eq.s32.totalorder %s30, 1
      %p216 = scmp.ne.s32.totalorder %s211, %s213
      %p217 = scmp.eq.s32.totalorder %s30, 0
      %p218 = por %p216, %p217
      %p219 = scmp.ne.s32.totalorder %s211, %s213
      %p220 = scmp.eq.s32.totalorder %s35, 1
      %p221 = por %p219, %p220
      %p222 = scmp.ne.s32.totalorder %s213, %s214
      %p223 = scmp.eq.s32.totalorder %s35, 0
      %p224 = por %p222, %p223
      %p225 = scmp.ne.s32.totalorder %s213, %s214
      %p226 = scmp.eq.s32.totalorder %s36, 1
      %p227 = por %p225, %p226
      %p229 = scmp.ne.s32.totalorder %s214, %s228
      %p230 = scmp.eq.s32.totalorder %s36, 0
      %p231 = por %p229, %p230
      %s233 = sadd.s32 %s232, 1
      %p236 = scmp.eq.s32.totalorder %s30, 1
      %p237 = scmp.ne.s32.totalorder %s232, %s234
      %p238 = scmp.eq.s32.totalorder %s30, 0
      %p239 = por %p237, %p238
      %p240 = scmp.ne.s32.totalorder %s232, %s234
      %p241 = scmp.eq.s32.totalorder %s35, 1
      %p242 = por %p240, %p241
      %p243 = scmp.ne.s32.totalorder %s234, %s235
      %p244 = scmp.eq.s32.totalorder %s35, 0
      %p245 = por %p243, %p244
      %p246 = scmp.ne.s32.totalorder %s234, %s235
      %p247 = scmp.eq.s32.totalorder %s36, 1
      %p248 = por %p246, %p247
      %p250 = scmp.ne.s32.totalorder %s235, %s249
      %p251 = scmp.eq.s32.totalorder %s36, 0
      %p252 = por %p250, %p251
      %s254 = sadd.s32 %s253, 1
      %p257 = scmp.eq.s32.totalorder %s30, 1
      %p258 = scmp.ne.s32.totalorder %s253, %s255
      %p259 = scmp.eq.s32.totalorder %s30, 0
      %p260 = por %p258, %p259
      %p261 = scmp.ne.s32.totalorder %s253, %s255
      %p262 = scmp.eq.s32.totalorder %s35, 1
      %p263 = por %p261, %p262
      %p264 = scmp.ne.s32.totalorder %s255, %s256
      %p265 = scmp.eq.s32.totalorder %s35, 0
      %p266 = por %p264, %p265
      %p267 = scmp.ne.s32.totalorder %s255, %s256
      %p268 = scmp.eq.s32.totalorder %s36, 1
      %p269 = por %p267, %p268
      %p271 = scmp.ne.s32.totalorder %s256, %s270
      %p272 = scmp.eq.s32.totalorder %s36, 0
      %p273 = por %p271, %p272
      %s275 = sadd.s32 %s274, 1
      %p278 = scmp.eq.s32.totalorder %s30, 1
      %p279 = scmp.ne.s32.totalorder %s274, %s276
      %p280 = scmp.eq.s32.totalorder %s30, 0
      %p281 = por %p279, %p280
      %p282 = scmp.ne.s32.totalorder %s274, %s276
      %p283 = scmp.eq.s32.totalorder %s35, 1
      %p284 = por %p282, %p283
      %p285 = scmp.ne.s32.totalorder %s276, %s277
      %p286 = scmp.eq.s32.totalorder %s35, 0
      %p287 = por %p285, %p286
      %p288 = scmp.ne.s32.totalorder %s276, %s277
      %p289 = scmp.eq.s32.totalorder %s36, 1
      %p290 = por %p288, %p289
      %p292 = scmp.ne.s32.totalorder %s277, %s291
      %p293 = scmp.eq.s32.totalorder %s36, 0
      %p294 = por %p292, %p293
      %s296 = sadd.s32 %s295, 1
      %p299 = scmp.eq.s32.totalorder %s30, 1
      %p300 = scmp.ne.s32.totalorder %s295, %s297
      %p301 = scmp.eq.s32.totalorder %s30, 0
      %p302 = por %p300, %p301
      %p303 = scmp.ne.s32.totalorder %s295, %s297
      %p304 = scmp.eq.s32.totalorder %s35, 1
      %p305 = por %p303, %p304
      %p306 = scmp.ne.s32.totalorder %s297, %s298
      %p307 = scmp.eq.s32.totalorder %s35, 0
      %p308 = por %p306, %p307
      %p309 = scmp.ne.s32.totalorder %s297, %s298
      %p310 = scmp.eq.s32.totalorder %s36, 1
      %p311 = por %p309, %p310
      %p313 = scmp.ne.s32.totalorder %s298, %s312
      %p314 = scmp.eq.s32.totalorder %s36, 0
      %p315 = por %p313, %p314
      %s317 = sadd.s32 %s316, 1
      %p320 = scmp.eq.s32.totalorder %s30, 1
      %p321 = scmp.ne.s32.totalorder %s316, %s318
      %p322 = scmp.eq.s32.totalorder %s30, 0
      %p323 = por %p321, %p322
      %p324 = scmp.ne.s32.totalorder %s316, %s318
      %p325 = scmp.eq.s32.totalorder %s35, 1
      %p326 = por %p324, %p325
      %p327 = scmp.ne.s32.totalorder %s318, %s319
      %p328 = scmp.eq.s32.totalorder %s35, 0
      %p329 = por %p327, %p328
      %p330 = scmp.ne.s32.totalorder %s318, %s319
      %p331 = scmp.eq.s32.totalorder %s36, 1
      %p332 = por %p330, %p331
      %p334 = scmp.ne.s32.totalorder %s319, %s333
      %p335 = scmp.eq.s32.totalorder %s36, 0
      %p336 = por %p334, %p335
      %s338 = sadd.s32 %s337, 1
      %p341 = scmp.eq.s32.totalorder %s30, 1
      %p342 = scmp.ne.s32.totalorder %s337, %s339
      %p343 = scmp.eq.s32.totalorder %s30, 0
      %p344 = por %p342, %p343
      %p345 = scmp.ne.s32.totalorder %s337, %s339
      %p346 = scmp.eq.s32.totalorder %s35, 1
      %p347 = por %p345, %p346
      %p348 = scmp.ne.s32.totalorder %s339, %s340
      %p349 = scmp.eq.s32.totalorder %s35, 0
      %p350 = por %p348, %p349
      %p351 = scmp.ne.s32.totalorder %s339, %s340
      %p352 = scmp.eq.s32.totalorder %s36, 1
      %p353 = por %p351, %p352
      %p355 = scmp.ne.s32.totalorder %s340, %s354
      %p356 = scmp.eq.s32.totalorder %s36, 0
      %p357 = por %p355, %p356
      %s359 = sadd.s32 %s358, 1
      %p362 = scmp.eq.s32.totalorder %s30, 1
      %p363 = scmp.ne.s32.totalorder %s358, %s360
      %p364 = scmp.eq.s32.totalorder %s30, 0
      %p365 = por %p363, %p364
      %p366 = scmp.ne.s32.totalorder %s358, %s360
      %p367 = scmp.eq.s32.totalorder %s35, 1
      %p368 = por %p366, %p367
      %p369 = scmp.ne.s32.totalorder %s360, %s361
      %p370 = scmp.eq.s32.totalorder %s35, 0
      %p371 = por %p369, %p370
      %p372 = scmp.ne.s32.totalorder %s360, %s361
      %p373 = scmp.eq.s32.totalorder %s36, 1
      %p374 = por %p372, %p373
      %p376 = scmp.ne.s32.totalorder %s361, %s375
      %p377 = scmp.eq.s32.totalorder %s36, 0
      %p378 = por %p376, %p377
      %s379 = ssub.s32 %s30, %s37
      %p380 = scmp.eq.s32.totalorder %s379, 0
      %s382 = sadd.s32 %s381, 1
      %s383 = scalar_select %p380, %s381, %s382
      %p386 = pneg %p380
      %p387 = scmp.eq.s32.totalorder %s30, 1
      %p388 = por %p386, %p387
      %p389 = scmp.ne.s32.totalorder %s381, %s384
      %p390 = scmp.eq.s32.totalorder %s30, 0
      %p391 = por %p389, %p390
      %p392 = scmp.ne.s32.totalorder %s381, %s384
      %p393 = scmp.eq.s32.totalorder %s35, 1
      %p394 = por %p392, %p393
      %p395 = scmp.ne.s32.totalorder %s384, %s385
      %p396 = scmp.eq.s32.totalorder %s35, 0
      %p397 = por %p395, %p396
      %p398 = scmp.ne.s32.totalorder %s384, %s385
      %p399 = scmp.eq.s32.totalorder %s36, 1
      %p400 = por %p398, %p399
      %p402 = scmp.ne.s32.totalorder %s385, %s401
      %p403 = scmp.eq.s32.totalorder %s36, 0
      %p404 = por %p402, %p403
      %p405 = scmp.le.s32.totalorder 1, %s30
      %p406 = scmp.lt.s32.totalorder %s30, 3
      %p407 = pnand %p405, %p406
      %p408 = pneg %p407
      // Predicated region
      $region9: #{tpu_custom_call.1} parent=5 // pred_check
        _
      $region10: #{tpu_custom_call.1} parent=5 // pred_check_branch
        %410 = sbr.rel (%p407) target = $region12
      $region11: #{tpu_custom_call.1} parent=5 // pred_region
        %s411 = ssub.s32 %s30, 1
        // Predicated region
        $region13: #{tpu_custom_call.1} parent=11 // pred_check
          %p412 = pneg %p77
        $region14: #{tpu_custom_call.1} parent=11 // pred_check_branch
          %414 = sbr.rel (%p412) target = $region16
        $region15: #{tpu_custom_call.1} parent=11 // pred_region
          _
        $region16: #{tpu_custom_call.1} parent=11 // pred_fallthru
          _
        // Predicated region
        $region17: #{tpu_custom_call.1} parent=11 // pred_check
          %p415 = pneg %p98
        $region18: #{tpu_custom_call.1} parent=11 // pred_check_branch
          %417 = sbr.rel (%p415) target = $region20
        $region19: #{tpu_custom_call.1} parent=11 // pred_region
          %419 = vsyncadd [#allocation4], 0
          %s421 = sshll.u32 %s2, 4
          %s422 = int_to_ptr.hbm [resolvable:$true] %s421
          %s423 = sshll.u32 [#allocation3], 4
          %s424 = int_to_ptr.vmem [resolvable:$true] %s423
          %426 = dma.hbm_to_vmem [thread:$0]  %s422, 16, %s424, [#allocation4]
        $region20: #{tpu_custom_call.1} parent=11 // pred_fallthru
          _
        // Predicated region
        $region21: #{tpu_custom_call.1} parent=11 // pred_check
          %p427 = pneg %p119
        $region22: #{tpu_custom_call.1} parent=11 // pred_check_branch
          %429 = sbr.rel (%p427) target = $region24
        $region23: #{tpu_custom_call.1} parent=11 // pred_region
          %431 = vsyncadd [#allocation7], 0
          %s432 = sshll.u32 %s3, 4
          %s433 = int_to_ptr.hbm [resolvable:$true] %s432
          %s434 = sshll.u32 [#allocation6], 4
          %s435 = int_to_ptr.vmem [resolvable:$true] %s434
          %440 = dma.hbm_to_vmem [thread:$0]  %s433, 256, %s435, [#allocation7], 64, 64, 4
        $region24: #{tpu_custom_call.1} parent=11 // pred_fallthru
          _
        // Predicated region
        $region25: #{tpu_custom_call.1} parent=11 // pred_check
          %p441 = pneg %p140
        $region26: #{tpu_custom_call.1} parent=11 // pred_check_branch
          %443 = sbr.rel (%p441) target = $region28
        $region27: #{tpu_custom_call.1} parent=11 // pred_region
          %445 = vsyncadd [#allocation7], 0
          %s447 = sshll.u32 %s4, 4
          %s448 = int_to_ptr.hbm [resolvable:$true] %s447
          %s449 = sshll.u32 [#allocation8], 4
          %s450 = int_to_ptr.vmem [resolvable:$true] %s449
          %452 = dma.hbm_to_vmem [thread:$0]  %s448, 16, %s450, [#allocation7]
        $region28: #{tpu_custom_call.1} parent=11 // pred_fallthru
          _
        // Predicated region
        $region29: #{tpu_custom_call.1} parent=11 // pred_check
          %p453 = pneg %p161
        $region30: #{tpu_custom_call.1} parent=11 // pred_check_branch
          %455 = sbr.rel (%p453) target = $region32
        $region31: #{tpu_custom_call.1} parent=11 // pred_region
          %457 = vsyncadd [#allocation10], 0
          %s458 = sshll.u32 %s5, 4
          %s459 = int_to_ptr.hbm [resolvable:$true] %s458
          %s460 = sshll.u32 [#allocation9], 4
          %s461 = int_to_ptr.vmem [resolvable:$true] %s460
          %466 = dma.hbm_to_vmem [thread:$0]  %s459, 256, %s461, [#allocation10], 64, 64, 4
        $region32: #{tpu_custom_call.1} parent=11 // pred_fallthru
          _
        // Predicated region
        $region33: #{tpu_custom_call.1} parent=11 // pred_check
          %p467 = pneg %p182
        $region34: #{tpu_custom_call.1} parent=11 // pred_check_branch
          %469 = sbr.rel (%p467) target = $region36
        $region35: #{tpu_custom_call.1} parent=11 // pred_region
          %471 = vsyncadd [#allocation10], 0
          %s473 = sshll.u32 %s6, 4
          %s474 = int_to_ptr.hbm [resolvable:$true] %s473
          %s475 = sshll.u32 [#allocation11], 4
          %s476 = int_to_ptr.vmem [resolvable:$true] %s475
          %478 = dma.hbm_to_vmem [thread:$0]  %s474, 16, %s476, [#allocation10]
        $region36: #{tpu_custom_call.1} parent=11 // pred_fallthru
          _
        // Predicated region
        $region37: #{tpu_custom_call.1} parent=11 // pred_check
          %p479 = pneg %p203
        $region38: #{tpu_custom_call.1} parent=11 // pred_check_branch
          %481 = sbr.rel (%p479) target = $region40
        $region39: #{tpu_custom_call.1} parent=11 // pred_region
          %483 = vsyncadd [#allocation13], 0
          %s485 = sshll.u32 %s7, 4
          %s486 = int_to_ptr.hbm [resolvable:$true] %s485
          %s487 = sshll.u32 [#allocation12], 4
          %s488 = int_to_ptr.vmem [resolvable:$true] %s487
          %490 = dma.hbm_to_vmem [thread:$0]  %s486, 16, %s488, [#allocation13]
        $region40: #{tpu_custom_call.1} parent=11 // pred_fallthru
          _
        // Predicated region
        $region41: #{tpu_custom_call.1} parent=11 // pred_check
          %p491 = pneg %p224
        $region42: #{tpu_custom_call.1} parent=11 // pred_check_branch
          %493 = sbr.rel (%p491) target = $region44
        $region43: #{tpu_custom_call.1} parent=11 // pred_region
          %495 = vsyncadd [#allocation13], 0
          %s497 = sshll.u32 %s8, 4
          %s498 = int_to_ptr.hbm [resolvable:$true] %s497
          %s499 = sshll.u32 [#allocation14], 4
          %s500 = int_to_ptr.vmem [resolvable:$true] %s499
          %502 = dma.hbm_to_vmem [thread:$0]  %s498, 16, %s500, [#allocation13]
        $region44: #{tpu_custom_call.1} parent=11 // pred_fallthru
          _
        // Predicated region
        $region45: #{tpu_custom_call.1} parent=11 // pred_check
          %p503 = pneg %p245
        $region46: #{tpu_custom_call.1} parent=11 // pred_check_branch
          %505 = sbr.rel (%p503) target = $region48
        $region47: #{tpu_custom_call.1} parent=11 // pred_region
          %507 = vsyncadd [#allocation16], 0
          %s509 = sshll.u32 %s9, 4
          %s510 = int_to_ptr.hbm [resolvable:$true] %s509
          %s511 = sshll.u32 [#allocation15], 4
          %s512 = int_to_ptr.vmem [resolvable:$true] %s511
          %514 = dma.hbm_to_vmem [thread:$0]  %s510, 16, %s512, [#allocation16]
        $region48: #{tpu_custom_call.1} parent=11 // pred_fallthru
          _
        // Predicated region
        $region49: #{tpu_custom_call.1} parent=11 // pred_check
          %p515 = pneg %p266
        $region50: #{tpu_custom_call.1} parent=11 // pred_check_branch
          %517 = sbr.rel (%p515) target = $region52
        $region51: #{tpu_custom_call.1} parent=11 // pred_region
          _
        $region52: #{tpu_custom_call.1} parent=11 // pred_fallthru
          _
        // Predicated region
        $region53: #{tpu_custom_call.1} parent=11 // pred_check
          %p518 = pneg %p287
        $region54: #{tpu_custom_call.1} parent=11 // pred_check_branch
          %520 = sbr.rel (%p518) target = $region56
        $region55: #{tpu_custom_call.1} parent=11 // pred_region
          _
        $region56: #{tpu_custom_call.1} parent=11 // pred_fallthru
          _
        // Predicated region
        $region57: #{tpu_custom_call.1} parent=11 // pred_check
          %p521 = pneg %p308
        $region58: #{tpu_custom_call.1} parent=11 // pred_check_branch
          %523 = sbr.rel (%p521) target = $region60
        $region59: #{tpu_custom_call.1} parent=11 // pred_region
          _
        $region60: #{tpu_custom_call.1} parent=11 // pred_fallthru
          _
        // Predicated region
        $region61: #{tpu_custom_call.1} parent=11 // pred_check
          %p524 = pneg %p329
        $region62: #{tpu_custom_call.1} parent=11 // pred_check_branch
          %526 = sbr.rel (%p524) target = $region64
        $region63: #{tpu_custom_call.1} parent=11 // pred_region
          _
        $region64: #{tpu_custom_call.1} parent=11 // pred_fallthru
          _
        // Predicated region
        $region65: #{tpu_custom_call.1} parent=11 // pred_check
          %p527 = pneg %p350
        $region66: #{tpu_custom_call.1} parent=11 // pred_check_branch
          %529 = sbr.rel (%p527) target = $region68
        $region67: #{tpu_custom_call.1} parent=11 // pred_region
          _
        $region68: #{tpu_custom_call.1} parent=11 // pred_fallthru
          _
        // Predicated region
        $region69: #{tpu_custom_call.1} parent=11 // pred_check
          %p530 = pneg %p371
        $region70: #{tpu_custom_call.1} parent=11 // pred_check_branch
          %532 = sbr.rel (%p530) target = $region72
        $region71: #{tpu_custom_call.1} parent=11 // pred_region
          _
        $region72: #{tpu_custom_call.1} parent=11 // pred_fallthru
          _
      $region12: #{tpu_custom_call.1} parent=5 // pred_fallthru
        _
      %p533 = scmp.lt.s32.totalorder %s30, 2
      // Predicated region
      $region73: #{tpu_custom_call.1} parent=5 // pred_check
        %p534 = pneg %p533
      $region74: #{tpu_custom_call.1} parent=5 // pred_check_branch
        %536 = sbr.rel (%p534) target = $region76
      $region75: #{tpu_custom_call.1} parent=5 // pred_region
        // Predicated region
        $region77: #{tpu_custom_call.1} parent=75 // pred_check
          %p537 = pneg %p50
        $region78: #{tpu_custom_call.1} parent=75 // pred_check_branch
          %539 = sbr.rel (%p537) target = $region80
        $region79: #{tpu_custom_call.1} parent=75 // pred_region
          %s540 = sand.u32 %s40, 1
          %s541 = sand.u32 %s40, 1
          %s542 = smul.addr %s541, 12
          %s543 = scalar_lea.vmem [#allocation2], %s542
          %s544 = smul.addr %s30, 4
          %s545 = scalar_lea.vmem %s0, %s544
          // Predicated region
          $region81: #{tpu_custom_call.1} parent=79 // pred_check
            _
          $region82: #{tpu_custom_call.1} parent=79 // pred_check_branch
            %547 = sbr.rel (0) target = $region84
          $region83: #{tpu_custom_call.1} parent=79 // pred_region
            // Predicated region
            $region85: #{tpu_custom_call.1} parent=83 // pred_check
              _
            $region86: #{tpu_custom_call.1} parent=83 // pred_check_branch
              %549 = sbr.rel target = $region88
            $region87: #{tpu_custom_call.1} parent=83 // pred_region
              // Predicated region
              $region100: #{tpu_custom_call.1} parent=87 // pred_check
                _
              $region101: #{tpu_custom_call.1} parent=87 // pred_check_branch
                %569 = sbr.rel (0) target = $region103
              $region102: #{tpu_custom_call.1} parent=87 // pred_region
                loop: start=0, step=1, limit=1
                $region104: #{tpu_custom_call.1} parent=102 // loop_pre_header
                  _
                $region105: #{tpu_custom_call.1} parent=102 // loop_header
                  %s571 = sphi 0, %s575
                  %p572 = scmp.ge.s32.totalorder %s571, 1
                  %s576 = sphi %s545, %s545
                  %s577 = sphi %s543, %s543
                $region106: #{tpu_custom_call.1} parent=102 // loop_header_branch
                  %574 = sbr.rel (%p572) target = $region110
                $region107: #{tpu_custom_call.1} parent=102 // loop_body
                  _
                $region108: #{tpu_custom_call.1} parent=102 // loop_footer
                  %s575 = sadd.s32 1, %s571
                $region109: #{tpu_custom_call.1} parent=102 // loop_footer_branch
                  %570 = sbr.rel target = $region105
                $region110: #{tpu_custom_call.1} parent=102 // loop_exit
                  _
                %s579 = ssub.s32 16, 1
                loop: start=0, step=1, limit=1
                $region111: #{tpu_custom_call.1} parent=102 // loop_pre_header
                  _
                $region112: #{tpu_custom_call.1} parent=102 // loop_header
                  %s581 = sphi 0, %s585
                  %p582 = scmp.ge.s32.totalorder %s581, 1
                  %s586 = sphi %s545, %s545
                  %s587 = sphi %s543, %s543
                $region113: #{tpu_custom_call.1} parent=102 // loop_header_branch
                  %584 = sbr.rel (%p582) target = $region117
                $region114: #{tpu_custom_call.1} parent=102 // loop_body
                  %v588 = vld [vmem:[%s586] sm:%s579]
                  %589 = vst [vmem:[%s587] sm:%s579] %v588
                  %v590 = vld [vmem:[%s586 + $0x8] sm:%s579]
                  %591 = vst [vmem:[%s587 + $0x4] sm:%s579] %v590
                  %v592 = vld [vmem:[%s586 + $0x10] sm:%s579]
                  %593 = vst [vmem:[%s587 + $0x8] sm:%s579] %v592
                $region115: #{tpu_custom_call.1} parent=102 // loop_footer
                  %s585 = sadd.s32 1, %s581
                $region116: #{tpu_custom_call.1} parent=102 // loop_footer_branch
                  %580 = sbr.rel target = $region112
                $region117: #{tpu_custom_call.1} parent=102 // loop_exit
                  _
              $region103: #{tpu_custom_call.1} parent=87 // pred_fallthru
                _
            $region88: #{tpu_custom_call.1} parent=83 // pred_fallthru
              _
            // Predicated region
            $region89: #{tpu_custom_call.1} parent=83 // pred_check
              _
            $region90: #{tpu_custom_call.1} parent=83 // pred_check_branch
              %551 = sbr.rel (0) target = $region92
            $region91: #{tpu_custom_call.1} parent=83 // pred_region
              %s553 = ssub.s32 16, 1
              loop: start=0, step=1, limit=1
              $region93: #{tpu_custom_call.1} parent=91 // loop_pre_header
                _
              $region94: #{tpu_custom_call.1} parent=91 // loop_header
                %s555 = sphi 0, %s559
                %p556 = scmp.ge.s32.totalorder %s555, 1
                %s560 = sphi %s545, %s545
                %s561 = sphi %s543, %s543
              $region95: #{tpu_custom_call.1} parent=91 // loop_header_branch
                %558 = sbr.rel (%p556) target = $region99
              $region96: #{tpu_custom_call.1} parent=91 // loop_body
                %v562 = vld [vmem:[%s560] sm:%s553]
                %563 = vst [vmem:[%s561] sm:%s553] %v562
                %v564 = vld [vmem:[%s560 + $0x8] sm:%s553]
                %565 = vst [vmem:[%s561 + $0x4] sm:%s553] %v564
                %v566 = vld [vmem:[%s560 + $0x10] sm:%s553]
                %567 = vst [vmem:[%s561 + $0x8] sm:%s553] %v566
              $region97: #{tpu_custom_call.1} parent=91 // loop_footer
                %s559 = sadd.s32 1, %s555
              $region98: #{tpu_custom_call.1} parent=91 // loop_footer_branch
                %554 = sbr.rel target = $region94
              $region99: #{tpu_custom_call.1} parent=91 // loop_exit
                _
            $region92: #{tpu_custom_call.1} parent=83 // pred_fallthru
              _
          $region84: #{tpu_custom_call.1} parent=79 // pred_fallthru
            _
          %594 = vnop
        $region80: #{tpu_custom_call.1} parent=75 // pred_fallthru
          _
      $region76: #{tpu_custom_call.1} parent=5 // pred_fallthru
        _
      %p595 = scmp.le.s32.totalorder 1, %s30
      %p596 = scmp.lt.s32.totalorder %s30, 3
      %p597 = pnand %p595, %p596
      %p598 = pneg %p597
      // Predicated region
      $region118: #{tpu_custom_call.1} parent=5 // pred_check
        _
      $region119: #{tpu_custom_call.1} parent=5 // pred_check_branch
        %600 = sbr.rel (%p597) target = $region121
      $region120: #{tpu_custom_call.1} parent=5 // pred_region
        %s601 = ssub.s32 %s30, 1
        %s602 = sand.u32 %s43, 1
        %s603 = sand.u32 %s43, 1
        %s604 = smul.addr %s603, 12
        %s605 = scalar_lea.vmem [#allocation2], %s604
        // Predicated region
        $region122: #{tpu_custom_call.1} parent=120 // pred_check
          %p606 = pneg %p56
        $region123: #{tpu_custom_call.1} parent=120 // pred_check_branch
          %608 = sbr.rel (%p606) target = $region125
        $region124: #{tpu_custom_call.1} parent=120 // pred_region
          _
        $region125: #{tpu_custom_call.1} parent=120 // pred_fallthru
          _
        // Predicated region
        $region126: #{tpu_custom_call.1} parent=120 // pred_check
          %p609 = pneg %p98
        $region127: #{tpu_custom_call.1} parent=120 // pred_check_branch
          %611 = sbr.rel (%p609) target = $region129
        $region128: #{tpu_custom_call.1} parent=120 // pred_region
          %613 = dma.done [#allocation4], 16
        $region129: #{tpu_custom_call.1} parent=120 // pred_fallthru
          _
        // Predicated region
        $region130: #{tpu_custom_call.1} parent=120 // pred_check
          %p614 = pneg %p119
        $region131: #{tpu_custom_call.1} parent=120 // pred_check_branch
          %616 = sbr.rel (%p614) target = $region133
        $region132: #{tpu_custom_call.1} parent=120 // pred_region
          %618 = dma.done [#allocation7], 256
        $region133: #{tpu_custom_call.1} parent=120 // pred_fallthru
          _
        // Predicated region
        $region134: #{tpu_custom_call.1} parent=120 // pred_check
          %p619 = pneg %p140
        $region135: #{tpu_custom_call.1} parent=120 // pred_check_branch
          %621 = sbr.rel (%p619) target = $region137
        $region136: #{tpu_custom_call.1} parent=120 // pred_region
          %623 = dma.done [#allocation7], 16
        $region137: #{tpu_custom_call.1} parent=120 // pred_fallthru
          _
        // Predicated region
        $region138: #{tpu_custom_call.1} parent=120 // pred_check
          %p624 = pneg %p161
        $region139: #{tpu_custom_call.1} parent=120 // pred_check_branch
          %626 = sbr.rel (%p624) target = $region141
        $region140: #{tpu_custom_call.1} parent=120 // pred_region
          %628 = dma.done [#allocation10], 256
        $region141: #{tpu_custom_call.1} parent=120 // pred_fallthru
          _
        // Predicated region
        $region142: #{tpu_custom_call.1} parent=120 // pred_check
          %p629 = pneg %p182
        $region143: #{tpu_custom_call.1} parent=120 // pred_check_branch
          %631 = sbr.rel (%p629) target = $region145
        $region144: #{tpu_custom_call.1} parent=120 // pred_region
          %633 = dma.done [#allocation10], 16
        $region145: #{tpu_custom_call.1} parent=120 // pred_fallthru
          _
        // Predicated region
        $region146: #{tpu_custom_call.1} parent=120 // pred_check
          %p634 = pneg %p203
        $region147: #{tpu_custom_call.1} parent=120 // pred_check_branch
          %636 = sbr.rel (%p634) target = $region149
        $region148: #{tpu_custom_call.1} parent=120 // pred_region
          %638 = dma.done [#allocation13], 16
        $region149: #{tpu_custom_call.1} parent=120 // pred_fallthru
          _
        // Predicated region
        $region150: #{tpu_custom_call.1} parent=120 // pred_check
          %p639 = pneg %p224
        $region151: #{tpu_custom_call.1} parent=120 // pred_check_branch
          %641 = sbr.rel (%p639) target = $region153
        $region152: #{tpu_custom_call.1} parent=120 // pred_region
          %643 = dma.done [#allocation13], 16
        $region153: #{tpu_custom_call.1} parent=120 // pred_fallthru
          _
        // Predicated region
        $region154: #{tpu_custom_call.1} parent=120 // pred_check
          %p644 = pneg %p245
        $region155: #{tpu_custom_call.1} parent=120 // pred_check_branch
          %646 = sbr.rel (%p644) target = $region157
        $region156: #{tpu_custom_call.1} parent=120 // pred_region
          %648 = dma.done [#allocation16], 16
        $region157: #{tpu_custom_call.1} parent=120 // pred_fallthru
          _
        %s649 = sand.u32 %s43, 1
        %s650 = sand.u32 %s43, 1
        %s651 = smul.addr %s650, 12
        %s652 = scalar_lea.vmem [#allocation2], %s651
        %p653 = pneg %p56
        %p654 = pneg %p53
        %p655 = pneg %p77
        %p656 = pneg %p74
        %p657 = pneg %p98
        %p658 = pneg %p95
        %p659 = pneg %p119
        %p660 = pneg %p116
        %p661 = pneg %p140
        %p662 = pneg %p137
        %p663 = pneg %p161
        %p664 = pneg %p158
        %p665 = pneg %p182
        %p666 = pneg %p179
        %p667 = pneg %p203
        %p668 = pneg %p200
        %p669 = pneg %p224
        %p670 = pneg %p221
        %p671 = pneg %p245
        %p672 = pneg %p242
        %p673 = pneg %p266
        %p674 = pneg %p263
        %p675 = pneg %p287
        %p676 = pneg %p284
        %p677 = pneg %p308
        %p678 = pneg %p305
        %p679 = pneg %p329
        %p680 = pneg %p326
        %p681 = pneg %p350
        %p682 = pneg %p347
        %p683 = pneg %p371
        %p684 = pneg %p368
        %p685 = pneg %p397
        %p686 = pneg %p394
        %s687 = sand.u32 %s384, 1
        %s688 = scalar_lea.sflag [#allocation5], %s687
        %s689 = sand.u32 %s384, 1
        %s690 = smul.addr %s689, 12
        %s691 = scalar_lea.vmem [#allocation17], %s690
        %v693 = vld [vmem:[%s605] sm:$0xf]
        %v694 = vld [vmem:[%s605 + $0x4] sm:$0xf]
        %v695 = vld [vmem:[%s605 + $0x8] sm:$0xf]
        %v696 = vunpack.c.l.bf16 %v693
        %v697 = vunpack.c.l.bf16 %v694
        %v698 = vunpack.c.l.bf16 %v695
        %v699 = vld [vmem:[#allocation11] sm:$0x1]
        %v700 = vld [vmem:[#allocation12] sm:$0x1]
        %vm701 = vcmask 261120
        %v702 = vsel %vm701, %v696, 0.0
        %703 = vadd.xlane.f32.xlu0 %v702
        %v704 = vpop.xlane.xlu0 %703
        %v705 = vsel %vm701, %v697, 0.0
        %706 = vadd.xlane.f32.xlu0 %v705
        %v707 = vpop.xlane.xlu0 %706
        %v708 = vsel %vm701, %v698, 0.0
        %709 = vadd.xlane.f32.xlu0 %v708
        %v710 = vpop.xlane.xlu0 %709
        %v711 = vrcp.pop 32.0
        %v712 = vmul.f32 32.0, %v711
        %v713 = vsub.f32 1.0, %v712
        %v714 = vmul.f32 %v711, %v713
        %v715 = vadd.f32 %v711, %v714
        %vm716 = vweird.f32 %v711
        %v717 = vsel %vm716, %v711, %v715
        %v718 = vmul.f32 %v704, %v717
        %v719 = vmul.f32 %v707, %v717
        %v720 = vmul.f32 %v710, %v717
        %v721 = vsub.f32 %v696, %v718
        %v722 = vsub.f32 %v697, %v719
        %v723 = vsub.f32 %v698, %v720
        %v724 = vmul.f32 %v721, %v721
        %v725 = vmul.f32 %v722, %v722
        %v726 = vmul.f32 %v723, %v723
        %v727 = vsel %vm701, %v724, 0.0
        %728 = vadd.xlane.f32.xlu0 %v727
        %v729 = vpop.xlane.xlu0 %728
        %v730 = vsel %vm701, %v725, 0.0
        %731 = vadd.xlane.f32.xlu0 %v730
        %v732 = vpop.xlane.xlu0 %731
        %v733 = vsel %vm701, %v726, 0.0
        %734 = vadd.xlane.f32.xlu0 %v733
        %v735 = vpop.xlane.xlu0 %734
        %v736 = vmul.f32 %v729, %v717
        %v737 = vmul.f32 %v732, %v717
        %v738 = vmul.f32 %v735, %v717
        %v739 = vadd.f32 %v736, 1e-05
        %v740 = vadd.f32 %v737, 1e-05
        %v741 = vadd.f32 %v738, 1e-05
        %v742 = vrsqrt.pop %v739
        %v743 = vmul.f32 %v742, %v739
        %v744 = vmul.f32 %v743, %v742
        %v745 = vmul.f32 0.5, %v744
        %v746 = vsub.f32 1.5, %v745
        %v747 = vmul.f32 %v742, %v746
        %vm748 = vweird.f32 %v739
        %vm749 = vweird.f32 %v742
        %vm750 = vmor %vm748, %vm749
        %v751 = vsel %vm750, %v742, %v747
        %v752 = vrsqrt.pop %v740
        %v753 = vmul.f32 %v752, %v740
        %v754 = vmul.f32 %v753, %v752
        %v755 = vmul.f32 0.5, %v754
        %v756 = vsub.f32 1.5, %v755
        %v757 = vmul.f32 %v752, %v756
        %vm758 = vweird.f32 %v740
        %vm759 = vweird.f32 %v752
        %vm760 = vmor %vm758, %vm759
        %v761 = vsel %vm760, %v752, %v757
        %v762 = vrsqrt.pop %v741
        %v763 = vmul.f32 %v762, %v741
        %v764 = vmul.f32 %v763, %v762
        %v765 = vmul.f32 0.5, %v764
        %v766 = vsub.f32 1.5, %v765
        %v767 = vmul.f32 %v762, %v766
        %vm768 = vweird.f32 %v741
        %vm769 = vweird.f32 %v762
        %vm770 = vmor %vm768, %vm769
        %v771 = vsel %vm770, %v762, %v767
        %v772 = vmul.f32 %v721, %v751
        %v773 = vmul.f32 %v722, %v761
        %v774 = vmul.f32 %v723, %v771
        %v776 = vperm.slane %v699, 0
        %v778 = vmul.f32 %v772, %v776
        %v779 = vmul.f32 %v773, %v776
        %v780 = vmul.f32 %v774, %v776
        %v782 = vperm.slane %v700, 0
        %v784 = vadd.f32 %v778, %v782
        %v785 = vadd.f32 %v779, %v782
        %v786 = vadd.f32 %v780, %v782
        %v787 = vpack.c.bf16 %v785, %v784
        %v788 = vpack.c.bf16 %v786, %v786
        %v789 = vld [vmem:[%s1] sm:$0xf]
        %v790 = vld [vmem:[%s1 + $0x4] sm:$0xf]
        %v791 = vld [vmem:[%s1 + $0x8] sm:$0xf]
        %v792 = vld [vmem:[%s1 + $0xc] sm:$0xf]
        %v793 = vld [vmem:[#allocation3] sm:$0x1]
        %v795 = vperm.slane %v793, 0
        %v801 = vunpack.c.l.b16 %v789
        %v802 = vunpack.c.l.b16 %v790
        %v803 = vunpack.c.l.b16 %v791
        %v804 = vunpack.c.l.b16 %v792
        %v805 = vpack.c.b16 %v802, %v801
        %v806 = vpack.c.b16 %v804, %v803
        %v810 = vsel %vm701, %v787, 0
        %v813 = vsel %vm701, %v788, 0
        %815 = vmatpush.bf16.msra.mxu0 0
        %816 = vmatpush.bf16.msra.mxu0 0
        %817 = vmatpush.bf16.msra.mxu0 0
        %818 = vmatpush.bf16.msra.mxu0 0
        %819 = vmatpush.bf16.msra.mxu0 0
        %820 = vmatpush.bf16.msra.mxu0 0
        %821 = vmatpush.bf16.msra.mxu0 %v806
        %822 = vmatpush.bf16.msra.mxu0 %v805
        %823 = vmatmul.bf16.gmra.mxu0 %v810
        %v824 = vpop.f32.mrf.mxu0
        %v825 = vadd.f32 %v795, %v824
        %v826 = vpop.f32.mrf.mxu0
        %v827 = vadd.f32 %v795, %v826
        %828 = vmatmul.bf16.gmra.mxu0 %v813
        %v829 = vpop.f32.mrf.mxu0
        %v830 = vadd.f32 %v795, %v829
        %v831 = vpop.f32.mrf.mxu0
        %832 = vdwg.mxu0
        %v833 = vpack.c.bf16 %v825, %v825
        %v834 = vpack.c.bf16 %v827, %v827
        %v835 = vpack.c.bf16 %v830, %v830
        %v836 = vunpack.c.l.bf16 %v833
        %v837 = vunpack.c.l.bf16 %v834
        %v838 = vunpack.c.l.bf16 %v835
        %842 = vrot.lane.b32.xlu0 %v836, 96
        %v843 = vpop.permute.xlu0 %842
        %844 = vrot.lane.b32.xlu0 %v837, 96
        %v845 = vpop.permute.xlu0 %844
        %846 = vrot.lane.b32.xlu0 %v838, 96
        %v847 = vpop.permute.xlu0 %846
        %v851 = vmul.f32 %v836, %v843
        %v852 = vmul.f32 %v836, %v845
        %v853 = vmul.f32 %v836, %v847
        %v854 = vmul.f32 %v837, %v843
        %v855 = vmul.f32 %v837, %v845
        %v856 = vmul.f32 %v837, %v847
        %v857 = vmul.f32 %v838, %v843
        %v858 = vmul.f32 %v838, %v845
        %v859 = vmul.f32 %v838, %v847
        %v860 = vpack.c.bf16 %v851, %v851
        %v861 = vpack.c.bf16 %v852, %v852
        %v862 = vpack.c.bf16 %v853, %v853
        %v863 = vpack.c.bf16 %v854, %v854
        %v864 = vpack.c.bf16 %v855, %v855
        %v865 = vpack.c.bf16 %v856, %v856
        %v866 = vpack.c.bf16 %v857, %v857
        %v867 = vpack.c.bf16 %v858, %v858
        %v868 = vpack.c.bf16 %v859, %v859
        %v869 = vld [vmem:[#allocation9] sm:$0xf]
        %v870 = vld [vmem:[#allocation9 + $0x4] sm:$0xf]
        %v871 = vld [vmem:[#allocation9 + $0x8] sm:$0xf]
        %v872 = vld [vmem:[#allocation9 + $0xc] sm:$0xf]
        %v882 = vunpack.c.l.b16 %v860
        %v883 = vunpack.c.l.b16 %v861
        %v884 = vunpack.c.l.b16 %v862
        %v885 = vunpack.c.l.b16 %v863
        %v886 = vunpack.c.l.b16 %v864
        %v887 = vunpack.c.l.b16 %v865
        %v888 = vunpack.c.l.b16 %v866
        %v889 = vunpack.c.l.b16 %v867
        %v890 = vunpack.c.l.b16 %v868
        %v891 = vpack.c.b16 %v883, %v882
        %v892 = vpack.c.b16 %v885, %v884
        %v893 = vpack.c.b16 %v887, %v886
        %v894 = vpack.c.b16 %v889, %v888
        %v895 = vpack.c.b16 %v890, %v890
        %v900 = vunpack.c.l.b16 %v869
        %v901 = vunpack.c.l.b16 %v870
        %v902 = vunpack.c.l.b16 %v871
        %v903 = vunpack.c.l.b16 %v872
        %v904 = vpack.c.b16 %v901, %v900
        %v905 = vpack.c.b16 %v903, %v902
        %v909 = vsel %vm701, %v891, 0
        %v912 = vsel %vm701, %v892, 0
        %v915 = vsel %vm701, %v893, 0
        %v918 = vsel %vm701, %v894, 0
        %v921 = vsel %vm701, %v895, 0
        %923 = vmatpush.bf16.msra.mxu0 0
        %924 = vmatpush.bf16.msra.mxu0 0
        %925 = vmatpush.bf16.msra.mxu0 0
        %926 = vmatpush.bf16.msra.mxu0 0
        %927 = vmatpush.bf16.msra.mxu0 0
        %928 = vmatpush.bf16.msra.mxu0 0
        %929 = vmatpush.bf16.msra.mxu0 %v905
        %930 = vmatpush.bf16.msra.mxu0 %v904
        %931 = vmatmul.bf16.gmra.mxu0 %v909
        %v932 = vpop.f32.mrf.mxu0
        %v933 = vadd.f32 0.0, %v932
        %v934 = vpop.f32.mrf.mxu0
        %v935 = vadd.f32 0.0, %v934
        %936 = vmatmul.bf16.gmra.mxu0 %v912
        %v937 = vpop.f32.mrf.mxu0
        %v938 = vadd.f32 0.0, %v937
        %v939 = vpop.f32.mrf.mxu0
        %v940 = vadd.f32 0.0, %v939
        %941 = vmatmul.bf16.gmra.mxu0 %v915
        %v942 = vpop.f32.mrf.mxu0
        %v943 = vadd.f32 0.0, %v942
        %v944 = vpop.f32.mrf.mxu0
        %v945 = vadd.f32 0.0, %v944
        %946 = vmatmul.bf16.gmra.mxu0 %v918
        %v947 = vpop.f32.mrf.mxu0
        %v948 = vadd.f32 0.0, %v947
        %v949 = vpop.f32.mrf.mxu0
        %v950 = vadd.f32 0.0, %v949
        %951 = vmatmul.bf16.gmra.mxu0 %v921
        %v952 = vpop.f32.mrf.mxu0
        %v953 = vadd.f32 0.0, %v952
        %v954 = vpop.f32.mrf.mxu0
        %955 = vdwg.mxu0
        %v956 = vmax.f32 %v933, %v935
        %v957 = vmax.f32 %v940, %v943
        %v958 = vmax.f32 %v948, %v950
        %v959 = vmax.f32 %v956, %v938
        %v960 = vmax.f32 %v957, %v945
        %v961 = vmax.f32 %v958, %v953
        %v962 = vsub.f32 %v933, %v959
        %v963 = vsub.f32 %v935, %v959
        %v964 = vsub.f32 %v938, %v959
        %v965 = vsub.f32 %v940, %v960
        %v966 = vsub.f32 %v943, %v960
        %v967 = vsub.f32 %v945, %v960
        %v968 = vsub.f32 %v948, %v961
        %v969 = vsub.f32 %v950, %v961
        %v970 = vsub.f32 %v953, %v961
        %v971 = vmul.f32 %v962, 1.442695
        %v972 = vpow.pop %v971
        %v973 = vmul.f32 %v963, 1.442695
        %v974 = vpow.pop %v973
        %v975 = vmul.f32 %v964, 1.442695
        %v976 = vpow.pop %v975
        %v977 = vmul.f32 %v965, 1.442695
        %v978 = vpow.pop %v977
        %v979 = vmul.f32 %v966, 1.442695
        %v980 = vpow.pop %v979
        %v981 = vmul.f32 %v967, 1.442695
        %v982 = vpow.pop %v981
        %v983 = vmul.f32 %v968, 1.442695
        %v984 = vpow.pop %v983
        %v985 = vmul.f32 %v969, 1.442695
        %v986 = vpow.pop %v985
        %v987 = vmul.f32 %v970, 1.442695
        %v988 = vpow.pop %v987
        %v989 = vadd.f32 %v972, %v974
        %v990 = vadd.f32 %v978, %v980
        %v991 = vadd.f32 %v984, %v986
        %v992 = vadd.f32 %v989, %v976
        %v993 = vadd.f32 %v990, %v982
        %v994 = vadd.f32 %v991, %v988
        %v995 = vrcp.pop %v992
        %v996 = vrcp.pop %v993
        %v997 = vrcp.pop %v994
        %999 = vrot.lane.b32.xlu0 %v825, 64
        %v1000 = vpop.permute.xlu0 %999
        %v1002 = vmul.f32 %v972, %v1000
        %v1003 = vmul.f32 %v978, %v1000
        %v1004 = vmul.f32 %v984, %v1000
        %1006 = vrot.lane.b32.xlu0 %v827, 64
        %v1007 = vpop.permute.xlu0 %1006
        %v1009 = vmul.f32 %v974, %v1007
        %v1010 = vmul.f32 %v980, %v1007
        %v1011 = vmul.f32 %v986, %v1007
        %v1012 = vadd.f32 %v1002, %v1009
        %v1013 = vadd.f32 %v1003, %v1010
        %v1014 = vadd.f32 %v1004, %v1011
        %1016 = vrot.lane.b32.xlu0 %v830, 64
        %v1017 = vpop.permute.xlu0 %1016
        %v1019 = vmul.f32 %v976, %v1017
        %v1020 = vmul.f32 %v982, %v1017
        %v1021 = vmul.f32 %v988, %v1017
        %v1022 = vadd.f32 %v1012, %v1019
        %v1023 = vadd.f32 %v1013, %v1020
        %v1024 = vadd.f32 %v1014, %v1021
        %v1025 = vmul.f32 %v1022, %v995
        %v1026 = vmul.f32 %v1023, %v996
        %v1027 = vmul.f32 %v1024, %v997
        %v1028 = vpack.c.bf16 %v1026, %v1025
        %v1029 = vpack.c.bf16 %v1027, %v1027
        %v1030 = vld [vmem:[#allocation6] sm:$0xf]
        %v1031 = vld [vmem:[#allocation6 + $0x4] sm:$0xf]
        %v1032 = vld [vmem:[#allocation6 + $0x8] sm:$0xf]
        %v1033 = vld [vmem:[#allocation6 + $0xc] sm:$0xf]
        %v1038 = vunpack.c.l.b16 %v1030
        %v1039 = vunpack.c.l.b16 %v1031
        %v1040 = vunpack.c.l.b16 %v1032
        %v1041 = vunpack.c.l.b16 %v1033
        %v1042 = vpack.c.b16 %v1039, %v1038
        %v1043 = vpack.c.b16 %v1041, %v1040
        %v1047 = vsel %vm701, %v1028, 0
        %v1050 = vsel %vm701, %v1029, 0
        %1052 = vmatpush.bf16.msra.mxu0 0
        %1053 = vmatpush.bf16.msra.mxu0 0
        %1054 = vmatpush.bf16.msra.mxu0 0
        %1055 = vmatpush.bf16.msra.mxu0 0
        %1056 = vmatpush.bf16.msra.mxu0 0
        %1057 = vmatpush.bf16.msra.mxu0 0
        %1058 = vmatpush.bf16.msra.mxu0 %v1043
        %1059 = vmatpush.bf16.msra.mxu0 %v1042
        %1060 = vmatmul.bf16.gmra.mxu0 %v1047
        %v1061 = vpop.f32.mrf.mxu0
        %v1062 = vadd.f32 0.0, %v1061
        %v1063 = vpop.f32.mrf.mxu0
        %v1064 = vadd.f32 0.0, %v1063
        %1065 = vmatmul.bf16.gmra.mxu0 %v1050
        %v1066 = vpop.f32.mrf.mxu0
        %v1067 = vadd.f32 0.0, %v1066
        %v1068 = vpop.f32.mrf.mxu0
        %1069 = vdwg.mxu0
        %v1070 = vadd.f32 %v696, %v1062
        %v1071 = vadd.f32 %v697, %v1064
        %v1072 = vadd.f32 %v698, %v1067
        %v1073 = vld [vmem:[#allocation8] sm:$0x1]
        %v1075 = vperm.slane %v1073, 0
        %v1077 = vadd.f32 %v1070, %v1075
        %v1078 = vadd.f32 %v1071, %v1075
        %v1079 = vadd.f32 %v1072, %v1075
        %v1080 = vld [vmem:[#allocation14] sm:$0x1]
        %v1081 = vld [vmem:[#allocation15] sm:$0x1]
        %v1082 = vsel %vm701, %v1077, 0.0
        %1083 = vadd.xlane.f32.xlu0 %v1082
        %v1084 = vpop.xlane.xlu0 %1083
        %v1085 = vsel %vm701, %v1078, 0.0
        %1086 = vadd.xlane.f32.xlu0 %v1085
        %v1087 = vpop.xlane.xlu0 %1086
        %v1088 = vsel %vm701, %v1079, 0.0
        %1089 = vadd.xlane.f32.xlu0 %v1088
        %v1090 = vpop.xlane.xlu0 %1089
        %v1091 = vmul.f32 %v1084, %v717
        %v1092 = vmul.f32 %v1087, %v717
        %v1093 = vmul.f32 %v1090, %v717
        %v1094 = vsub.f32 %v1077, %v1091
        %v1095 = vsub.f32 %v1078, %v1092
        %v1096 = vsub.f32 %v1079, %v1093
        %v1097 = vmul.f32 %v1094, %v1094
        %v1098 = vmul.f32 %v1095, %v1095
        %v1099 = vmul.f32 %v1096, %v1096
        %v1100 = vsel %vm701, %v1097, 0.0
        %1101 = vadd.xlane.f32.xlu0 %v1100
        %v1102 = vpop.xlane.xlu0 %1101
        %v1103 = vsel %vm701, %v1098, 0.0
        %1104 = vadd.xlane.f32.xlu0 %v1103
        %v1105 = vpop.xlane.xlu0 %1104
        %v1106 = vsel %vm701, %v1099, 0.0
        %1107 = vadd.xlane.f32.xlu0 %v1106
        %v1108 = vpop.xlane.xlu0 %1107
        %v1109 = vmul.f32 %v1102, %v717
        %v1110 = vmul.f32 %v1105, %v717
        %v1111 = vmul.f32 %v1108, %v717
        %v1112 = vadd.f32 %v1109, 1e-05
        %v1113 = vadd.f32 %v1110, 1e-05
        %v1114 = vadd.f32 %v1111, 1e-05
        %v1115 = vrsqrt.pop %v1112
        %v1116 = vmul.f32 %v1115, %v1112
        %v1117 = vmul.f32 %v1116, %v1115
        %v1118 = vmul.f32 0.5, %v1117
        %v1119 = vsub.f32 1.5, %v1118
        %v1120 = vmul.f32 %v1115, %v1119
        %vm1121 = vweird.f32 %v1112
        %vm1122 = vweird.f32 %v1115
        %vm1123 = vmor %vm1121, %vm1122
        %v1124 = vsel %vm1123, %v1115, %v1120
        %v1125 = vrsqrt.pop %v1113
        %v1126 = vmul.f32 %v1125, %v1113
        %v1127 = vmul.f32 %v1126, %v1125
        %v1128 = vmul.f32 0.5, %v1127
        %v1129 = vsub.f32 1.5, %v1128
        %v1130 = vmul.f32 %v1125, %v1129
        %vm1131 = vweird.f32 %v1113
        %vm1132 = vweird.f32 %v1125
        %vm1133 = vmor %vm1131, %vm1132
        %v1134 = vsel %vm1133, %v1125, %v1130
        %v1135 = vrsqrt.pop %v1114
        %v1136 = vmul.f32 %v1135, %v1114
        %v1137 = vmul.f32 %v1136, %v1135
        %v1138 = vmul.f32 0.5, %v1137
        %v1139 = vsub.f32 1.5, %v1138
        %v1140 = vmul.f32 %v1135, %v1139
        %vm1141 = vweird.f32 %v1114
        %vm1142 = vweird.f32 %v1135
        %vm1143 = vmor %vm1141, %vm1142
        %v1144 = vsel %vm1143, %v1135, %v1140
        %v1145 = vmul.f32 %v1094, %v1124
        %v1146 = vmul.f32 %v1095, %v1134
        %v1147 = vmul.f32 %v1096, %v1144
        %v1149 = vperm.slane %v1080, 0
        %v1151 = vmul.f32 %v1145, %v1149
        %v1152 = vmul.f32 %v1146, %v1149
        %v1153 = vmul.f32 %v1147, %v1149
        %v1155 = vperm.slane %v1081, 0
        %v1157 = vadd.f32 %v1151, %v1155
        %v1158 = vadd.f32 %v1152, %v1155
        %v1159 = vadd.f32 %v1153, %v1155
        %v1160 = vpack.c.bf16 %v1158, %v1157
        %v1161 = vpack.c.bf16 %v1159, %v1159
        %v1162 = vld [vmem:[%s10] sm:$0xf]
        %v1163 = vld [vmem:[%s10 + $0x4] sm:$0xf]
        %v1164 = vld [vmem:[%s10 + $0x8] sm:$0xf]
        %v1165 = vld [vmem:[%s10 + $0xc] sm:$0xf]
        %v1166 = vld [vmem:[%s11] sm:$0x1]
        %v1168 = vperm.slane %v1166, 0
        %v1174 = vunpack.c.l.b16 %v1162
        %v1175 = vunpack.c.l.b16 %v1163
        %v1176 = vunpack.c.l.b16 %v1164
        %v1177 = vunpack.c.l.b16 %v1165
        %v1178 = vpack.c.b16 %v1175, %v1174
        %v1179 = vpack.c.b16 %v1177, %v1176
        %v1183 = vsel %vm701, %v1160, 0
        %v1186 = vsel %vm701, %v1161, 0
        %1188 = vmatpush.bf16.msra.mxu0 0
        %1189 = vmatpush.bf16.msra.mxu0 0
        %1190 = vmatpush.bf16.msra.mxu0 0
        %1191 = vmatpush.bf16.msra.mxu0 0
        %1192 = vmatpush.bf16.msra.mxu0 0
        %1193 = vmatpush.bf16.msra.mxu0 0
        %1194 = vmatpush.bf16.msra.mxu0 %v1179
        %1195 = vmatpush.bf16.msra.mxu0 %v1178
        %1196 = vmatmul.bf16.gmra.mxu0 %v1183
        %v1197 = vpop.f32.mrf.mxu0
        %v1198 = vadd.f32 %v1168, %v1197
        %v1199 = vpop.f32.mrf.mxu0
        %v1200 = vadd.f32 %v1168, %v1199
        %1201 = vmatmul.bf16.gmra.mxu0 %v1186
        %v1202 = vpop.f32.mrf.mxu0
        %v1203 = vadd.f32 %v1168, %v1202
        %v1204 = vpop.f32.mrf.mxu0
        %1205 = vdwg.mxu0
        %v1206 = vmax.f32 %v1198, 0.0
        %v1207 = vmax.f32 %v1200, 0.0
        %v1208 = vmax.f32 %v1203, 0.0
        %v1209 = vpack.c.bf16 %v1207, %v1206
        %v1210 = vpack.c.bf16 %v1208, %v1208
        %v1211 = vld [vmem:[%s12] sm:$0xf]
        %v1212 = vld [vmem:[%s12 + $0x4] sm:$0xf]
        %v1213 = vld [vmem:[%s12 + $0x8] sm:$0xf]
        %v1214 = vld [vmem:[%s12 + $0xc] sm:$0xf]
        %v1215 = vld [vmem:[%s12 + $0x10] sm:$0xf]
        %v1216 = vld [vmem:[%s12 + $0x14] sm:$0xf]
        %v1217 = vld [vmem:[%s12 + $0x18] sm:$0xf]
        %v1218 = vld [vmem:[%s12 + $0x1c] sm:$0xf]
        %v1227 = vunpack.c.l.b16 %v1211
        %v1228 = vunpack.c.l.b16 %v1212
        %v1229 = vunpack.c.l.b16 %v1213
        %v1230 = vunpack.c.l.b16 %v1214
        %v1231 = vunpack.c.l.b16 %v1215
        %v1232 = vunpack.c.l.b16 %v1216
        %v1233 = vunpack.c.l.b16 %v1217
        %v1234 = vunpack.c.l.b16 %v1218
        %v1235 = vpack.c.b16 %v1228, %v1227
        %v1236 = vpack.c.b16 %v1230, %v1229
        %v1237 = vpack.c.b16 %v1232, %v1231
        %v1238 = vpack.c.b16 %v1234, %v1233
        %vm1243 = vcmask 523264
        %v1245 = vsel %vm1243, %v1209, 0
        %v1248 = vsel %vm1243, %v1210, 0
        %1250 = vmatpush.bf16.msra.mxu0 0
        %1251 = vmatpush.bf16.msra.mxu0 0
        %1252 = vmatpush.bf16.msra.mxu0 0
        %1253 = vmatpush.bf16.msra.mxu0 0
        %1254 = vmatpush.bf16.msra.mxu0 %v1238
        %1255 = vmatpush.bf16.msra.mxu0 %v1237
        %1256 = vmatpush.bf16.msra.mxu0 %v1236
        %1257 = vmatpush.bf16.msra.mxu0 %v1235
        %1258 = vmatmul.bf16.gmra.mxu0 %v1245
        %v1259 = vpop.f32.mrf.mxu0
        %v1260 = vadd.f32 0.0, %v1259
        %v1261 = vpop.f32.mrf.mxu0
        %v1262 = vadd.f32 0.0, %v1261
        %1263 = vmatmul.bf16.gmra.mxu0 %v1248
        %v1264 = vpop.f32.mrf.mxu0
        %v1265 = vadd.f32 0.0, %v1264
        %v1266 = vpop.f32.mrf.mxu0
        %1267 = vdwg.mxu0
        %v1268 = vadd.f32 %v1077, %v1260
        %v1269 = vadd.f32 %v1078, %v1262
        %v1270 = vadd.f32 %v1079, %v1265
        %v1271 = vld [vmem:[%s13] sm:$0x1]
        %v1273 = vperm.slane %v1271, 0
        %v1275 = vadd.f32 %v1268, %v1273
        %v1276 = vadd.f32 %v1269, %v1273
        %v1277 = vadd.f32 %v1270, %v1273
        %v1278 = vpack.c.bf16 %v1275, %v1275
        %v1279 = vpack.c.bf16 %v1276, %v1276
        %v1280 = vpack.c.bf16 %v1277, %v1277
        %vm1281 = vcmask 257024
        %1282 = vst.msk [vmem:[%s691] sm:$0xf] %vm1281, %v1278
        %1283 = vst.msk [vmem:[%s691 + $0x4] sm:$0xf] %vm1281, %v1279
        %1284 = vst.msk [vmem:[%s691 + $0x8] sm:$0xf] %vm1281, %v1280
        %s1285 = sand.u32 %s384, 1
        %s1286 = scalar_lea.sflag [#allocation5], %s1285
        %s1287 = sand.u32 %s384, 1
        %s1288 = smul.addr %s1287, 12
        %s1289 = scalar_lea.vmem [#allocation17], %s1288
        // Predicated region
        $region158: #{tpu_custom_call.1} parent=120 // pred_check
          %p1290 = pneg %p394
        $region159: #{tpu_custom_call.1} parent=120 // pred_check_branch
          %1292 = sbr.rel (%p1290) target = $region161
        $region160: #{tpu_custom_call.1} parent=120 // pred_region
          %1294 = vsyncadd %s1286, 0
          %s1295 = smul.addr %s35, 4
          %s1296 = scalar_lea.hbm %s16, %s1295
          %s1297 = sshll.u32 %s1289, 4
          %s1298 = int_to_ptr.vmem [resolvable:$true] %s1297
          %s1299 = sshll.u32 %s1296, 4
          %s1300 = int_to_ptr.hbm [resolvable:$true] %s1299
          %1305 = dma.vmem_to_hbm [thread:$0]  %s1298, 192, %s1300, %s1286, 64, 128, 4
        $region161: #{tpu_custom_call.1} parent=120 // pred_fallthru
          _
      $region121: #{tpu_custom_call.1} parent=5 // pred_fallthru
        _
      %p1306 = scmp.le.s32.totalorder 2, %s30
      // Predicated region
      $region162: #{tpu_custom_call.1} parent=5 // pred_check
        %p1307 = pneg %p1306
      $region163: #{tpu_custom_call.1} parent=5 // pred_check_branch
        %1309 = sbr.rel (%p1307) target = $region165
      $region164: #{tpu_custom_call.1} parent=5 // pred_region
        %s1310 = ssub.s32 %s30, 2
        // Predicated region
        $region166: #{tpu_custom_call.1} parent=164 // pred_check
          %p1311 = pneg %p400
        $region167: #{tpu_custom_call.1} parent=164 // pred_check_branch
          %1313 = sbr.rel (%p1311) target = $region169
        $region168: #{tpu_custom_call.1} parent=164 // pred_region
          %s1314 = sand.u32 %s385, 1
          %s1315 = scalar_lea.sflag [#allocation5], %s1314
          %s1316 = sand.u32 %s385, 1
          %s1317 = smul.addr %s1316, 12
          %s1318 = scalar_lea.vmem [#allocation17], %s1317
          %1320 = dma.done %s1315, 192
        $region169: #{tpu_custom_call.1} parent=164 // pred_fallthru
          _
      $region165: #{tpu_custom_call.1} parent=5 // pred_fallthru
        _
    $region6: #{tpu_custom_call.1} parent=1 // loop_footer
      %s34 = sadd.s32 1, %s30
    $region7: #{tpu_custom_call.1} parent=1 // loop_footer_branch
      %29 = sbr.rel target = $region3
    $region8: #{tpu_custom_call.1} parent=1 // loop_exit
      _
    %1321 = vsyncpa [#allocation4], 1
    %s1322 = scalar_lea.sflag [#allocation4], 1
    %1323 = vsyncpa %s1322, 1
    %1324 = vsyncpa [#allocation7], 1
    %1325 = vsyncpa [#allocation10], 1
    %1326 = vsyncpa [#allocation13], 1
    %1327 = vsyncpa [#allocation16], 1
    %1328 = vsyncpa [#allocation5], 1
    %s1329 = scalar_lea.sflag [#allocation5], 1
    %1330 = vsyncpa %s1329, 1

// kernel: tpu_custom_call.1
$region0: #{tpu_custom_call.1}
  #allocation0 [shape = 'u32[]', space=smem, size = 0x4, offset = 0x4, fixed_abs, tag = 'smem constant byte address 0x4 - core index']
  #allocation1 [shape = 'u32[72,128]{1,0:T(1,128)}', space=vmem, size = 0x9000, scoped, tag = 'internal scratch']
  %s0 = inlined_call_operand.vmem [shape: bf16[3,16,32], index: 0, kind: input, shape index: {}]
  %s1 = inlined_call_operand.vmem [shape: bf16[32,96], index: 1, kind: input, shape index: {}]
  %s2 = inlined_call_operand.hbm [shape: f32[1,96], index: 2, kind: input, shape index: {}]
  %s3 = inlined_call_operand.hbm [shape: bf16[32,32], index: 3, kind: input, shape index: {}]
  %s4 = inlined_call_operand.hbm [shape: f32[1,32], index: 4, kind: input, shape index: {}]
  %s5 = inlined_call_operand.hbm [shape: bf16[32,32], index: 5, kind: input, shape index: {}]
  %s6 = inlined_call_operand.hbm [shape: f32[1,32], index: 6, kind: input, shape index: {}]
  %s7 = inlined_call_operand.hbm [shape: f32[1,32], index: 7, kind: input, shape index: {}]
  %s8 = inlined_call_operand.hbm [shape: f32[1,32], index: 8, kind: input, shape index: {}]
  %s9 = inlined_call_operand.hbm [shape: f32[1,32], index: 9, kind: input, shape index: {}]
  %s10 = inlined_call_operand.vmem [shape: bf16[32,64], index: 10, kind: input, shape index: {}]
  %s11 = inlined_call_operand.vmem [shape: f32[1,64], index: 11, kind: input, shape index: {}]
  %s12 = inlined_call_operand.vmem [shape: bf16[64,32], index: 12, kind: input, shape index: {}]
  %s13 = inlined_call_operand.vmem [shape: f32[1,32], index: 13, kind: input, shape index: {}]
  %s14 = inlined_call_operand.vmem [shape: f32[1,32], index: 14, kind: input, shape index: {}]
  %s15 = inlined_call_operand.vmem [shape: f32[1,32], index: 15, kind: input, shape index: {}]
  %s16 = inlined_call_operand.hbm [shape: bf16[3,16,32], index: 16, kind: output, shape index: {}]
  %s17 = sld [smem:[#allocation0]]
  $region170: #{tpu_custom_call.1} parent=0
    _
  %s19 = ssub.s32 1, %s17
  %s20 = scalar_select 0, %s19, %s17
  $region1: #{tpu_custom_call.1} parent=0
    #allocation2 [shape = 'u8[12288]{0}', space=vmem, size = 0x3000, scoped, tag = 'input window, operand 0']
    #allocation3 [shape = 'u8[512]{0}', space=vmem, size = 0x400, scoped, tag = 'input window, operand 2, single buffered']
    #allocation4 [shape = 's32[2]{0}', space=sflag, size = 0x8, scoped, tag = 'scoped memory for tpu_custom_call.1']
    #allocation5 [shape = 's32[2]{0}', space=sflag, size = 0x8, scoped, tag = 'scoped memory for tpu_custom_call.1']
    #allocation6 [shape = 'u8[8192]{0}', space=vmem, size = 0x2000, scoped, tag = 'input window, operand 3, single buffered']
    #allocation7 [shape = 's32[1]{0}', space=sflag, size = 0x4, scoped, tag = 'scoped memory for tpu_custom_call.1']
    #allocation8 [shape = 'u8[512]{0}', space=vmem, size = 0x400, scoped, tag = 'input window, operand 4, single buffered']
    #allocation9 [shape = 'u8[8192]{0}', space=vmem, size = 0x2000, scoped, tag = 'input window, operand 5, single buffered']
    #allocation10 [shape = 's32[1]{0}', space=sflag, size = 0x4, scoped, tag = 'scoped memory for tpu_custom_call.1']
    #allocation11 [shape = 'u8[512]{0}', space=vmem, size = 0x400, scoped, tag = 'input window, operand 6, single buffered']
    #allocation12 [shape = 'u8[512]{0}', space=vmem, size = 0x400, scoped, tag = 'input window, operand 7, single buffered']
    #allocation13 [shape = 's32[1]{0}', space=sflag, size = 0x4, scoped, tag = 'scoped memory for tpu_custom_call.1']
    #allocation14 [shape = 'u8[512]{0}', space=vmem, size = 0x400, scoped, tag = 'input window, operand 8, single buffered']
    #allocation15 [shape = 'u8[512]{0}', space=vmem, size = 0x400, scoped, tag = 'input window, operand 9, single buffered']
    #allocation16 [shape = 's32[1]{0}', space=sflag, size = 0x4, scoped, tag = 'scoped memory for tpu_custom_call.1']
    #allocation17 [shape = 'u8[12288]{0}', space=vmem, size = 0x3000, scoped, tag = 'output window, operand 0']
    %21 = vsyncpa [#allocation4], 0
    %22 = vsyncpa [#allocation7], 0
    %23 = vsyncpa [#allocation10], 0
    %24 = vsyncpa [#allocation13], 0
    %25 = vsyncpa [#allocation16], 0
    %26 = vsyncpa [#allocation5], 0
    %s27 = scalar_lea.sflag [#allocation5], 1
    %28 = vsyncpa %s27, 0
    loop: start=0, step=1, limit=4
    $region2: #{tpu_custom_call.1} parent=1 // loop_pre_header
      _
    $region3: #{tpu_custom_call.1} parent=1 // loop_header
      %s30 = sphi 0, %s34
      %p31 = scmp.ge.s32.totalorder %s30, 4
      %s40 = sphi 0, %s42
      %s43 = sphi 0, %s40
      %s44 = sphi 0, %s43
      %s60 = sphi 0, %s44
      %s64 = sphi 0, %s64
      %s66 = sphi 0, %s64
      %s67 = sphi 0, %s66
      %s81 = sphi 0, %s67
      %s85 = sphi 0, %s85
      %s87 = sphi 0, %s85
      %s88 = sphi 0, %s87
      %s102 = sphi 0, %s88
      %s106 = sphi 0, %s106
      %s108 = sphi 0, %s106
      %s109 = sphi 0, %s108
      %s123 = sphi 0, %s109
      %s127 = sphi 0, %s127
      %s129 = sphi 0, %s127
      %s130 = sphi 0, %s129
      %s144 = sphi 0, %s130
      %s148 = sphi 0, %s148
      %s150 = sphi 0, %s148
      %s151 = sphi 0, %s150
      %s165 = sphi 0, %s151
      %s169 = sphi 0, %s169
      %s171 = sphi 0, %s169
      %s172 = sphi 0, %s171
      %s186 = sphi 0, %s172
      %s190 = sphi 0, %s190
      %s192 = sphi 0, %s190
      %s193 = sphi 0, %s192
      %s207 = sphi 0, %s193
      %s211 = sphi 0, %s211
      %s213 = sphi 0, %s211
      %s214 = sphi 0, %s213
      %s228 = sphi 0, %s214
      %s232 = sphi 0, %s232
      %s234 = sphi 0, %s232
      %s235 = sphi 0, %s234
      %s249 = sphi 0, %s235
      %s253 = sphi 0, %s253
      %s255 = sphi 0, %s253
      %s256 = sphi 0, %s255
      %s270 = sphi 0, %s256
      %s274 = sphi 0, %s274
      %s276 = sphi 0, %s274
      %s277 = sphi 0, %s276
      %s291 = sphi 0, %s277
      %s295 = sphi 0, %s295
      %s297 = sphi 0, %s295
      %s298 = sphi 0, %s297
      %s312 = sphi 0, %s298
      %s316 = sphi 0, %s316
      %s318 = sphi 0, %s316
      %s319 = sphi 0, %s318
      %s333 = sphi 0, %s319
      %s337 = sphi 0, %s337
      %s339 = sphi 0, %s337
      %s340 = sphi 0, %s339
      %s354 = sphi 0, %s340
      %s358 = sphi 0, %s358
      %s360 = sphi 0, %s358
      %s361 = sphi 0, %s360
      %s375 = sphi 0, %s361
      %s381 = sphi 0, %s383
      %s384 = sphi 0, %s381
      %s385 = sphi 0, %s384
      %s401 = sphi 0, %s385
    $region4: #{tpu_custom_call.1} parent=1 // loop_header_branch
      %33 = sbr.rel (%p31) target = $region8
    $region5: #{tpu_custom_call.1} parent=1 // loop_body
      %s35 = ssub.s32 %s30, 1
      %s36 = ssub.s32 %s30, 2
      %s37 = sadd.s32 %s30, 1
      %s38 = ssub.s32 %s30, %s37
      %p39 = scmp.eq.s32.totalorder %s38, 0
      %s41 = sadd.s32 %s40, 1
      %s42 = scalar_select %p39, %s40, %s41
      %p45 = pneg %p39
      %p46 = scmp.eq.s32.totalorder %s30, 1
      %p47 = por %p45, %p46
      %p48 = scmp.ne.s32.totalorder %s40, %s43
      %p49 = scmp.eq.s32.totalorder %s30, 0
      %p50 = por %p48, %p49
      %p51 = scmp.ne.s32.totalorder %s40, %s43
      %p52 = scmp.eq.s32.totalorder %s35, 1
      %p53 = por %p51, %p52
      %p54 = scmp.ne.s32.totalorder %s43, %s44
      %p55 = scmp.eq.s32.totalorder %s35, 0
      %p56 = por %p54, %p55
      %p57 = scmp.ne.s32.totalorder %s43, %s44
      %p58 = scmp.eq.s32.totalorder %s36, 1
      %p59 = por %p57, %p58
      %p61 = scmp.ne.s32.totalorder %s44, %s60
      %p62 = scmp.eq.s32.totalorder %s36, 0
      %p63 = por %p61, %p62
      %s65 = sadd.s32 %s64, 1
      %p68 = scmp.eq.s32.totalorder %s30, 1
      %p69 = scmp.ne.s32.totalorder %s64, %s66
      %p70 = scmp.eq.s32.totalorder %s30, 0
      %p71 = por %p69, %p70
      %p72 = scmp.ne.s32.totalorder %s64, %s66
      %p73 = scmp.eq.s32.totalorder %s35, 1
      %p74 = por %p72, %p73
      %p75 = scmp.ne.s32.totalorder %s66, %s67
      %p76 = scmp.eq.s32.totalorder %s35, 0
      %p77 = por %p75, %p76
      %p78 = scmp.ne.s32.totalorder %s66, %s67
      %p79 = scmp.eq.s32.totalorder %s36, 1
      %p80 = por %p78, %p79
      %p82 = scmp.ne.s32.totalorder %s67, %s81
      %p83 = scmp.eq.s32.totalorder %s36, 0
      %p84 = por %p82, %p83
      %s86 = sadd.s32 %s85, 1
      %p89 = scmp.eq.s32.totalorder %s30, 1
      %p90 = scmp.ne.s32.totalorder %s85, %s87
      %p91 = scmp.eq.s32.totalorder %s30, 0
      %p92 = por %p90, %p91
      %p93 = scmp.ne.s32.totalorder %s85, %s87
      %p94 = scmp.eq.s32.totalorder %s35, 1
      %p95 = por %p93, %p94
      %p96 = scmp.ne.s32.totalorder %s87, %s88
      %p97 = scmp.eq.s32.totalorder %s35, 0
      %p98 = por %p96, %p97
      %p99 = scmp.ne.s32.totalorder %s87, %s88
      %p100 = scmp.eq.s32.totalorder %s36, 1
      %p101 = por %p99, %p100
      %p103 = scmp.ne.s32.totalorder %s88, %s102
      %p104 = scmp.eq.s32.totalorder %s36, 0
      %p105 = por %p103, %p104
      %s107 = sadd.s32 %s106, 1
      %p110 = scmp.eq.s32.totalorder %s30, 1
      %p111 = scmp.ne.s32.totalorder %s106, %s108
      %p112 = scmp.eq.s32.totalorder %s30, 0
      %p113 = por %p111, %p112
      %p114 = scmp.ne.s32.totalorder %s106, %s108
      %p115 = scmp.eq.s32.totalorder %s35, 1
      %p116 = por %p114, %p115
      %p117 = scmp.ne.s32.totalorder %s108, %s109
      %p118 = scmp.eq.s32.totalorder %s35, 0
      %p119 = por %p117, %p118
      %p120 = scmp.ne.s32.totalorder %s108, %s109
      %p121 = scmp.eq.s32.totalorder %s36, 1
      %p122 = por %p120, %p121
      %p124 = scmp.ne.s32.totalorder %s109, %s123
      %p125 = scmp.eq.s32.totalorder %s36, 0
      %p126 = por %p124, %p125
      %s128 = sadd.s32 %s127, 1
      %p131 = scmp.eq.s32.totalorder %s30, 1
      %p132 = scmp.ne.s32.totalorder %s127, %s129
      %p133 = scmp.eq.s32.totalorder %s30, 0
      %p134 = por %p132, %p133
      %p135 = scmp.ne.s32.totalorder %s127, %s129
      %p136 = scmp.eq.s32.totalorder %s35, 1
      %p137 = por %p135, %p136
      %p138 = scmp.ne.s32.totalorder %s129, %s130
      %p139 = scmp.eq.s32.totalorder %s35, 0
      %p140 = por %p138, %p139
      %p141 = scmp.ne.s32.totalorder %s129, %s130
      %p142 = scmp.eq.s32.totalorder %s36, 1
      %p143 = por %p141, %p142
      %p145 = scmp.ne.s32.totalorder %s130, %s144
      %p146 = scmp.eq.s32.totalorder %s36, 0
      %p147 = por %p145, %p146
      %s149 = sadd.s32 %s148, 1
      %p152 = scmp.eq.s32.totalorder %s30, 1
      %p153 = scmp.ne.s32.totalorder %s148, %s150
      %p154 = scmp.eq.s32.totalorder %s30, 0
      %p155 = por %p153, %p154
      %p156 = scmp.ne.s32.totalorder %s148, %s150
      %p157 = scmp.eq.s32.totalorder %s35, 1
      %p158 = por %p156, %p157
      %p159 = scmp.ne.s32.totalorder %s150, %s151
      %p160 = scmp.eq.s32.totalorder %s35, 0
      %p161 = por %p159, %p160
      %p162 = scmp.ne.s32.totalorder %s150, %s151
      %p163 = scmp.eq.s32.totalorder %s36, 1
      %p164 = por %p162, %p163
      %p166 = scmp.ne.s32.totalorder %s151, %s165
      %p167 = scmp.eq.s32.totalorder %s36, 0
      %p168 = por %p166, %p167
      %s170 = sadd.s32 %s169, 1
      %p173 = scmp.eq.s32.totalorder %s30, 1
      %p174 = scmp.ne.s32.totalorder %s169, %s171
      %p175 = scmp.eq.s32.totalorder %s30, 0
      %p176 = por %p174, %p175
      %p177 = scmp.ne.s32.totalorder %s169, %s171
      %p178 = scmp.eq.s32.totalorder %s35, 1
      %p179 = por %p177, %p178
      %p180 = scmp.ne.s32.totalorder %s171, %s172
      %p181 = scmp.eq.s32.totalorder %s35, 0
      %p182 = por %p180, %p181
      %p183 = scmp.ne.s32.totalorder %s171, %s172
      %p184 = scmp.eq.s32.totalorder %s36, 1
      %p185 = por %p183, %p184
      %p187 = scmp.ne.s32.totalorder %s172, %s186
      %p188 = scmp.eq.s32.totalorder %s36, 0
      %p189 = por %p187, %p188
      %s191 = sadd.s32 %s190, 1
      %p194 = scmp.eq.s32.totalorder %s30, 1
      %p195 = scmp.ne.s32.totalorder %s190, %s192
      %p196 = scmp.eq.s32.totalorder %s30, 0
      %p197 = por %p195, %p196
      %p198 = scmp.ne.s32.totalorder %s190, %s192
      %p199 = scmp.eq.s32.totalorder %s35, 1
      %p200 = por %p198, %p199
      %p201 = scmp.ne.s32.totalorder %s192, %s193
      %p202 = scmp.eq.s32.totalorder %s35, 0
      %p203 = por %p201, %p202
      %p204 = scmp.ne.s32.totalorder %s192, %s193
      %p205 = scmp.eq.s32.totalorder %s36, 1
      %p206 = por %p204, %p205
      %p208 = scmp.ne.s32.totalorder %s193, %s207
      %p209 = scmp.eq.s32.totalorder %s36, 0
      %p210 = por %p208, %p209
      %s212 = sadd.s32 %s211, 1
      %p215 = scmp.eq.s32.totalorder %s30, 1
      %p216 = scmp.ne.s32.totalorder %s211, %s213
      %p217 = scmp.eq.s32.totalorder %s30, 0
      %p218 = por %p216, %p217
      %p219 = scmp.ne.s32.totalorder %s211, %s213
      %p220 = scmp.eq.s32.totalorder %s35, 1
      %p221 = por %p219, %p220
      %p222 = scmp.ne.s32.totalorder %s213, %s214
      %p223 = scmp.eq.s32.totalorder %s35, 0
      %p224 = por %p222, %p223
      %p225 = scmp.ne.s32.totalorder %s213, %s214
      %p226 = scmp.eq.s32.totalorder %s36, 1
      %p227 = por %p225, %p226
      %p229 = scmp.ne.s32.totalorder %s214, %s228
      %p230 = scmp.eq.s32.totalorder %s36, 0
      %p231 = por %p229, %p230
      %s233 = sadd.s32 %s232, 1
      %p236 = scmp.eq.s32.totalorder %s30, 1
      %p237 = scmp.ne.s32.totalorder %s232, %s234
      %p238 = scmp.eq.s32.totalorder %s30, 0
      %p239 = por %p237, %p238
      %p240 = scmp.ne.s32.totalorder %s232, %s234
      %p241 = scmp.eq.s32.totalorder %s35, 1
      %p242 = por %p240, %p241
      %p243 = scmp.ne.s32.totalorder %s234, %s235
      %p244 = scmp.eq.s32.totalorder %s35, 0
      %p245 = por %p243, %p244
      %p246 = scmp.ne.s32.totalorder %s234, %s235
      %p247 = scmp.eq.s32.totalorder %s36, 1
      %p248 = por %p246, %p247
      %p250 = scmp.ne.s32.totalorder %s235, %s249
      %p251 = scmp.eq.s32.totalorder %s36, 0
      %p252 = por %p250, %p251
      %s254 = sadd.s32 %s253, 1
      %p257 = scmp.eq.s32.totalorder %s30, 1
      %p258 = scmp.ne.s32.totalorder %s253, %s255
      %p259 = scmp.eq.s32.totalorder %s30, 0
      %p260 = por %p258, %p259
      %p261 = scmp.ne.s32.totalorder %s253, %s255
      %p262 = scmp.eq.s32.totalorder %s35, 1
      %p263 = por %p261, %p262
      %p264 = scmp.ne.s32.totalorder %s255, %s256
      %p265 = scmp.eq.s32.totalorder %s35, 0
      %p266 = por %p264, %p265
      %p267 = scmp.ne.s32.totalorder %s255, %s256
      %p268 = scmp.eq.s32.totalorder %s36, 1
      %p269 = por %p267, %p268
      %p271 = scmp.ne.s32.totalorder %s256, %s270
      %p272 = scmp.eq.s32.totalorder %s36, 0
      %p273 = por %p271, %p272
      %s275 = sadd.s32 %s274, 1
      %p278 = scmp.eq.s32.totalorder %s30, 1
      %p279 = scmp.ne.s32.totalorder %s274, %s276
      %p280 = scmp.eq.s32.totalorder %s30, 0
      %p281 = por %p279, %p280
      %p282 = scmp.ne.s32.totalorder %s274, %s276
      %p283 = scmp.eq.s32.totalorder %s35, 1
      %p284 = por %p282, %p283
      %p285 = scmp.ne.s32.totalorder %s276, %s277
      %p286 = scmp.eq.s32.totalorder %s35, 0
      %p287 = por %p285, %p286
      %p288 = scmp.ne.s32.totalorder %s276, %s277
      %p289 = scmp.eq.s32.totalorder %s36, 1
      %p290 = por %p288, %p289
      %p292 = scmp.ne.s32.totalorder %s277, %s291
      %p293 = scmp.eq.s32.totalorder %s36, 0
      %p294 = por %p292, %p293
      %s296 = sadd.s32 %s295, 1
      %p299 = scmp.eq.s32.totalorder %s30, 1
      %p300 = scmp.ne.s32.totalorder %s295, %s297
      %p301 = scmp.eq.s32.totalorder %s30, 0
      %p302 = por %p300, %p301
      %p303 = scmp.ne.s32.totalorder %s295, %s297
      %p304 = scmp.eq.s32.totalorder %s35, 1
      %p305 = por %p303, %p304
      %p306 = scmp.ne.s32.totalorder %s297, %s298
      %p307 = scmp.eq.s32.totalorder %s35, 0
      %p308 = por %p306, %p307
      %p309 = scmp.ne.s32.totalorder %s297, %s298
      %p310 = scmp.eq.s32.totalorder %s36, 1
      %p311 = por %p309, %p310
      %p313 = scmp.ne.s32.totalorder %s298, %s312
      %p314 = scmp.eq.s32.totalorder %s36, 0
      %p315 = por %p313, %p314
      %s317 = sadd.s32 %s316, 1
      %p320 = scmp.eq.s32.totalorder %s30, 1
      %p321 = scmp.ne.s32.totalorder %s316, %s318
      %p322 = scmp.eq.s32.totalorder %s30, 0
      %p323 = por %p321, %p322
      %p324 = scmp.ne.s32.totalorder %s316, %s318
      %p325 = scmp.eq.s32.totalorder %s35, 1
      %p326 = por %p324, %p325
      %p327 = scmp.ne.s32.totalorder %s318, %s319
      %p328 = scmp.eq.s32.totalorder %s35, 0
      %p329 = por %p327, %p328
      %p330 = scmp.ne.s32.totalorder %s318, %s319
      %p331 = scmp.eq.s32.totalorder %s36, 1
      %p332 = por %p330, %p331
      %p334 = scmp.ne.s32.totalorder %s319, %s333
      %p335 = scmp.eq.s32.totalorder %s36, 0
      %p336 = por %p334, %p335
      %s338 = sadd.s32 %s337, 1
      %p341 = scmp.eq.s32.totalorder %s30, 1
      %p342 = scmp.ne.s32.totalorder %s337, %s339
      %p343 = scmp.eq.s32.totalorder %s30, 0
      %p344 = por %p342, %p343
      %p345 = scmp.ne.s32.totalorder %s337, %s339
      %p346 = scmp.eq.s32.totalorder %s35, 1
      %p347 = por %p345, %p346
      %p348 = scmp.ne.s32.totalorder %s339, %s340
      %p349 = scmp.eq.s32.totalorder %s35, 0
      %p350 = por %p348, %p349
      %p351 = scmp.ne.s32.totalorder %s339, %s340
      %p352 = scmp.eq.s32.totalorder %s36, 1
      %p353 = por %p351, %p352
      %p355 = scmp.ne.s32.totalorder %s340, %s354
      %p356 = scmp.eq.s32.totalorder %s36, 0
      %p357 = por %p355, %p356
      %s359 = sadd.s32 %s358, 1
      %p362 = scmp.eq.s32.totalorder %s30, 1
      %p363 = scmp.ne.s32.totalorder %s358, %s360
      %p364 = scmp.eq.s32.totalorder %s30, 0
      %p365 = por %p363, %p364
      %p366 = scmp.ne.s32.totalorder %s358, %s360
      %p367 = scmp.eq.s32.totalorder %s35, 1
      %p368 = por %p366, %p367
      %p369 = scmp.ne.s32.totalorder %s360, %s361
      %p370 = scmp.eq.s32.totalorder %s35, 0
      %p371 = por %p369, %p370
      %p372 = scmp.ne.s32.totalorder %s360, %s361
      %p373 = scmp.eq.s32.totalorder %s36, 1
      %p374 = por %p372, %p373
      %p376 = scmp.ne.s32.totalorder %s361, %s375
      %p377 = scmp.eq.s32.totalorder %s36, 0
      %p378 = por %p376, %p377
      %s379 = ssub.s32 %s30, %s37
      %p380 = scmp.eq.s32.totalorder %s379, 0
      %s382 = sadd.s32 %s381, 1
      %s383 = scalar_select %p380, %s381, %s382
      %p386 = pneg %p380
      %p387 = scmp.eq.s32.totalorder %s30, 1
      %p388 = por %p386, %p387
      %p389 = scmp.ne.s32.totalorder %s381, %s384
      %p390 = scmp.eq.s32.totalorder %s30, 0
      %p391 = por %p389, %p390
      %p392 = scmp.ne.s32.totalorder %s381, %s384
      %p393 = scmp.eq.s32.totalorder %s35, 1
      %p394 = por %p392, %p393
      %p395 = scmp.ne.s32.totalorder %s384, %s385
      %p396 = scmp.eq.s32.totalorder %s35, 0
      %p397 = por %p395, %p396
      %p398 = scmp.ne.s32.totalorder %s384, %s385
      %p399 = scmp.eq.s32.totalorder %s36, 1
      %p400 = por %p398, %p399
      %p402 = scmp.ne.s32.totalorder %s385, %s401
      %p403 = scmp.eq.s32.totalorder %s36, 0
      %p404 = por %p402, %p403
      %p405 = scmp.le.s32.totalorder 1, %s30
      %p406 = scmp.lt.s32.totalorder %s30, 3
      %p407 = pnand %p405, %p406
      %p408 = pneg %p407
      // Predicated region
      $region9: #{tpu_custom_call.1} parent=5 // pred_check
        _
      $region10: #{tpu_custom_call.1} parent=5 // pred_check_branch
        %410 = sbr.rel (%p407) target = $region12
      $region11: #{tpu_custom_call.1} parent=5 // pred_region
        %s411 = ssub.s32 %s30, 1
        // Predicated region
        $region13: #{tpu_custom_call.1} parent=11 // pred_check
          %p412 = pneg %p77
        $region14: #{tpu_custom_call.1} parent=11 // pred_check_branch
          %414 = sbr.rel (%p412) target = $region16
        $region15: #{tpu_custom_call.1} parent=11 // pred_region
          _
        $region16: #{tpu_custom_call.1} parent=11 // pred_fallthru
          _
        // Predicated region
        $region17: #{tpu_custom_call.1} parent=11 // pred_check
          %p415 = pneg %p98
        $region18: #{tpu_custom_call.1} parent=11 // pred_check_branch
          %417 = sbr.rel (%p415) target = $region20
        $region19: #{tpu_custom_call.1} parent=11 // pred_region
          %419 = vsyncadd [#allocation4], 0
          %s421 = sshll.u32 %s2, 4
          %s422 = int_to_ptr.hbm [resolvable:$true] %s421
          %s423 = sshll.u32 [#allocation3], 4
          %s424 = int_to_ptr.vmem [resolvable:$true] %s423
          %426 = dma.hbm_to_vmem [thread:$0]  %s422, 16, %s424, [#allocation4]
        $region20: #{tpu_custom_call.1} parent=11 // pred_fallthru
          _
        // Predicated region
        $region21: #{tpu_custom_call.1} parent=11 // pred_check
          %p427 = pneg %p119
        $region22: #{tpu_custom_call.1} parent=11 // pred_check_branch
          %429 = sbr.rel (%p427) target = $region24
        $region23: #{tpu_custom_call.1} parent=11 // pred_region
          %431 = vsyncadd [#allocation7], 0
          %s432 = sshll.u32 %s3, 4
          %s433 = int_to_ptr.hbm [resolvable:$true] %s432
          %s434 = sshll.u32 [#allocation6], 4
          %s435 = int_to_ptr.vmem [resolvable:$true] %s434
          %440 = dma.hbm_to_vmem [thread:$0]  %s433, 256, %s435, [#allocation7], 64, 64, 4
        $region24: #{tpu_custom_call.1} parent=11 // pred_fallthru
          _
        // Predicated region
        $region25: #{tpu_custom_call.1} parent=11 // pred_check
          %p441 = pneg %p140
        $region26: #{tpu_custom_call.1} parent=11 // pred_check_branch
          %443 = sbr.rel (%p441) target = $region28
        $region27: #{tpu_custom_call.1} parent=11 // pred_region
          %445 = vsyncadd [#allocation7], 0
          %s447 = sshll.u32 %s4, 4
          %s448 = int_to_ptr.hbm [resolvable:$true] %s447
          %s449 = sshll.u32 [#allocation8], 4
          %s450 = int_to_ptr.vmem [resolvable:$true] %s449
          %452 = dma.hbm_to_vmem [thread:$0]  %s448, 16, %s450, [#allocation7]
        $region28: #{tpu_custom_call.1} parent=11 // pred_fallthru
          _
        // Predicated region
        $region29: #{tpu_custom_call.1} parent=11 // pred_check
          %p453 = pneg %p161
        $region30: #{tpu_custom_call.1} parent=11 // pred_check_branch
          %455 = sbr.rel (%p453) target = $region32
        $region31: #{tpu_custom_call.1} parent=11 // pred_region
          %457 = vsyncadd [#allocation10], 0
          %s458 = sshll.u32 %s5, 4
          %s459 = int_to_ptr.hbm [resolvable:$true] %s458
          %s460 = sshll.u32 [#allocation9], 4
          %s461 = int_to_ptr.vmem [resolvable:$true] %s460
          %466 = dma.hbm_to_vmem [thread:$0]  %s459, 256, %s461, [#allocation10], 64, 64, 4
        $region32: #{tpu_custom_call.1} parent=11 // pred_fallthru
          _
        // Predicated region
        $region33: #{tpu_custom_call.1} parent=11 // pred_check
          %p467 = pneg %p182
        $region34: #{tpu_custom_call.1} parent=11 // pred_check_branch
          %469 = sbr.rel (%p467) target = $region36
        $region35: #{tpu_custom_call.1} parent=11 // pred_region
          %471 = vsyncadd [#allocation10], 0
          %s473 = sshll.u32 %s6, 4
          %s474 = int_to_ptr.hbm [resolvable:$true] %s473
          %s475 = sshll.u32 [#allocation11], 4
          %s476 = int_to_ptr.vmem [resolvable:$true] %s475
          %478 = dma.hbm_to_vmem [thread:$0]  %s474, 16, %s476, [#allocation10]
        $region36: #{tpu_custom_call.1} parent=11 // pred_fallthru
          _
        // Predicated region
        $region37: #{tpu_custom_call.1} parent=11 // pred_check
          %p479 = pneg %p203
        $region38: #{tpu_custom_call.1} parent=11 // pred_check_branch
          %481 = sbr.rel (%p479) target = $region40
        $region39: #{tpu_custom_call.1} parent=11 // pred_region
          %483 = vsyncadd [#allocation13], 0
          %s485 = sshll.u32 %s7, 4
          %s486 = int_to_ptr.hbm [resolvable:$true] %s485
          %s487 = sshll.u32 [#allocation12], 4
          %s488 = int_to_ptr.vmem [resolvable:$true] %s487
          %490 = dma.hbm_to_vmem [thread:$0]  %s486, 16, %s488, [#allocation13]
        $region40: #{tpu_custom_call.1} parent=11 // pred_fallthru
          _
        // Predicated region
        $region41: #{tpu_custom_call.1} parent=11 // pred_check
          %p491 = pneg %p224
        $region42: #{tpu_custom_call.1} parent=11 // pred_check_branch
          %493 = sbr.rel (%p491) target = $region44
        $region43: #{tpu_custom_call.1} parent=11 // pred_region
          %495 = vsyncadd [#allocation13], 0
          %s497 = sshll.u32 %s8, 4
          %s498 = int_to_ptr.hbm [resolvable:$true] %s497
          %s499 = sshll.u32 [#allocation14], 4
          %s500 = int_to_ptr.vmem [resolvable:$true] %s499
          %502 = dma.hbm_to_vmem [thread:$0]  %s498, 16, %s500, [#allocation13]
        $region44: #{tpu_custom_call.1} parent=11 // pred_fallthru
          _
        // Predicated region
        $region45: #{tpu_custom_call.1} parent=11 // pred_check
          %p503 = pneg %p245
        $region46: #{tpu_custom_call.1} parent=11 // pred_check_branch
          %505 = sbr.rel (%p503) target = $region48
        $region47: #{tpu_custom_call.1} parent=11 // pred_region
          %507 = vsyncadd [#allocation16], 0
          %s509 = sshll.u32 %s9, 4
          %s510 = int_to_ptr.hbm [resolvable:$true] %s509
          %s511 = sshll.u32 [#allocation15], 4
          %s512 = int_to_ptr.vmem [resolvable:$true] %s511
          %514 = dma.hbm_to_vmem [thread:$0]  %s510, 16, %s512, [#allocation16]
        $region48: #{tpu_custom_call.1} parent=11 // pred_fallthru
          _
        // Predicated region
        $region49: #{tpu_custom_call.1} parent=11 // pred_check
          %p515 = pneg %p266
        $region50: #{tpu_custom_call.1} parent=11 // pred_check_branch
          %517 = sbr.rel (%p515) target = $region52
        $region51: #{tpu_custom_call.1} parent=11 // pred_region
          _
        $region52: #{tpu_custom_call.1} parent=11 // pred_fallthru
          _
        // Predicated region
        $region53: #{tpu_custom_call.1} parent=11 // pred_check
          %p518 = pneg %p287
        $region54: #{tpu_custom_call.1} parent=11 // pred_check_branch
          %520 = sbr.rel (%p518) target = $region56
        $region55: #{tpu_custom_call.1} parent=11 // pred_region
          _
        $region56: #{tpu_custom_call.1} parent=11 // pred_fallthru
          _
        // Predicated region
        $region57: #{tpu_custom_call.1} parent=11 // pred_check
          %p521 = pneg %p308
        $region58: #{tpu_custom_call.1} parent=11 // pred_check_branch
          %523 = sbr.rel (%p521) target = $region60
        $region59: #{tpu_custom_call.1} parent=11 // pred_region
          _
        $region60: #{tpu_custom_call.1} parent=11 // pred_fallthru
          _
        // Predicated region
        $region61: #{tpu_custom_call.1} parent=11 // pred_check
          %p524 = pneg %p329
        $region62: #{tpu_custom_call.1} parent=11 // pred_check_branch
          %526 = sbr.rel (%p524) target = $region64
        $region63: #{tpu_custom_call.1} parent=11 // pred_region
          _
        $region64: #{tpu_custom_call.1} parent=11 // pred_fallthru
          _
        // Predicated region
        $region65: #{tpu_custom_call.1} parent=11 // pred_check
          %p527 = pneg %p350
        $region66: #{tpu_custom_call.1} parent=11 // pred_check_branch
          %529 = sbr.rel (%p527) target = $region68
        $region67: #{tpu_custom_call.1} parent=11 // pred_region
          _
        $region68: #{tpu_custom_call.1} parent=11 // pred_fallthru
          _
        // Predicated region
        $region69: #{tpu_custom_call.1} parent=11 // pred_check
          %p530 = pneg %p371
        $region70: #{tpu_custom_call.1} parent=11 // pred_check_branch
          %532 = sbr.rel (%p530) target = $region72
        $region71: #{tpu_custom_call.1} parent=11 // pred_region
          _
        $region72: #{tpu_custom_call.1} parent=11 // pred_fallthru
          _
      $region12: #{tpu_custom_call.1} parent=5 // pred_fallthru
        _
      %p533 = scmp.lt.s32.totalorder %s30, 2
      // Predicated region
      $region73: #{tpu_custom_call.1} parent=5 // pred_check
        %p534 = pneg %p533
      $region74: #{tpu_custom_call.1} parent=5 // pred_check_branch
        %536 = sbr.rel (%p534) target = $region76
      $region75: #{tpu_custom_call.1} parent=5 // pred_region
        // Predicated region
        $region77: #{tpu_custom_call.1} parent=75 // pred_check
          %p537 = pneg %p50
        $region78: #{tpu_custom_call.1} parent=75 // pred_check_branch
          %539 = sbr.rel (%p537) target = $region80
        $region79: #{tpu_custom_call.1} parent=75 // pred_region
          %s540 = sand.u32 %s40, 1
          %s541 = sand.u32 %s40, 1
          %s542 = smul.addr %s541, 12
          %s543 = scalar_lea.vmem [#allocation2], %s542
          %s544 = smul.addr %s30, 4
          %s545 = scalar_lea.vmem %s0, %s544
          // Predicated region
          $region81: #{tpu_custom_call.1} parent=79 // pred_check
            _
          $region82: #{tpu_custom_call.1} parent=79 // pred_check_branch
            %547 = sbr.rel (0) target = $region84
          $region83: #{tpu_custom_call.1} parent=79 // pred_region
            // Predicated region
            $region85: #{tpu_custom_call.1} parent=83 // pred_check
              _
            $region86: #{tpu_custom_call.1} parent=83 // pred_check_branch
              %549 = sbr.rel target = $region88
            $region87: #{tpu_custom_call.1} parent=83 // pred_region
              // Predicated region
              $region100: #{tpu_custom_call.1} parent=87 // pred_check
                _
              $region101: #{tpu_custom_call.1} parent=87 // pred_check_branch
                %569 = sbr.rel (0) target = $region103
              $region102: #{tpu_custom_call.1} parent=87 // pred_region
                loop: start=0, step=1, limit=1
                $region104: #{tpu_custom_call.1} parent=102 // loop_pre_header
                  _
                $region105: #{tpu_custom_call.1} parent=102 // loop_header
                  %s571 = sphi 0, %s575
                  %p572 = scmp.ge.s32.totalorder %s571, 1
                  %s576 = sphi %s545, %s545
                  %s577 = sphi %s543, %s543
                $region106: #{tpu_custom_call.1} parent=102 // loop_header_branch
                  %574 = sbr.rel (%p572) target = $region110
                $region107: #{tpu_custom_call.1} parent=102 // loop_body
                  _
                $region108: #{tpu_custom_call.1} parent=102 // loop_footer
                  %s575 = sadd.s32 1, %s571
                $region109: #{tpu_custom_call.1} parent=102 // loop_footer_branch
                  %570 = sbr.rel target = $region105
                $region110: #{tpu_custom_call.1} parent=102 // loop_exit
                  _
                %s579 = ssub.s32 16, 1
                loop: start=0, step=1, limit=1
                $region111: #{tpu_custom_call.1} parent=102 // loop_pre_header
                  _
                $region112: #{tpu_custom_call.1} parent=102 // loop_header
                  %s581 = sphi 0, %s585
                  %p582 = scmp.ge.s32.totalorder %s581, 1
                  %s586 = sphi %s545, %s545
                  %s587 = sphi %s543, %s543
                $region113: #{tpu_custom_call.1} parent=102 // loop_header_branch
                  %584 = sbr.rel (%p582) target = $region117
                $region114: #{tpu_custom_call.1} parent=102 // loop_body
                  %v588 = vld [vmem:[%s586] sm:%s579]
                  %589 = vst [vmem:[%s587] sm:%s579] %v588
                  %v590 = vld [vmem:[%s586 + $0x8] sm:%s579]
                  %591 = vst [vmem:[%s587 + $0x4] sm:%s579] %v590
                  %v592 = vld [vmem:[%s586 + $0x10] sm:%s579]
                  %593 = vst [vmem:[%s587 + $0x8] sm:%s579] %v592
                $region115: #{tpu_custom_call.1} parent=102 // loop_footer
                  %s585 = sadd.s32 1, %s581
                $region116: #{tpu_custom_call.1} parent=102 // loop_footer_branch
                  %580 = sbr.rel target = $region112
                $region117: #{tpu_custom_call.1} parent=102 // loop_exit
                  _
              $region103: #{tpu_custom_call.1} parent=87 // pred_fallthru
                _
            $region88: #{tpu_custom_call.1} parent=83 // pred_fallthru
              _
            // Predicated region
            $region89: #{tpu_custom_call.1} parent=83 // pred_check
              _
            $region90: #{tpu_custom_call.1} parent=83 // pred_check_branch
              %551 = sbr.rel (0) target = $region92
            $region91: #{tpu_custom_call.1} parent=83 // pred_region
              %s553 = ssub.s32 16, 1
              loop: start=0, step=1, limit=1
              $region93: #{tpu_custom_call.1} parent=91 // loop_pre_header
                _
              $region94: #{tpu_custom_call.1} parent=91 // loop_header
                %s555 = sphi 0, %s559
                %p556 = scmp.ge.s32.totalorder %s555, 1
                %s560 = sphi %s545, %s545
                %s561 = sphi %s543, %s543
              $region95: #{tpu_custom_call.1} parent=91 // loop_header_branch
                %558 = sbr.rel (%p556) target = $region99
              $region96: #{tpu_custom_call.1} parent=91 // loop_body
                %v562 = vld [vmem:[%s560] sm:%s553]
                %563 = vst [vmem:[%s561] sm:%s553] %v562
                %v564 = vld [vmem:[%s560 + $0x8] sm:%s553]
                %565 = vst [vmem:[%s561 + $0x4] sm:%s553] %v564
                %v566 = vld [vmem:[%s560 + $0x10] sm:%s553]
                %567 = vst [vmem:[%s561 + $0x8] sm:%s553] %v566
              $region97: #{tpu_custom_call.1} parent=91 // loop_footer
                %s559 = sadd.s32 1, %s555
              $region98: #{tpu_custom_call.1} parent=91 // loop_footer_branch
                %554 = sbr.rel target = $region94
              $region99: #{tpu_custom_call.1} parent=91 // loop_exit
                _
            $region92: #{tpu_custom_call.1} parent=83 // pred_fallthru
              _
          $region84: #{tpu_custom_call.1} parent=79 // pred_fallthru
            _
          %594 = vnop
        $region80: #{tpu_custom_call.1} parent=75 // pred_fallthru
          _
      $region76: #{tpu_custom_call.1} parent=5 // pred_fallthru
        _
      %p595 = scmp.le.s32.totalorder 1, %s30
      %p596 = scmp.lt.s32.totalorder %s30, 3
      %p597 = pnand %p595, %p596
      %p598 = pneg %p597
      // Predicated region
      $region118: #{tpu_custom_call.1} parent=5 // pred_check
        _
      $region119: #{tpu_custom_call.1} parent=5 // pred_check_branch
        %600 = sbr.rel (%p597) target = $region121
      $region120: #{tpu_custom_call.1} parent=5 // pred_region
        %s601 = ssub.s32 %s30, 1
        %s602 = sand.u32 %s43, 1
        %s603 = sand.u32 %s43, 1
        %s604 = smul.addr %s603, 12
        %s605 = scalar_lea.vmem [#allocation2], %s604
        // Predicated region
        $region122: #{tpu_custom_call.1} parent=120 // pred_check
          %p606 = pneg %p56
        $region123: #{tpu_custom_call.1} parent=120 // pred_check_branch
          %608 = sbr.rel (%p606) target = $region125
        $region124: #{tpu_custom_call.1} parent=120 // pred_region
          _
        $region125: #{tpu_custom_call.1} parent=120 // pred_fallthru
          _
        // Predicated region
        $region126: #{tpu_custom_call.1} parent=120 // pred_check
          %p609 = pneg %p98
        $region127: #{tpu_custom_call.1} parent=120 // pred_check_branch
          %611 = sbr.rel (%p609) target = $region129
        $region128: #{tpu_custom_call.1} parent=120 // pred_region
          %613 = dma.done [#allocation4], 16
        $region129: #{tpu_custom_call.1} parent=120 // pred_fallthru
          _
        // Predicated region
        $region130: #{tpu_custom_call.1} parent=120 // pred_check
          %p614 = pneg %p119
        $region131: #{tpu_custom_call.1} parent=120 // pred_check_branch
          %616 = sbr.rel (%p614) target = $region133
        $region132: #{tpu_custom_call.1} parent=120 // pred_region
          %618 = dma.done [#allocation7], 256
        $region133: #{tpu_custom_call.1} parent=120 // pred_fallthru
          _
        // Predicated region
        $region134: #{tpu_custom_call.1} parent=120 // pred_check
          %p619 = pneg %p140
        $region135: #{tpu_custom_call.1} parent=120 // pred_check_branch
          %621 = sbr.rel (%p619) target = $region137
        $region136: #{tpu_custom_call.1} parent=120 // pred_region
          %623 = dma.done [#allocation7], 16
        $region137: #{tpu_custom_call.1} parent=120 // pred_fallthru
          _
        // Predicated region
        $region138: #{tpu_custom_call.1} parent=120 // pred_check
          %p624 = pneg %p161
        $region139: #{tpu_custom_call.1} parent=120 // pred_check_branch
          %626 = sbr.rel (%p624) target = $region141
        $region140: #{tpu_custom_call.1} parent=120 // pred_region
          %628 = dma.done [#allocation10], 256
        $region141: #{tpu_custom_call.1} parent=120 // pred_fallthru
          _
        // Predicated region
        $region142: #{tpu_custom_call.1} parent=120 // pred_check
          %p629 = pneg %p182
        $region143: #{tpu_custom_call.1} parent=120 // pred_check_branch
          %631 = sbr.rel (%p629) target = $region145
        $region144: #{tpu_custom_call.1} parent=120 // pred_region
          %633 = dma.done [#allocation10], 16
        $region145: #{tpu_custom_call.1} parent=120 // pred_fallthru
          _
        // Predicated region
        $region146: #{tpu_custom_call.1} parent=120 // pred_check
          %p634 = pneg %p203
        $region147: #{tpu_custom_call.1} parent=120 // pred_check_branch
          %636 = sbr.rel (%p634) target = $region149
        $region148: #{tpu_custom_call.1} parent=120 // pred_region
          %638 = dma.done [#allocation13], 16
        $region149: #{tpu_custom_call.1} parent=120 // pred_fallthru
          _
        // Predicated region
        $region150: #{tpu_custom_call.1} parent=120 // pred_check
          %p639 = pneg %p224
        $region151: #{tpu_custom_call.1} parent=120 // pred_check_branch
          %641 = sbr.rel (%p639) target = $region153
        $region152: #{tpu_custom_call.1} parent=120 // pred_region
          %643 = dma.done [#allocation13], 16
        $region153: #{tpu_custom_call.1} parent=120 // pred_fallthru
          _
        // Predicated region
        $region154: #{tpu_custom_call.1} parent=120 // pred_check
          %p644 = pneg %p245
        $region155: #{tpu_custom_call.1} parent=120 // pred_check_branch
          %646 = sbr.rel (%p644) target = $region157
        $region156: #{tpu_custom_call.1} parent=120 // pred_region
          %648 = dma.done [#allocation16], 16
        $region157: #{tpu_custom_call.1} parent=120 // pred_fallthru
          _
        %s649 = sand.u32 %s43, 1
        %s650 = sand.u32 %s43, 1
        %s651 = smul.addr %s650, 12
        %s652 = scalar_lea.vmem [#allocation2], %s651
        %p653 = pneg %p56
        %p654 = pneg %p53
        %p655 = pneg %p77
        %p656 = pneg %p74
        %p657 = pneg %p98
        %p658 = pneg %p95
        %p659 = pneg %p119
        %p660 = pneg %p116
        %p661 = pneg %p140
        %p662 = pneg %p137
        %p663 = pneg %p161
        %p664 = pneg %p158
        %p665 = pneg %p182
        %p666 = pneg %p179
        %p667 = pneg %p203
        %p668 = pneg %p200
        %p669 = pneg %p224
        %p670 = pneg %p221
        %p671 = pneg %p245
        %p672 = pneg %p242
        %p673 = pneg %p266
        %p674 = pneg %p263
        %p675 = pneg %p287
        %p676 = pneg %p284
        %p677 = pneg %p308
        %p678 = pneg %p305
        %p679 = pneg %p329
        %p680 = pneg %p326
        %p681 = pneg %p350
        %p682 = pneg %p347
        %p683 = pneg %p371
        %p684 = pneg %p368
        %p685 = pneg %p397
        %p686 = pneg %p394
        %s687 = sand.u32 %s384, 1
        %s688 = scalar_lea.sflag [#allocation5], %s687
        %s689 = sand.u32 %s384, 1
        %s690 = smul.addr %s689, 12
        %s691 = scalar_lea.vmem [#allocation17], %s690
        %v693 = vld [vmem:[%s605] sm:$0xf]
        %v694 = vld [vmem:[%s605 + $0x4] sm:$0xf]
        %v695 = vld [vmem:[%s605 + $0x8] sm:$0xf]
        %v696 = vunpack.c.l.bf16 %v693
        %v697 = vunpack.c.l.bf16 %v694
        %v698 = vunpack.c.l.bf16 %v695
        %v699 = vld [vmem:[#allocation11] sm:$0x1]
        %v700 = vld [vmem:[#allocation12] sm:$0x1]
        %vm701 = vcmask 261120
        %v702 = vsel %vm701, %v696, 0.0
        %703 = vadd.xlane.f32.xlu0 %v702
        %v704 = vpop.xlane.xlu0 %703
        %v705 = vsel %vm701, %v697, 0.0
        %706 = vadd.xlane.f32.xlu0 %v705
        %v707 = vpop.xlane.xlu0 %706
        %v708 = vsel %vm701, %v698, 0.0
        %709 = vadd.xlane.f32.xlu0 %v708
        %v710 = vpop.xlane.xlu0 %709
        %v711 = vrcp.pop 32.0
        %v712 = vmul.f32 32.0, %v711
        %v713 = vsub.f32 1.0, %v712
        %v714 = vmul.f32 %v711, %v713
        %v715 = vadd.f32 %v711, %v714
        %vm716 = vweird.f32 %v711
        %v717 = vsel %vm716, %v711, %v715
        %v718 = vmul.f32 %v704, %v717
        %v719 = vmul.f32 %v707, %v717
        %v720 = vmul.f32 %v710, %v717
        %v721 = vsub.f32 %v696, %v718
        %v722 = vsub.f32 %v697, %v719
        %v723 = vsub.f32 %v698, %v720
        %v724 = vmul.f32 %v721, %v721
        %v725 = vmul.f32 %v722, %v722
        %v726 = vmul.f32 %v723, %v723
        %v727 = vsel %vm701, %v724, 0.0
        %728 = vadd.xlane.f32.xlu0 %v727
        %v729 = vpop.xlane.xlu0 %728
        %v730 = vsel %vm701, %v725, 0.0
        %731 = vadd.xlane.f32.xlu0 %v730
        %v732 = vpop.xlane.xlu0 %731
        %v733 = vsel %vm701, %v726, 0.0
        %734 = vadd.xlane.f32.xlu0 %v733
        %v735 = vpop.xlane.xlu0 %734
        %v736 = vmul.f32 %v729, %v717
        %v737 = vmul.f32 %v732, %v717
        %v738 = vmul.f32 %v735, %v717
        %v739 = vadd.f32 %v736, 1e-05
        %v740 = vadd.f32 %v737, 1e-05
        %v741 = vadd.f32 %v738, 1e-05
        %v742 = vrsqrt.pop %v739
        %v743 = vmul.f32 %v742, %v739
        %v744 = vmul.f32 %v743, %v742
        %v745 = vmul.f32 0.5, %v744
        %v746 = vsub.f32 1.5, %v745
        %v747 = vmul.f32 %v742, %v746
        %vm748 = vweird.f32 %v739
        %vm749 = vweird.f32 %v742
        %vm750 = vmor %vm748, %vm749
        %v751 = vsel %vm750, %v742, %v747
        %v752 = vrsqrt.pop %v740
        %v753 = vmul.f32 %v752, %v740
        %v754 = vmul.f32 %v753, %v752
        %v755 = vmul.f32 0.5, %v754
        %v756 = vsub.f32 1.5, %v755
        %v757 = vmul.f32 %v752, %v756
        %vm758 = vweird.f32 %v740
        %vm759 = vweird.f32 %v752
        %vm760 = vmor %vm758, %vm759
        %v761 = vsel %vm760, %v752, %v757
        %v762 = vrsqrt.pop %v741
        %v763 = vmul.f32 %v762, %v741
        %v764 = vmul.f32 %v763, %v762
        %v765 = vmul.f32 0.5, %v764
        %v766 = vsub.f32 1.5, %v765
        %v767 = vmul.f32 %v762, %v766
        %vm768 = vweird.f32 %v741
        %vm769 = vweird.f32 %v762
        %vm770 = vmor %vm768, %vm769
        %v771 = vsel %vm770, %v762, %v767
        %v772 = vmul.f32 %v721, %v751
        %v773 = vmul.f32 %v722, %v761
        %v774 = vmul.f32 %v723, %v771
        %v776 = vperm.slane %v699, 0
        %v778 = vmul.f32 %v772, %v776
        %v779 = vmul.f32 %v773, %v776
        %v780 = vmul.f32 %v774, %v776
        %v782 = vperm.slane %v700, 0
        %v784 = vadd.f32 %v778, %v782
        %v785 = vadd.f32 %v779, %v782
        %v786 = vadd.f32 %v780, %v782
        %v787 = vpack.c.bf16 %v785, %v784
        %v788 = vpack.c.bf16 %v786, %v786
        %v789 = vld [vmem:[%s1] sm:$0xf]
        %v790 = vld [vmem:[%s1 + $0x4] sm:$0xf]
        %v791 = vld [vmem:[%s1 + $0x8] sm:$0xf]
        %v792 = vld [vmem:[%s1 + $0xc] sm:$0xf]
        %v793 = vld [vmem:[#allocation3] sm:$0x1]
        %v795 = vperm.slane %v793, 0
        %v801 = vunpack.c.l.b16 %v789
        %v802 = vunpack.c.l.b16 %v790
        %v803 = vunpack.c.l.b16 %v791
        %v804 = vunpack.c.l.b16 %v792
        %v805 = vpack.c.b16 %v802, %v801
        %v806 = vpack.c.b16 %v804, %v803
        %v810 = vsel %vm701, %v787, 0
        %v813 = vsel %vm701, %v788, 0
        %815 = vmatpush.bf16.msra.mxu0 0
        %816 = vmatpush.bf16.msra.mxu0 0
        %817 = vmatpush.bf16.msra.mxu0 0
        %818 = vmatpush.bf16.msra.mxu0 0
        %819 = vmatpush.bf16.msra.mxu0 0
        %820 = vmatpush.bf16.msra.mxu0 0
        %821 = vmatpush.bf16.msra.mxu0 %v806
        %822 = vmatpush.bf16.msra.mxu0 %v805
        %823 = vmatmul.bf16.gmra.mxu0 %v810
        %v824 = vpop.f32.mrf.mxu0
        %v825 = vadd.f32 %v795, %v824
        %v826 = vpop.f32.mrf.mxu0
        %v827 = vadd.f32 %v795, %v826
        %828 = vmatmul.bf16.gmra.mxu0 %v813
        %v829 = vpop.f32.mrf.mxu0
        %v830 = vadd.f32 %v795, %v829
        %v831 = vpop.f32.mrf.mxu0
        %832 = vdwg.mxu0
        %v833 = vpack.c.bf16 %v825, %v825
        %v834 = vpack.c.bf16 %v827, %v827
        %v835 = vpack.c.bf16 %v830, %v830
        %v836 = vunpack.c.l.bf16 %v833
        %v837 = vunpack.c.l.bf16 %v834
        %v838 = vunpack.c.l.bf16 %v835
        %842 = vrot.lane.b32.xlu0 %v836, 96
        %v843 = vpop.permute.xlu0 %842
        %844 = vrot.lane.b32.xlu0 %v837, 96
        %v845 = vpop.permute.xlu0 %844
        %846 = vrot.lane.b32.xlu0 %v838, 96
        %v847 = vpop.permute.xlu0 %846
        %v851 = vmul.f32 %v836, %v843
        %v852 = vmul.f32 %v836, %v845
        %v853 = vmul.f32 %v836, %v847
        %v854 = vmul.f32 %v837, %v843
        %v855 = vmul.f32 %v837, %v845
        %v856 = vmul.f32 %v837, %v847
        %v857 = vmul.f32 %v838, %v843
        %v858 = vmul.f32 %v838, %v845
        %v859 = vmul.f32 %v838, %v847
        %v860 = vpack.c.bf16 %v851, %v851
        %v861 = vpack.c.bf16 %v852, %v852
        %v862 = vpack.c.bf16 %v853, %v853
        %v863 = vpack.c.bf16 %v854, %v854
        %v864 = vpack.c.bf16 %v855, %v855
        %v865 = vpack.c.bf16 %v856, %v856
        %v866 = vpack.c.bf16 %v857, %v857
        %v867 = vpack.c.bf16 %v858, %v858
        %v868 = vpack.c.bf16 %v859, %v859
        %v869 = vld [vmem:[#allocation9] sm:$0xf]
        %v870 = vld [vmem:[#allocation9 + $0x4] sm:$0xf]
        %v871 = vld [vmem:[#allocation9 + $0x8] sm:$0xf]
        %v872 = vld [vmem:[#allocation9 + $0xc] sm:$0xf]
        %v882 = vunpack.c.l.b16 %v860
        %v883 = vunpack.c.l.b16 %v861
        %v884 = vunpack.c.l.b16 %v862
        %v885 = vunpack.c.l.b16 %v863
        %v886 = vunpack.c.l.b16 %v864
        %v887 = vunpack.c.l.b16 %v865
        %v888 = vunpack.c.l.b16 %v866
        %v889 = vunpack.c.l.b16 %v867
        %v890 = vunpack.c.l.b16 %v868
        %v891 = vpack.c.b16 %v883, %v882
        %v892 = vpack.c.b16 %v885, %v884
        %v893 = vpack.c.b16 %v887, %v886
        %v894 = vpack.c.b16 %v889, %v888
        %v895 = vpack.c.b16 %v890, %v890
        %v900 = vunpack.c.l.b16 %v869
        %v901 = vunpack.c.l.b16 %v870
        %v902 = vunpack.c.l.b16 %v871
        %v903 = vunpack.c.l.b16 %v872
        %v904 = vpack.c.b16 %v901, %v900
        %v905 = vpack.c.b16 %v903, %v902
        %v909 = vsel %vm701, %v891, 0
        %v912 = vsel %vm701, %v892, 0
        %v915 = vsel %vm701, %v893, 0
        %v918 = vsel %vm701, %v894, 0
        %v921 = vsel %vm701, %v895, 0
        %923 = vmatpush.bf16.msra.mxu0 0
        %924 = vmatpush.bf16.msra.mxu0 0
        %925 = vmatpush.bf16.msra.mxu0 0
        %926 = vmatpush.bf16.msra.mxu0 0
        %927 = vmatpush.bf16.msra.mxu0 0
        %928 = vmatpush.bf16.msra.mxu0 0
        %929 = vmatpush.bf16.msra.mxu0 %v905
        %930 = vmatpush.bf16.msra.mxu0 %v904
        %931 = vmatmul.bf16.gmra.mxu0 %v909
        %v932 = vpop.f32.mrf.mxu0
        %v933 = vadd.f32 0.0, %v932
        %v934 = vpop.f32.mrf.mxu0
        %v935 = vadd.f32 0.0, %v934
        %936 = vmatmul.bf16.gmra.mxu0 %v912
        %v937 = vpop.f32.mrf.mxu0
        %v938 = vadd.f32 0.0, %v937
        %v939 = vpop.f32.mrf.mxu0
        %v940 = vadd.f32 0.0, %v939
        %941 = vmatmul.bf16.gmra.mxu0 %v915
        %v942 = vpop.f32.mrf.mxu0
        %v943 = vadd.f32 0.0, %v942
        %v944 = vpop.f32.mrf.mxu0
        %v945 = vadd.f32 0.0, %v944
        %946 = vmatmul.bf16.gmra.mxu0 %v918
        %v947 = vpop.f32.mrf.mxu0
        %v948 = vadd.f32 0.0, %v947
        %v949 = vpop.f32.mrf.mxu0
        %v950 = vadd.f32 0.0, %v949
        %951 = vmatmul.bf16.gmra.mxu0 %v921
        %v952 = vpop.f32.mrf.mxu0
        %v953 = vadd.f32 0.0, %v952
        %v954 = vpop.f32.mrf.mxu0
        %955 = vdwg.mxu0
        %v956 = vmax.f32 %v933, %v935
        %v957 = vmax.f32 %v940, %v943
        %v958 = vmax.f32 %v948, %v950
        %v959 = vmax.f32 %v956, %v938
        %v960 = vmax.f32 %v957, %v945
        %v961 = vmax.f32 %v958, %v953
        %v962 = vsub.f32 %v933, %v959
        %v963 = vsub.f32 %v935, %v959
        %v964 = vsub.f32 %v938, %v959
        %v965 = vsub.f32 %v940, %v960
        %v966 = vsub.f32 %v943, %v960
        %v967 = vsub.f32 %v945, %v960
        %v968 = vsub.f32 %v948, %v961
        %v969 = vsub.f32 %v950, %v961
        %v970 = vsub.f32 %v953, %v961
        %v971 = vmul.f32 %v962, 1.442695
        %v972 = vpow.pop %v971
        %v973 = vmul.f32 %v963, 1.442695
        %v974 = vpow.pop %v973
        %v975 = vmul.f32 %v964, 1.442695
        %v976 = vpow.pop %v975
        %v977 = vmul.f32 %v965, 1.442695
        %v978 = vpow.pop %v977
        %v979 = vmul.f32 %v966, 1.442695
        %v980 = vpow.pop %v979
        %v981 = vmul.f32 %v967, 1.442695
        %v982 = vpow.pop %v981
        %v983 = vmul.f32 %v968, 1.442695
        %v984 = vpow.pop %v983
        %v985 = vmul.f32 %v969, 1.442695
        %v986 = vpow.pop %v985
        %v987 = vmul.f32 %v970, 1.442695
        %v988 = vpow.pop %v987
        %v989 = vadd.f32 %v972, %v974
        %v990 = vadd.f32 %v978, %v980
        %v991 = vadd.f32 %v984, %v986
        %v992 = vadd.f32 %v989, %v976
        %v993 = vadd.f32 %v990, %v982
        %v994 = vadd.f32 %v991, %v988
        %v995 = vrcp.pop %v992
        %v996 = vrcp.pop %v993
        %v997 = vrcp.pop %v994
        %999 = vrot.lane.b32.xlu0 %v825, 64
        %v1000 = vpop.permute.xlu0 %999
        %v1002 = vmul.f32 %v972, %v1000
        %v1003 = vmul.f32 %v978, %v1000
        %v1004 = vmul.f32 %v984, %v1000
        %1006 = vrot.lane.b32.xlu0 %v827, 64
        %v1007 = vpop.permute.xlu0 %1006
        %v1009 = vmul.f32 %v974, %v1007
        %v1010 = vmul.f32 %v980, %v1007
        %v1011 = vmul.f32 %v986, %v1007
        %v1012 = vadd.f32 %v1002, %v1009
        %v1013 = vadd.f32 %v1003, %v1010
        %v1014 = vadd.f32 %v1004, %v1011
        %1016 = vrot.lane.b32.xlu0 %v830, 64
        %v1017 = vpop.permute.xlu0 %1016
        %v1019 = vmul.f32 %v976, %v1017
        %v1020 = vmul.f32 %v982, %v1017
        %v1021 = vmul.f32 %v988, %v1017
        %v1022 = vadd.f32 %v1012, %v1019
        %v1023 = vadd.f32 %v1013, %v1020
        %v1024 = vadd.f32 %v1014, %v1021
        %v1025 = vmul.f32 %v1022, %v995
        %v1026 = vmul.f32 %v1023, %v996
        %v1027 = vmul.f32 %v1024, %v997
        %v1028 = vpack.c.bf16 %v1026, %v1025
        %v1029 = vpack.c.bf16 %v1027, %v1027
        %v1030 = vld [vmem:[#allocation6] sm:$0xf]
        %v1031 = vld [vmem:[#allocation6 + $0x4] sm:$0xf]
        %v1032 = vld [vmem:[#allocation6 + $0x8] sm:$0xf]
        %v1033 = vld [vmem:[#allocation6 + $0xc] sm:$0xf]
        %v1038 = vunpack.c.l.b16 %v1030
        %v1039 = vunpack.c.l.b16 %v1031
        %v1040 = vunpack.c.l.b16 %v1032
        %v1041 = vunpack.c.l.b16 %v1033
        %v1042 = vpack.c.b16 %v1039, %v1038
        %v1043 = vpack.c.b16 %v1041, %v1040
        %v1047 = vsel %vm701, %v1028, 0
        %v1050 = vsel %vm701, %v1029, 0
        %1052 = vmatpush.bf16.msra.mxu0 0
        %1053 = vmatpush.bf16.msra.mxu0 0
        %1054 = vmatpush.bf16.msra.mxu0 0
        %1055 = vmatpush.bf16.msra.mxu0 0
        %1056 = vmatpush.bf16.msra.mxu0 0
        %1057 = vmatpush.bf16.msra.mxu0 0
        %1058 = vmatpush.bf16.msra.mxu0 %v1043
        %1059 = vmatpush.bf16.msra.mxu0 %v1042
        %1060 = vmatmul.bf16.gmra.mxu0 %v1047
        %v1061 = vpop.f32.mrf.mxu0
        %v1062 = vadd.f32 0.0, %v1061
        %v1063 = vpop.f32.mrf.mxu0
        %v1064 = vadd.f32 0.0, %v1063
        %1065 = vmatmul.bf16.gmra.mxu0 %v1050
        %v1066 = vpop.f32.mrf.mxu0
        %v1067 = vadd.f32 0.0, %v1066
        %v1068 = vpop.f32.mrf.mxu0
        %1069 = vdwg.mxu0
        %v1070 = vadd.f32 %v696, %v1062
        %v1071 = vadd.f32 %v697, %v1064
        %v1072 = vadd.f32 %v698, %v1067
        %v1073 = vld [vmem:[#allocation8] sm:$0x1]
        %v1075 = vperm.slane %v1073, 0
        %v1077 = vadd.f32 %v1070, %v1075
        %v1078 = vadd.f32 %v1071, %v1075
        %v1079 = vadd.f32 %v1072, %v1075
        %v1080 = vld [vmem:[#allocation14] sm:$0x1]
        %v1081 = vld [vmem:[#allocation15] sm:$0x1]
        %v1082 = vsel %vm701, %v1077, 0.0
        %1083 = vadd.xlane.f32.xlu0 %v1082
        %v1084 = vpop.xlane.xlu0 %1083
        %v1085 = vsel %vm701, %v1078, 0.0
        %1086 = vadd.xlane.f32.xlu0 %v1085
        %v1087 = vpop.xlane.xlu0 %1086
        %v1088 = vsel %vm701, %v1079, 0.0
        %1089 = vadd.xlane.f32.xlu0 %v1088
        %v1090 = vpop.xlane.xlu0 %1089
        %v1091 = vmul.f32 %v1084, %v717
        %v1092 = vmul.f32 %v1087, %v717
        %v1093 = vmul.f32 %v1090, %v717
        %v1094 = vsub.f32 %v1077, %v1091
        %v1095 = vsub.f32 %v1078, %v1092
        %v1096 = vsub.f32 %v1079, %v1093
        %v1097 = vmul.f32 %v1094, %v1094
        %v1098 = vmul.f32 %v1095, %v1095
        %v1099 = vmul.f32 %v1096, %v1096
        %v1100 = vsel %vm701, %v1097, 0.0
        %1101 = vadd.xlane.f32.xlu0 %v1100
        %v1102 = vpop.xlane.xlu0 %1101
        %v1103 = vsel %vm701, %v1098, 0.0
        %1104 = vadd.xlane.f32.xlu0 %v1103
        %v1105 = vpop.xlane.xlu0 %1104
        %v1106 = vsel %vm701, %v1099, 0.0
        %1107 = vadd.xlane.f32.xlu0 %v1106
        %v1108 = vpop.xlane.xlu0 %1107
        %v1109 = vmul.f32 %v1102, %v717
        %v1110 = vmul.f32 %v1105, %v717
        %v1111 = vmul.f32 %v1108, %v717
        %v1112 = vadd.f32 %v1109, 1e-05
        %v1113 = vadd.f32 %v1110, 1e-05
        %v1114 = vadd.f32 %v1111, 1e-05
        %v1115 = vrsqrt.pop %v1112
        %v1116 = vmul.f32 %v1115, %v1112
        %v1117 = vmul.f32 %v1116, %v1115
        %v1118 = vmul.f32 0.5, %v1117
        %v1119 = vsub.f32 1.5, %v1118
        %v1120 = vmul.f32 %v1115, %v1119
        %vm1121 = vweird.f32 %v1112
        %vm1122 = vweird.f32 %v1115
        %vm1123 = vmor %vm1121, %vm1122
        %v1124 = vsel %vm1123, %v1115, %v1120
        %v1125 = vrsqrt.pop %v1113
        %v1126 = vmul.f32 %v1125, %v1113
        %v1127 = vmul.f32 %v1126, %v1125
        %v1128 = vmul.f32 0.5, %v1127
        %v1129 = vsub.f32 1.5, %v1128
        %v1130 = vmul.f32 %v1125, %v1129
        %vm1131 = vweird.f32 %v1113
        %vm1132 = vweird.f32 %v1125
        %vm1133 = vmor %vm1131, %vm1132
        %v1134 = vsel %vm1133, %v1125, %v1130
        %v1135 = vrsqrt.pop %v1114
        %v1136 = vmul.f32 %v1135, %v1114
        %v1137 = vmul.f32 %v1136, %v1135
        %v1138 = vmul.f32 0.5, %v1137
        %v1139 = vsub.f32 1.5, %v1138
        %v1140 = vmul.f32 %v1135, %v1139
        %vm1141 = vweird.f32 %v1114
        %vm1142 = vweird.f32 %v1135
        %vm1143 = vmor %vm1141, %vm1142
        %v1144 = vsel %vm1143, %v1135, %v1140
        %v1145 = vmul.f32 %v1094, %v1124
        %v1146 = vmul.f32 %v1095, %v1134
        %v1147 = vmul.f32 %v1096, %v1144
        %v1149 = vperm.slane %v1080, 0
        %v1151 = vmul.f32 %v1145, %v1149
        %v1152 = vmul.f32 %v1146, %v1149
        %v1153 = vmul.f32 %v1147, %v1149
        %v1155 = vperm.slane %v1081, 0
        %v1157 = vadd.f32 %v1151, %v1155
        %v1158 = vadd.f32 %v1152, %v1155
        %v1159 = vadd.f32 %v1153, %v1155
        %v1160 = vpack.c.bf16 %v1158, %v1157
        %v1161 = vpack.c.bf16 %v1159, %v1159
        %v1162 = vld [vmem:[%s10] sm:$0xf]
        %v1163 = vld [vmem:[%s10 + $0x4] sm:$0xf]
        %v1164 = vld [vmem:[%s10 + $0x8] sm:$0xf]
        %v1165 = vld [vmem:[%s10 + $0xc] sm:$0xf]
        %v1166 = vld [vmem:[%s11] sm:$0x1]
        %v1168 = vperm.slane %v1166, 0
        %v1174 = vunpack.c.l.b16 %v1162
        %v1175 = vunpack.c.l.b16 %v1163
        %v1176 = vunpack.c.l.b16 %v1164
        %v1177 = vunpack.c.l.b16 %v1165
        %v1178 = vpack.c.b16 %v1175, %v1174
        %v1179 = vpack.c.b16 %v1177, %v1176
        %v1183 = vsel %vm701, %v1160, 0
        %v1186 = vsel %vm701, %v1161, 0
        %1188 = vmatpush.bf16.msra.mxu0 0
        %1189 = vmatpush.bf16.msra.mxu0 0
        %1190 = vmatpush.bf16.msra.mxu0 0
        %1191 = vmatpush.bf16.msra.mxu0 0
        %1192 = vmatpush.bf16.msra.mxu0 0
        %1193 = vmatpush.bf16.msra.mxu0 0
        %1194 = vmatpush.bf16.msra.mxu0 %v1179
        %1195 = vmatpush.bf16.msra.mxu0 %v1178
        %1196 = vmatmul.bf16.gmra.mxu0 %v1183
        %v1197 = vpop.f32.mrf.mxu0
        %v1198 = vadd.f32 %v1168, %v1197
        %v1199 = vpop.f32.mrf.mxu0
        %v1200 = vadd.f32 %v1168, %v1199
        %1201 = vmatmul.bf16.gmra.mxu0 %v1186
        %v1202 = vpop.f32.mrf.mxu0
        %v1203 = vadd.f32 %v1168, %v1202
        %v1204 = vpop.f32.mrf.mxu0
        %1205 = vdwg.mxu0
        %v1206 = vmax.f32 %v1198, 0.0
        %v1207 = vmax.f32 %v1200, 0.0
        %v1208 = vmax.f32 %v1203, 0.0
        %v1209 = vpack.c.bf16 %v1207, %v1206
        %v1210 = vpack.c.bf16 %v1208, %v1208
        %v1211 = vld [vmem:[%s12] sm:$0xf]
        %v1212 = vld [vmem:[%s12 + $0x4] sm:$0xf]
        %v1213 = vld [vmem:[%s12 + $0x8] sm:$0xf]
        %v1214 = vld [vmem:[%s12 + $0xc] sm:$0xf]
        %v1215 = vld [vmem:[%s12 + $0x10] sm:$0xf]
        %v1216 = vld [vmem:[%s12 + $0x14] sm:$0xf]
        %v1217 = vld [vmem:[%s12 + $0x18] sm:$0xf]
        %v1218 = vld [vmem:[%s12 + $0x1c] sm:$0xf]
        %v1227 = vunpack.c.l.b16 %v1211
        %v1228 = vunpack.c.l.b16 %v1212
        %v1229 = vunpack.c.l.b16 %v1213
        %v1230 = vunpack.c.l.b16 %v1214
        %v1231 = vunpack.c.l.b16 %v1215
        %v1232 = vunpack.c.l.b16 %v1216
        %v1233 = vunpack.c.l.b16 %v1217
        %v1234 = vunpack.c.l.b16 %v1218
        %v1235 = vpack.c.b16 %v1228, %v1227
        %v1236 = vpack.c.b16 %v1230, %v1229
        %v1237 = vpack.c.b16 %v1232, %v1231
        %v1238 = vpack.c.b16 %v1234, %v1233
        %vm1243 = vcmask 523264
        %v1245 = vsel %vm1243, %v1209, 0
        %v1248 = vsel %vm1243, %v1210, 0
        %1250 = vmatpush.bf16.msra.mxu0 0
        %1251 = vmatpush.bf16.msra.mxu0 0
        %1252 = vmatpush.bf16.msra.mxu0 0
        %1253 = vmatpush.bf16.msra.mxu0 0
        %1254 = vmatpush.bf16.msra.mxu0 %v1238
        %1255 = vmatpush.bf16.msra.mxu0 %v1237
        %1256 = vmatpush.bf16.msra.mxu0 %v1236
        %1257 = vmatpush.bf16.msra.mxu0 %v1235
        %1258 = vmatmul.bf16.gmra.mxu0 %v1245
        %v1259 = vpop.f32.mrf.mxu0
        %v1260 = vadd.f32 0.0, %v1259
        %v1261 = vpop.f32.mrf.mxu0
        %v1262 = vadd.f32 0.0, %v1261
        %1263 = vmatmul.bf16.gmra.mxu0 %v1248
        %v1264 = vpop.f32.mrf.mxu0
        %v1265 = vadd.f32 0.0, %v1264
        %v1266 = vpop.f32.mrf.mxu0
        %1267 = vdwg.mxu0
        %v1268 = vadd.f32 %v1077, %v1260
        %v1269 = vadd.f32 %v1078, %v1262
        %v1270 = vadd.f32 %v1079, %v1265
        %v1271 = vld [vmem:[%s13] sm:$0x1]
        %v1273 = vperm.slane %v1271, 0
        %v1275 = vadd.f32 %v1268, %v1273
        %v1276 = vadd.f32 %v1269, %v1273
        %v1277 = vadd.f32 %v1270, %v1273
        %v1278 = vpack.c.bf16 %v1275, %v1275
        %v1279 = vpack.c.bf16 %v1276, %v1276
        %v1280 = vpack.c.bf16 %v1277, %v1277
        %vm1281 = vcmask 257024
        %1282 = vst.msk [vmem:[%s691] sm:$0xf] %vm1281, %v1278
        %1283 = vst.msk [vmem:[%s691 + $0x4] sm:$0xf] %vm1281, %v1279
        %1284 = vst.msk [vmem:[%s691 + $0x8] sm:$0xf] %vm1281, %v1280
        %s1285 = sand.u32 %s384, 1
        %s1286 = scalar_lea.sflag [#allocation5], %s1285
        %s1287 = sand.u32 %s384, 1
        %s1288 = smul.addr %s1287, 12
        %s1289 = scalar_lea.vmem [#allocation17], %s1288
        // Predicated region
        $region158: #{tpu_custom_call.1} parent=120 // pred_check
          %p1290 = pneg %p394
        $region159: #{tpu_custom_call.1} parent=120 // pred_check_branch
          %1292 = sbr.rel (%p1290) target = $region161
        $region160: #{tpu_custom_call.1} parent=120 // pred_region
          %1294 = vsyncadd %s1286, 0
          %s1295 = smul.addr %s35, 4
          %s1296 = scalar_lea.hbm %s16, %s1295
          %s1297 = sshll.u32 %s1289, 4
          %s1298 = int_to_ptr.vmem [resolvable:$true] %s1297
          %s1299 = sshll.u32 %s1296, 4
          %s1300 = int_to_ptr.hbm [resolvable:$true] %s1299
          %1305 = dma.vmem_to_hbm [thread:$0]  %s1298, 192, %s1300, %s1286, 64, 128, 4
        $region161: #{tpu_custom_call.1} parent=120 // pred_fallthru
          _
      $region121: #{tpu_custom_call.1} parent=5 // pred_fallthru
        _
      %p1306 = scmp.le.s32.totalorder 2, %s30
      // Predicated region
      $region162: #{tpu_custom_call.1} parent=5 // pred_check
        %p1307 = pneg %p1306
      $region163: #{tpu_custom_call.1} parent=5 // pred_check_branch
        %1309 = sbr.rel (%p1307) target = $region165
      $region164: #{tpu_custom_call.1} parent=5 // pred_region
        %s1310 = ssub.s32 %s30, 2
        // Predicated region
        $region166: #{tpu_custom_call.1} parent=164 // pred_check
          %p1311 = pneg %p400
        $region167: #{tpu_custom_call.1} parent=164 // pred_check_branch
          %1313 = sbr.rel (%p1311) target = $region169
        $region168: #{tpu_custom_call.1} parent=164 // pred_region
          %s1314 = sand.u32 %s385, 1
          %s1315 = scalar_lea.sflag [#allocation5], %s1314
          %s1316 = sand.u32 %s385, 1
          %s1317 = smul.addr %s1316, 12
          %s1318 = scalar_lea.vmem [#allocation17], %s1317
          %1320 = dma.done %s1315, 192
        $region169: #{tpu_custom_call.1} parent=164 // pred_fallthru
          _
      $region165: #{tpu_custom_call.1} parent=5 // pred_fallthru
        _
    $region6: #{tpu_custom_call.1} parent=1 // loop_footer
      %s34 = sadd.s32 1, %s30
    $region7: #{tpu_custom_call.1} parent=1 // loop_footer_branch
      %29 = sbr.rel target = $region3
    $region8: #{tpu_custom_call.1} parent=1 // loop_exit
      _
    %1321 = vsyncpa [#allocation4], 1
    %s1322 = scalar_lea.sflag [#allocation4], 1
    %1323 = vsyncpa %s1322, 1
    %1324 = vsyncpa [#allocation7], 1
    %1325 = vsyncpa [#allocation10], 1
    %1326 = vsyncpa [#allocation13], 1
    %1327 = vsyncpa [#allocation16], 1
    %1328 = vsyncpa [#allocation5], 1
    %s1329 = scalar_lea.sflag [#allocation5], 1
    %1330 = vsyncpa %s1329, 1

</llo_original>
